<compile_context>
chip_gen: v7x
topology: tpu7x:2x2x1
jax: 0.10.0
libtpu: 0.0.40
codegen_flags: <defaults>
</compile_context>

<pallas_src>
import jax
import jax.numpy as jnp
from jax.experimental import pallas as pl
from jax.experimental.pallas import tpu as pltpu

# ---- block / problem configuration -------------------------------------------------
NB = 2            # batch
C_IN = 4          # in_planes
C_OUT = 8         # planes (expansion = 1)
H = W = 16        # spatial size
K = 3             # main-branch kernel_size
PAD = 1           # main-branch padding (stride=1, pool_size=1 assumed)
V_TH = 1.0        # IF neuron threshold
EPS = 1e-5        # BatchNorm eps
M = NB * H * W    # batch-folded spatial extent (lane axis) = 512

# The roll+mask im2col relies on these static assumptions.
assert PAD == K // 2, "roll/mask shifts derived for 'same' padding"
assert (W & (W - 1)) == 0 and (H & (H - 1)) == 0, "bit-trick masks need pow2 H, W"
LOG2_W = W.bit_length() - 1


# ---- Pallas kernel ------------------------------------------------------------------
def block_kernel(xf_ref, w1r_ref, w2_ref, b_ref, o_ref):
    """Single invocation, whole batch, lane-dense (channels x NB*H*W) layout.

    xf_ref  : (C_IN, M)              raw input, channel-major, lane-dense
    w1r_ref : (K*K, 2*C_OUT, C_IN)   per-tap weights: rows [0:C_OUT] = conv1*bn1
                                     scale, rows [C_OUT:] = residual 1x1*sbn
                                     scale (nonzero only at the centre tap)
    w2_ref  : (K*K, C_OUT, C_OUT)    per-tap conv2 weights with bn2 scale folded
    b_ref   : (2*C_OUT, 2)           col 0 = [bn1 bias ; sbn bias], col 1 = [bn2 bias ; 0]
    o_ref   : (C_OUT, M)             block output
    """
    xf = xf_ref[...]
    b = b_ref[...]

    # In-image (h, w) coordinates of every lane; images are 256-lane aligned so
    # the batch index never enters the mask (roll wrap across images is masked).
    lane = jax.lax.broadcasted_iota(jnp.int32, (1, M), 1)
    hh = (lane >> LOG2_W) & (H - 1)
    ww = lane & (W - 1)

    def tap_mask(kh, kw):
        dh, dw = kh - PAD, kw - PAD
        valid = ((hh + dh >= 0) & (hh + dh < H) &
                 (ww + dw >= 0) & (ww + dw < W))
        return valid.astype(jnp.float32)                     # (1, M)

    def conv_accum(src, w_taps_ref, n_rows):
        """sum_j dot(w_taps[j], shift_j(src) * mask_j) -- per-tap MXU accumulation."""
        acc = jnp.zeros((n_rows, M), jnp.float32)
        for kh in range(K):
            for kw in range(K):
                j = kh * K + kw
                s = (kh - PAD) * W + (kw - PAD)               # flat-lane tap offset
                sh = (-s) % M
                rolled = src if sh == 0 else pltpu.roll(src, shift=sh, axis=1)
                if not (kh == PAD and kw == PAD):             # centre tap: mask == 1
                    rolled = rolled * tap_mask(kh, kw)
                acc = acc + jnp.dot(w_taps_ref[j], rolled,
                                    preferred_element_type=jnp.float32)
        return acc

    # ---- fused first pass: conv1(+bn1) rows [0:8], residual 1x1(+sbn) rows [8:16] ----
    y1r = conv_accum(xf, w1r_ref, 2 * C_OUT) + b[:, 0:1]
    y1 = (y1r[:C_OUT] >= V_TH).astype(jnp.float32)            # IF neuron1 spikes
    yr = (y1r[C_OUT:] >= V_TH).astype(jnp.float32)            # IF neuronr spikes

    # ---- conv2(+bn2) over the spike map, same per-tap accumulation ----
    y2 = conv_accum(y1, w2_ref, C_OUT) + b[:C_OUT, 1:2]
    y2 = (y2 >= V_TH).astype(jnp.float32)                     # IF neuron2 spikes

    # ---- QuantizedAdd ----
    o_ref[...] = y2 + yr


# ---- wrapper ------------------------------------------------------------------------
def _fold_bn(gamma, beta, mean, var):
    scale = gamma / jnp.sqrt(var + EPS)
    bias = beta - mean * scale
    return scale, bias


@jax.jit
def quantized_basic_block(x_nchw, p):
    """x_nchw: (NB, C_IN, H, W) float32 -> (NB, C_OUT, H, W) float32."""
    # Only input prep: channel-major lane-dense flatten (~8 KiB of HBM traffic).
    xf = jnp.transpose(x_nchw, (1, 0, 2, 3)).reshape(C_IN, M).astype(jnp.float32)

    s1, b1 = _fold_bn(p['g1'], p['be1'], p['m1'], p['v1'])
    s2, b2 = _fold_bn(p['g2'], p['be2'], p['m2'], p['v2'])
    sr, br = _fold_bn(p['gr'], p['ber'], p['mr'], p['vr'])

    # Per-tap weight slabs with BN scale folded in; residual 1x1 conv fused into
    # the centre tap's bottom C_OUT rows.
    w1_taps = (jnp.transpose(p['w1'], (2, 3, 0, 1)).reshape(K * K, C_OUT, C_IN)
               * s1[None, :, None])                                    # (9, 8, 4)
    wr_s = p['wr'][:, :, 0, 0] * sr[:, None]                           # (8, 4)
    wr_taps = jnp.zeros((K * K, C_OUT, C_IN), jnp.float32).at[PAD * K + PAD].set(wr_s)
    w1r = jnp.concatenate([w1_taps, wr_taps], axis=1)                  # (9, 16, 4)
    w2_taps = (jnp.transpose(p['w2'], (2, 3, 0, 1)).reshape(K * K, C_OUT, C_OUT)
               * s2[None, :, None])                                    # (9, 8, 8)

    biases = jnp.stack([jnp.concatenate([b1, br]),
                        jnp.concatenate([b2, jnp.zeros_like(b2)])], axis=1)  # (16, 2)

    out = pl.pallas_call(
        block_kernel,
        out_shape=jax.ShapeDtypeStruct((C_OUT, M), jnp.float32),
        in_specs=[pl.BlockSpec(memory_space=pltpu.MemorySpace.VMEM)] * 4,
        out_specs=pl.BlockSpec(memory_space=pltpu.MemorySpace.VMEM),
    )(xf, w1r, w2_taps, biases)

    return jnp.transpose(out.reshape(C_OUT, NB, H, W), (1, 0, 2, 3))   # -> NCHW


# ---- pure-JAX reference (same semantics, XLA conv) ---------------------------------
def reference(x_nchw, p):
    x = jnp.transpose(x_nchw, (0, 2, 3, 1)).astype(jnp.float32)

    def conv(x, w_oihw, pad):
        w = jnp.transpose(w_oihw, (2, 3, 1, 0))
        return jax.lax.conv_general_dilated(
            x, w, (1, 1), [(pad, pad), (pad, pad)],
            dimension_numbers=('NHWC', 'HWIO', 'NHWC'))

    def bn(x, g, b, m, v):
        return g * (x - m) / jnp.sqrt(v + EPS) + b

    def spike(x):
        return (x >= V_TH).astype(jnp.float32)

    out = spike(bn(conv(x, p['w1'], PAD), p['g1'], p['be1'], p['m1'], p['v1']))
    out = spike(bn(conv(out, p['w2'], PAD), p['g2'], p['be2'], p['m2'], p['v2']))
    res = spike(bn(conv(x, p['wr'], 0), p['gr'], p['ber'], p['mr'], p['vr']))
    return jnp.transpose(out + res, (0, 3, 1, 2))


# ---- deterministic parameter init + run --------------------------------------------
if __name__ == "__main__":
    key = jax.random.PRNGKey(0)
    ks = jax.random.split(key, 16)

    x = jax.random.normal(ks[0], (NB, C_IN, H, W), jnp.float32)

    params = {
        # convs (PyTorch OIHW layout, bias=False because batch_norm=True)
        'w1': jax.random.normal(ks[1], (C_OUT, C_IN, K, K), jnp.float32) * 0.3,
        'w2': jax.random.normal(ks[2], (C_OUT, C_OUT, K, K), jnp.float32) * 0.2,
        'wr': jax.random.normal(ks[3], (C_OUT, C_IN, 1, 1), jnp.float32) * 0.5,
        # bn1
        'g1': 1.0 + 0.1 * jax.random.normal(ks[4], (C_OUT,), jnp.float32),
        'be1': 0.1 * jax.random.normal(ks[5], (C_OUT,), jnp.float32),
        'm1': 0.1 * jax.random.normal(ks[6], (C_OUT,), jnp.float32),
        'v1': 0.5 + jax.random.uniform(ks[7], (C_OUT,), jnp.float32),
        # bn2
        'g2': 1.0 + 0.1 * jax.random.normal(ks[8], (C_OUT,), jnp.float32),
        'be2': 0.1 * jax.random.normal(ks[9], (C_OUT,), jnp.float32),
        'm2': 0.1 * jax.random.normal(ks[10], (C_OUT,), jnp.float32),
        'v2': 0.5 + jax.random.uniform(ks[11], (C_OUT,), jnp.float32),
        # sbn (residual)
        'gr': 1.0 + 0.1 * jax.random.normal(ks[12], (C_OUT,), jnp.float32),
        'ber': 0.1 * jax.random.normal(ks[13], (C_OUT,), jnp.float32),
        'mr': 0.1 * jax.random.normal(ks[14], (C_OUT,), jnp.float32),
        'vr': 0.5 + jax.random.uniform(ks[15], (C_OUT,), jnp.float32),
    }

    out = quantized_basic_block(x, params)
    out = jax.block_until_ready(out)
    assert out.shape == (NB, C_OUT, H, W), out.shape

    ref = jax.block_until_ready(reference(x, params))
    # tolerate (extremely rare) IF-threshold straddles from fp accumulation-order
    # differences (per-tap accumulation vs XLA conv)
    mismatch_frac = float(jnp.mean((jnp.abs(out - ref) > 1e-3).astype(jnp.float32)))
    assert mismatch_frac < 1e-3, f"mismatch fraction too high: {mismatch_frac}"

    print("KERNEL_OK")
</pallas_src>

<mosaic_0001>
module attributes {stable_mosaic.version = 11 : i64} {
  func.func @block_kernel(%arg0: memref<4x512xf32, #tpu.memory_space<vmem>>, %arg1: memref<9x16x4xf32, #tpu.memory_space<vmem>>, %arg2: memref<9x8x8xf32, #tpu.memory_space<vmem>>, %arg3: memref<16x2xf32, #tpu.memory_space<vmem>>, %arg4: memref<8x512xf32, #tpu.memory_space<vmem>>) attributes {dimension_semantics = [], scalar_prefetch = 0 : i64, scratch_operands = 0 : i64, tpu.core_type = #tpu.core_type<tc>} {
    %c0 = arith.constant 0 : index
    %c0_0 = arith.constant 0 : index
    %0 = vector.load %arg0[%c0, %c0_0] : memref<4x512xf32, #tpu.memory_space<vmem>>, vector<4x512xf32>
    %c0_1 = arith.constant 0 : index
    %c0_2 = arith.constant 0 : index
    %1 = vector.load %arg3[%c0_1, %c0_2] : memref<16x2xf32, #tpu.memory_space<vmem>>, vector<16x2xf32>
    %2 = tpu.iota {dimensions = array<i32: 1>} : vector<1x512xi32>
    %c4_i32 = arith.constant 4 : i32
    %3 = vector.broadcast %c4_i32 : i32 to vector<1x512xi32>
    %4 = arith.shrsi %2, %3 : vector<1x512xi32>
    %c15_i32 = arith.constant 15 : i32
    %5 = vector.broadcast %c15_i32 : i32 to vector<1x512xi32>
    %6 = arith.andi %4, %5 : vector<1x512xi32>
    %c15_i32_3 = arith.constant 15 : i32
    %7 = vector.broadcast %c15_i32_3 : i32 to vector<1x512xi32>
    %8 = arith.andi %2, %7 : vector<1x512xi32>
    %cst = arith.constant 0.000000e+00 : f32
    %9 = vector.broadcast %cst : f32 to vector<16x512xf32>
    %c17_i32 = arith.constant 17 : i32
    %10 = tpu.dynamic_rotate %0 by %c17_i32 dim 1 : vector<4x512xf32>, i32 -> vector<4x512xf32>
    %c-1_i32 = arith.constant -1 : i32
    %11 = vector.broadcast %c-1_i32 : i32 to vector<1x512xi32>
    %12 = arith.addi %6, %11 : vector<1x512xi32>
    %c0_i32 = arith.constant 0 : i32
    %13 = vector.broadcast %c0_i32 : i32 to vector<1x512xi32>
    %14 = arith.cmpi sge, %12, %13 : vector<1x512xi32>
    %c-1_i32_4 = arith.constant -1 : i32
    %15 = vector.broadcast %c-1_i32_4 : i32 to vector<1x512xi32>
    %16 = arith.addi %6, %15 : vector<1x512xi32>
    %c16_i32 = arith.constant 16 : i32
    %17 = vector.broadcast %c16_i32 : i32 to vector<1x512xi32>
    %18 = arith.cmpi slt, %16, %17 : vector<1x512xi32>
    %19 = arith.andi %14, %18 : vector<1x512xi1>
    %c-1_i32_5 = arith.constant -1 : i32
    %20 = vector.broadcast %c-1_i32_5 : i32 to vector<1x512xi32>
    %21 = arith.addi %8, %20 : vector<1x512xi32>
    %c0_i32_6 = arith.constant 0 : i32
    %22 = vector.broadcast %c0_i32_6 : i32 to vector<1x512xi32>
    %23 = arith.cmpi sge, %21, %22 : vector<1x512xi32>
    %24 = arith.andi %19, %23 : vector<1x512xi1>
    %c-1_i32_7 = arith.constant -1 : i32
    %25 = vector.broadcast %c-1_i32_7 : i32 to vector<1x512xi32>
    %26 = arith.addi %8, %25 : vector<1x512xi32>
    %c16_i32_8 = arith.constant 16 : i32
    %27 = vector.broadcast %c16_i32_8 : i32 to vector<1x512xi32>
    %28 = arith.cmpi slt, %26, %27 : vector<1x512xi32>
    %29 = arith.andi %24, %28 : vector<1x512xi1>
    %30 = arith.extui %29 : vector<1x512xi1> to vector<1x512xi32>
    %31 = arith.sitofp %30 : vector<1x512xi32> to vector<1x512xf32>
    %32 = vector.broadcast %31 : vector<1x512xf32> to vector<4x512xf32>
    %33 = arith.mulf %10, %32 : vector<4x512xf32>
    %c0_9 = arith.constant 0 : index
    %c0_10 = arith.constant 0 : index
    %c0_11 = arith.constant 0 : index
    %34 = vector.load %arg1[%c0_9, %c0_10, %c0_11] : memref<9x16x4xf32, #tpu.memory_space<vmem>>, vector<1x16x4xf32>
    %35 = vector.shape_cast %34 : vector<1x16x4xf32> to vector<16x4xf32>
    %cst_12 = arith.constant dense<0.000000e+00> : vector<16x512xf32>
    %36 = tpu.matmul %35, %33, %cst_12 {dimension_numbers = #tpu.dot_dimension_numbers<[1], [0], [0], [1], [0, 0, 1, 1], [], []>} : vector<16x4xf32>, vector<4x512xf32>, vector<16x512xf32> -> vector<16x512xf32>
    %37 = arith.addf %9, %36 : vector<16x512xf32>
    %c16_i32_13 = arith.constant 16 : i32
    %38 = tpu.dynamic_rotate %0 by %c16_i32_13 dim 1 : vector<4x512xf32>, i32 -> vector<4x512xf32>
    %c-1_i32_14 = arith.constant -1 : i32
    %39 = vector.broadcast %c-1_i32_14 : i32 to vector<1x512xi32>
    %40 = arith.addi %6, %39 : vector<1x512xi32>
    %c0_i32_15 = arith.constant 0 : i32
    %41 = vector.broadcast %c0_i32_15 : i32 to vector<1x512xi32>
    %42 = arith.cmpi sge, %40, %41 : vector<1x512xi32>
    %c-1_i32_16 = arith.constant -1 : i32
    %43 = vector.broadcast %c-1_i32_16 : i32 to vector<1x512xi32>
    %44 = arith.addi %6, %43 : vector<1x512xi32>
    %c16_i32_17 = arith.constant 16 : i32
    %45 = vector.broadcast %c16_i32_17 : i32 to vector<1x512xi32>
    %46 = arith.cmpi slt, %44, %45 : vector<1x512xi32>
    %47 = arith.andi %42, %46 : vector<1x512xi1>
    %c0_i32_18 = arith.constant 0 : i32
    %48 = vector.broadcast %c0_i32_18 : i32 to vector<1x512xi32>
    %49 = arith.addi %8, %48 : vector<1x512xi32>
    %c0_i32_19 = arith.constant 0 : i32
    %50 = vector.broadcast %c0_i32_19 : i32 to vector<1x512xi32>
    %51 = arith.cmpi sge, %49, %50 : vector<1x512xi32>
    %52 = arith.andi %47, %51 : vector<1x512xi1>
    %c0_i32_20 = arith.constant 0 : i32
    %53 = vector.broadcast %c0_i32_20 : i32 to vector<1x512xi32>
    %54 = arith.addi %8, %53 : vector<1x512xi32>
    %c16_i32_21 = arith.constant 16 : i32
    %55 = vector.broadcast %c16_i32_21 : i32 to vector<1x512xi32>
    %56 = arith.cmpi slt, %54, %55 : vector<1x512xi32>
    %57 = arith.andi %52, %56 : vector<1x512xi1>
    %58 = arith.extui %57 : vector<1x512xi1> to vector<1x512xi32>
    %59 = arith.sitofp %58 : vector<1x512xi32> to vector<1x512xf32>
    %60 = vector.broadcast %59 : vector<1x512xf32> to vector<4x512xf32>
    %61 = arith.mulf %38, %60 : vector<4x512xf32>
    %c1 = arith.constant 1 : index
    %c0_22 = arith.constant 0 : index
    %c0_23 = arith.constant 0 : index
    %62 = vector.load %arg1[%c1, %c0_22, %c0_23] : memref<9x16x4xf32, #tpu.memory_space<vmem>>, vector<1x16x4xf32>
    %63 = vector.shape_cast %62 : vector<1x16x4xf32> to vector<16x4xf32>
    %cst_24 = arith.constant dense<0.000000e+00> : vector<16x512xf32>
    %64 = tpu.matmul %63, %61, %cst_24 {dimension_numbers = #tpu.dot_dimension_numbers<[1], [0], [0], [1], [0, 0, 1, 1], [], []>} : vector<16x4xf32>, vector<4x512xf32>, vector<16x512xf32> -> vector<16x512xf32>
    %65 = arith.addf %37, %64 : vector<16x512xf32>
    %c15_i32_25 = arith.constant 15 : i32
    %66 = tpu.dynamic_rotate %0 by %c15_i32_25 dim 1 : vector<4x512xf32>, i32 -> vector<4x512xf32>
    %c-1_i32_26 = arith.constant -1 : i32
    %67 = vector.broadcast %c-1_i32_26 : i32 to vector<1x512xi32>
    %68 = arith.addi %6, %67 : vector<1x512xi32>
    %c0_i32_27 = arith.constant 0 : i32
    %69 = vector.broadcast %c0_i32_27 : i32 to vector<1x512xi32>
    %70 = arith.cmpi sge, %68, %69 : vector<1x512xi32>
    %c-1_i32_28 = arith.constant -1 : i32
    %71 = vector.broadcast %c-1_i32_28 : i32 to vector<1x512xi32>
    %72 = arith.addi %6, %71 : vector<1x512xi32>
    %c16_i32_29 = arith.constant 16 : i32
    %73 = vector.broadcast %c16_i32_29 : i32 to vector<1x512xi32>
    %74 = arith.cmpi slt, %72, %73 : vector<1x512xi32>
    %75 = arith.andi %70, %74 : vector<1x512xi1>
    %c1_i32 = arith.constant 1 : i32
    %76 = vector.broadcast %c1_i32 : i32 to vector<1x512xi32>
    %77 = arith.addi %8, %76 : vector<1x512xi32>
    %c0_i32_30 = arith.constant 0 : i32
    %78 = vector.broadcast %c0_i32_30 : i32 to vector<1x512xi32>
    %79 = arith.cmpi sge, %77, %78 : vector<1x512xi32>
    %80 = arith.andi %75, %79 : vector<1x512xi1>
    %c1_i32_31 = arith.constant 1 : i32
    %81 = vector.broadcast %c1_i32_31 : i32 to vector<1x512xi32>
    %82 = arith.addi %8, %81 : vector<1x512xi32>
    %c16_i32_32 = arith.constant 16 : i32
    %83 = vector.broadcast %c16_i32_32 : i32 to vector<1x512xi32>
    %84 = arith.cmpi slt, %82, %83 : vector<1x512xi32>
    %85 = arith.andi %80, %84 : vector<1x512xi1>
    %86 = arith.extui %85 : vector<1x512xi1> to vector<1x512xi32>
    %87 = arith.sitofp %86 : vector<1x512xi32> to vector<1x512xf32>
    %88 = vector.broadcast %87 : vector<1x512xf32> to vector<4x512xf32>
    %89 = arith.mulf %66, %88 : vector<4x512xf32>
    %c2 = arith.constant 2 : index
    %c0_33 = arith.constant 0 : index
    %c0_34 = arith.constant 0 : index
    %90 = vector.load %arg1[%c2, %c0_33, %c0_34] : memref<9x16x4xf32, #tpu.memory_space<vmem>>, vector<1x16x4xf32>
    %91 = vector.shape_cast %90 : vector<1x16x4xf32> to vector<16x4xf32>
    %cst_35 = arith.constant dense<0.000000e+00> : vector<16x512xf32>
    %92 = tpu.matmul %91, %89, %cst_35 {dimension_numbers = #tpu.dot_dimension_numbers<[1], [0], [0], [1], [0, 0, 1, 1], [], []>} : vector<16x4xf32>, vector<4x512xf32>, vector<16x512xf32> -> vector<16x512xf32>
    %93 = arith.addf %65, %92 : vector<16x512xf32>
    %c1_i32_36 = arith.constant 1 : i32
    %94 = tpu.dynamic_rotate %0 by %c1_i32_36 dim 1 : vector<4x512xf32>, i32 -> vector<4x512xf32>
    %c0_i32_37 = arith.constant 0 : i32
    %95 = vector.broadcast %c0_i32_37 : i32 to vector<1x512xi32>
    %96 = arith.addi %6, %95 : vector<1x512xi32>
    %c0_i32_38 = arith.constant 0 : i32
    %97 = vector.broadcast %c0_i32_38 : i32 to vector<1x512xi32>
    %98 = arith.cmpi sge, %96, %97 : vector<1x512xi32>
    %c0_i32_39 = arith.constant 0 : i32
    %99 = vector.broadcast %c0_i32_39 : i32 to vector<1x512xi32>
    %100 = arith.addi %6, %99 : vector<1x512xi32>
    %c16_i32_40 = arith.constant 16 : i32
    %101 = vector.broadcast %c16_i32_40 : i32 to vector<1x512xi32>
    %102 = arith.cmpi slt, %100, %101 : vector<1x512xi32>
    %103 = arith.andi %98, %102 : vector<1x512xi1>
    %c-1_i32_41 = arith.constant -1 : i32
    %104 = vector.broadcast %c-1_i32_41 : i32 to vector<1x512xi32>
    %105 = arith.addi %8, %104 : vector<1x512xi32>
    %c0_i32_42 = arith.constant 0 : i32
    %106 = vector.broadcast %c0_i32_42 : i32 to vector<1x512xi32>
    %107 = arith.cmpi sge, %105, %106 : vector<1x512xi32>
    %108 = arith.andi %103, %107 : vector<1x512xi1>
    %c-1_i32_43 = arith.constant -1 : i32
    %109 = vector.broadcast %c-1_i32_43 : i32 to vector<1x512xi32>
    %110 = arith.addi %8, %109 : vector<1x512xi32>
    %c16_i32_44 = arith.constant 16 : i32
    %111 = vector.broadcast %c16_i32_44 : i32 to vector<1x512xi32>
    %112 = arith.cmpi slt, %110, %111 : vector<1x512xi32>
    %113 = arith.andi %108, %112 : vector<1x512xi1>
    %114 = arith.extui %113 : vector<1x512xi1> to vector<1x512xi32>
    %115 = arith.sitofp %114 : vector<1x512xi32> to vector<1x512xf32>
    %116 = vector.broadcast %115 : vector<1x512xf32> to vector<4x512xf32>
    %117 = arith.mulf %94, %116 : vector<4x512xf32>
    %c3 = arith.constant 3 : index
    %c0_45 = arith.constant 0 : index
    %c0_46 = arith.constant 0 : index
    %118 = vector.load %arg1[%c3, %c0_45, %c0_46] : memref<9x16x4xf32, #tpu.memory_space<vmem>>, vector<1x16x4xf32>
    %119 = vector.shape_cast %118 : vector<1x16x4xf32> to vector<16x4xf32>
    %cst_47 = arith.constant dense<0.000000e+00> : vector<16x512xf32>
    %120 = tpu.matmul %119, %117, %cst_47 {dimension_numbers = #tpu.dot_dimension_numbers<[1], [0], [0], [1], [0, 0, 1, 1], [], []>} : vector<16x4xf32>, vector<4x512xf32>, vector<16x512xf32> -> vector<16x512xf32>
    %121 = arith.addf %93, %120 : vector<16x512xf32>
    %c4 = arith.constant 4 : index
    %c0_48 = arith.constant 0 : index
    %c0_49 = arith.constant 0 : index
    %122 = vector.load %arg1[%c4, %c0_48, %c0_49] : memref<9x16x4xf32, #tpu.memory_space<vmem>>, vector<1x16x4xf32>
    %123 = vector.shape_cast %122 : vector<1x16x4xf32> to vector<16x4xf32>
    %cst_50 = arith.constant dense<0.000000e+00> : vector<16x512xf32>
    %124 = tpu.matmul %123, %0, %cst_50 {dimension_numbers = #tpu.dot_dimension_numbers<[1], [0], [0], [1], [0, 0, 1, 1], [], []>} : vector<16x4xf32>, vector<4x512xf32>, vector<16x512xf32> -> vector<16x512xf32>
    %125 = arith.addf %121, %124 : vector<16x512xf32>
    %c511_i32 = arith.constant 511 : i32
    %126 = tpu.dynamic_rotate %0 by %c511_i32 dim 1 : vector<4x512xf32>, i32 -> vector<4x512xf32>
    %c0_i32_51 = arith.constant 0 : i32
    %127 = vector.broadcast %c0_i32_51 : i32 to vector<1x512xi32>
    %128 = arith.addi %6, %127 : vector<1x512xi32>
    %c0_i32_52 = arith.constant 0 : i32
    %129 = vector.broadcast %c0_i32_52 : i32 to vector<1x512xi32>
    %130 = arith.cmpi sge, %128, %129 : vector<1x512xi32>
    %c0_i32_53 = arith.constant 0 : i32
    %131 = vector.broadcast %c0_i32_53 : i32 to vector<1x512xi32>
    %132 = arith.addi %6, %131 : vector<1x512xi32>
    %c16_i32_54 = arith.constant 16 : i32
    %133 = vector.broadcast %c16_i32_54 : i32 to vector<1x512xi32>
    %134 = arith.cmpi slt, %132, %133 : vector<1x512xi32>
    %135 = arith.andi %130, %134 : vector<1x512xi1>
    %c1_i32_55 = arith.constant 1 : i32
    %136 = vector.broadcast %c1_i32_55 : i32 to vector<1x512xi32>
    %137 = arith.addi %8, %136 : vector<1x512xi32>
    %c0_i32_56 = arith.constant 0 : i32
    %138 = vector.broadcast %c0_i32_56 : i32 to vector<1x512xi32>
    %139 = arith.cmpi sge, %137, %138 : vector<1x512xi32>
    %140 = arith.andi %135, %139 : vector<1x512xi1>
    %c1_i32_57 = arith.constant 1 : i32
    %141 = vector.broadcast %c1_i32_57 : i32 to vector<1x512xi32>
    %142 = arith.addi %8, %141 : vector<1x512xi32>
    %c16_i32_58 = arith.constant 16 : i32
    %143 = vector.broadcast %c16_i32_58 : i32 to vector<1x512xi32>
    %144 = arith.cmpi slt, %142, %143 : vector<1x512xi32>
    %145 = arith.andi %140, %144 : vector<1x512xi1>
    %146 = arith.extui %145 : vector<1x512xi1> to vector<1x512xi32>
    %147 = arith.sitofp %146 : vector<1x512xi32> to vector<1x512xf32>
    %148 = vector.broadcast %147 : vector<1x512xf32> to vector<4x512xf32>
    %149 = arith.mulf %126, %148 : vector<4x512xf32>
    %c5 = arith.constant 5 : index
    %c0_59 = arith.constant 0 : index
    %c0_60 = arith.constant 0 : index
    %150 = vector.load %arg1[%c5, %c0_59, %c0_60] : memref<9x16x4xf32, #tpu.memory_space<vmem>>, vector<1x16x4xf32>
    %151 = vector.shape_cast %150 : vector<1x16x4xf32> to vector<16x4xf32>
    %cst_61 = arith.constant dense<0.000000e+00> : vector<16x512xf32>
    %152 = tpu.matmul %151, %149, %cst_61 {dimension_numbers = #tpu.dot_dimension_numbers<[1], [0], [0], [1], [0, 0, 1, 1], [], []>} : vector<16x4xf32>, vector<4x512xf32>, vector<16x512xf32> -> vector<16x512xf32>
    %153 = arith.addf %125, %152 : vector<16x512xf32>
    %c497_i32 = arith.constant 497 : i32
    %154 = tpu.dynamic_rotate %0 by %c497_i32 dim 1 : vector<4x512xf32>, i32 -> vector<4x512xf32>
    %c1_i32_62 = arith.constant 1 : i32
    %155 = vector.broadcast %c1_i32_62 : i32 to vector<1x512xi32>
    %156 = arith.addi %6, %155 : vector<1x512xi32>
    %c0_i32_63 = arith.constant 0 : i32
    %157 = vector.broadcast %c0_i32_63 : i32 to vector<1x512xi32>
    %158 = arith.cmpi sge, %156, %157 : vector<1x512xi32>
    %c1_i32_64 = arith.constant 1 : i32
    %159 = vector.broadcast %c1_i32_64 : i32 to vector<1x512xi32>
    %160 = arith.addi %6, %159 : vector<1x512xi32>
    %c16_i32_65 = arith.constant 16 : i32
    %161 = vector.broadcast %c16_i32_65 : i32 to vector<1x512xi32>
    %162 = arith.cmpi slt, %160, %161 : vector<1x512xi32>
    %163 = arith.andi %158, %162 : vector<1x512xi1>
    %c-1_i32_66 = arith.constant -1 : i32
    %164 = vector.broadcast %c-1_i32_66 : i32 to vector<1x512xi32>
    %165 = arith.addi %8, %164 : vector<1x512xi32>
    %c0_i32_67 = arith.constant 0 : i32
    %166 = vector.broadcast %c0_i32_67 : i32 to vector<1x512xi32>
    %167 = arith.cmpi sge, %165, %166 : vector<1x512xi32>
    %168 = arith.andi %163, %167 : vector<1x512xi1>
    %c-1_i32_68 = arith.constant -1 : i32
    %169 = vector.broadcast %c-1_i32_68 : i32 to vector<1x512xi32>
    %170 = arith.addi %8, %169 : vector<1x512xi32>
    %c16_i32_69 = arith.constant 16 : i32
    %171 = vector.broadcast %c16_i32_69 : i32 to vector<1x512xi32>
    %172 = arith.cmpi slt, %170, %171 : vector<1x512xi32>
    %173 = arith.andi %168, %172 : vector<1x512xi1>
    %174 = arith.extui %173 : vector<1x512xi1> to vector<1x512xi32>
    %175 = arith.sitofp %174 : vector<1x512xi32> to vector<1x512xf32>
    %176 = vector.broadcast %175 : vector<1x512xf32> to vector<4x512xf32>
    %177 = arith.mulf %154, %176 : vector<4x512xf32>
    %c6 = arith.constant 6 : index
    %c0_70 = arith.constant 0 : index
    %c0_71 = arith.constant 0 : index
    %178 = vector.load %arg1[%c6, %c0_70, %c0_71] : memref<9x16x4xf32, #tpu.memory_space<vmem>>, vector<1x16x4xf32>
    %179 = vector.shape_cast %178 : vector<1x16x4xf32> to vector<16x4xf32>
    %cst_72 = arith.constant dense<0.000000e+00> : vector<16x512xf32>
    %180 = tpu.matmul %179, %177, %cst_72 {dimension_numbers = #tpu.dot_dimension_numbers<[1], [0], [0], [1], [0, 0, 1, 1], [], []>} : vector<16x4xf32>, vector<4x512xf32>, vector<16x512xf32> -> vector<16x512xf32>
    %181 = arith.addf %153, %180 : vector<16x512xf32>
    %c496_i32 = arith.constant 496 : i32
    %182 = tpu.dynamic_rotate %0 by %c496_i32 dim 1 : vector<4x512xf32>, i32 -> vector<4x512xf32>
    %c1_i32_73 = arith.constant 1 : i32
    %183 = vector.broadcast %c1_i32_73 : i32 to vector<1x512xi32>
    %184 = arith.addi %6, %183 : vector<1x512xi32>
    %c0_i32_74 = arith.constant 0 : i32
    %185 = vector.broadcast %c0_i32_74 : i32 to vector<1x512xi32>
    %186 = arith.cmpi sge, %184, %185 : vector<1x512xi32>
    %c1_i32_75 = arith.constant 1 : i32
    %187 = vector.broadcast %c1_i32_75 : i32 to vector<1x512xi32>
    %188 = arith.addi %6, %187 : vector<1x512xi32>
    %c16_i32_76 = arith.constant 16 : i32
    %189 = vector.broadcast %c16_i32_76 : i32 to vector<1x512xi32>
    %190 = arith.cmpi slt, %188, %189 : vector<1x512xi32>
    %191 = arith.andi %186, %190 : vector<1x512xi1>
    %c0_i32_77 = arith.constant 0 : i32
    %192 = vector.broadcast %c0_i32_77 : i32 to vector<1x512xi32>
    %193 = arith.addi %8, %192 : vector<1x512xi32>
    %c0_i32_78 = arith.constant 0 : i32
    %194 = vector.broadcast %c0_i32_78 : i32 to vector<1x512xi32>
    %195 = arith.cmpi sge, %193, %194 : vector<1x512xi32>
    %196 = arith.andi %191, %195 : vector<1x512xi1>
    %c0_i32_79 = arith.constant 0 : i32
    %197 = vector.broadcast %c0_i32_79 : i32 to vector<1x512xi32>
    %198 = arith.addi %8, %197 : vector<1x512xi32>
    %c16_i32_80 = arith.constant 16 : i32
    %199 = vector.broadcast %c16_i32_80 : i32 to vector<1x512xi32>
    %200 = arith.cmpi slt, %198, %199 : vector<1x512xi32>
    %201 = arith.andi %196, %200 : vector<1x512xi1>
    %202 = arith.extui %201 : vector<1x512xi1> to vector<1x512xi32>
    %203 = arith.sitofp %202 : vector<1x512xi32> to vector<1x512xf32>
    %204 = vector.broadcast %203 : vector<1x512xf32> to vector<4x512xf32>
    %205 = arith.mulf %182, %204 : vector<4x512xf32>
    %c7 = arith.constant 7 : index
    %c0_81 = arith.constant 0 : index
    %c0_82 = arith.constant 0 : index
    %206 = vector.load %arg1[%c7, %c0_81, %c0_82] : memref<9x16x4xf32, #tpu.memory_space<vmem>>, vector<1x16x4xf32>
    %207 = vector.shape_cast %206 : vector<1x16x4xf32> to vector<16x4xf32>
    %cst_83 = arith.constant dense<0.000000e+00> : vector<16x512xf32>
    %208 = tpu.matmul %207, %205, %cst_83 {dimension_numbers = #tpu.dot_dimension_numbers<[1], [0], [0], [1], [0, 0, 1, 1], [], []>} : vector<16x4xf32>, vector<4x512xf32>, vector<16x512xf32> -> vector<16x512xf32>
    %209 = arith.addf %181, %208 : vector<16x512xf32>
    %c495_i32 = arith.constant 495 : i32
    %210 = tpu.dynamic_rotate %0 by %c495_i32 dim 1 : vector<4x512xf32>, i32 -> vector<4x512xf32>
    %c1_i32_84 = arith.constant 1 : i32
    %211 = vector.broadcast %c1_i32_84 : i32 to vector<1x512xi32>
    %212 = arith.addi %6, %211 : vector<1x512xi32>
    %c0_i32_85 = arith.constant 0 : i32
    %213 = vector.broadcast %c0_i32_85 : i32 to vector<1x512xi32>
    %214 = arith.cmpi sge, %212, %213 : vector<1x512xi32>
    %c1_i32_86 = arith.constant 1 : i32
    %215 = vector.broadcast %c1_i32_86 : i32 to vector<1x512xi32>
    %216 = arith.addi %6, %215 : vector<1x512xi32>
    %c16_i32_87 = arith.constant 16 : i32
    %217 = vector.broadcast %c16_i32_87 : i32 to vector<1x512xi32>
    %218 = arith.cmpi slt, %216, %217 : vector<1x512xi32>
    %219 = arith.andi %214, %218 : vector<1x512xi1>
    %c1_i32_88 = arith.constant 1 : i32
    %220 = vector.broadcast %c1_i32_88 : i32 to vector<1x512xi32>
    %221 = arith.addi %8, %220 : vector<1x512xi32>
    %c0_i32_89 = arith.constant 0 : i32
    %222 = vector.broadcast %c0_i32_89 : i32 to vector<1x512xi32>
    %223 = arith.cmpi sge, %221, %222 : vector<1x512xi32>
    %224 = arith.andi %219, %223 : vector<1x512xi1>
    %c1_i32_90 = arith.constant 1 : i32
    %225 = vector.broadcast %c1_i32_90 : i32 to vector<1x512xi32>
    %226 = arith.addi %8, %225 : vector<1x512xi32>
    %c16_i32_91 = arith.constant 16 : i32
    %227 = vector.broadcast %c16_i32_91 : i32 to vector<1x512xi32>
    %228 = arith.cmpi slt, %226, %227 : vector<1x512xi32>
    %229 = arith.andi %224, %228 : vector<1x512xi1>
    %230 = arith.extui %229 : vector<1x512xi1> to vector<1x512xi32>
    %231 = arith.sitofp %230 : vector<1x512xi32> to vector<1x512xf32>
    %232 = vector.broadcast %231 : vector<1x512xf32> to vector<4x512xf32>
    %233 = arith.mulf %210, %232 : vector<4x512xf32>
    %c8 = arith.constant 8 : index
    %c0_92 = arith.constant 0 : index
    %c0_93 = arith.constant 0 : index
    %234 = vector.load %arg1[%c8, %c0_92, %c0_93] : memref<9x16x4xf32, #tpu.memory_space<vmem>>, vector<1x16x4xf32>
    %235 = vector.shape_cast %234 : vector<1x16x4xf32> to vector<16x4xf32>
    %cst_94 = arith.constant dense<0.000000e+00> : vector<16x512xf32>
    %236 = tpu.matmul %235, %233, %cst_94 {dimension_numbers = #tpu.dot_dimension_numbers<[1], [0], [0], [1], [0, 0, 1, 1], [], []>} : vector<16x4xf32>, vector<4x512xf32>, vector<16x512xf32> -> vector<16x512xf32>
    %237 = arith.addf %209, %236 : vector<16x512xf32>
    %238 = vector.extract_strided_slice %1 {offsets = [0, 0], sizes = [16, 1], strides = [1, 1]} : vector<16x2xf32> to vector<16x1xf32>
    %239 = vector.broadcast %238 : vector<16x1xf32> to vector<16x512xf32>
    %240 = arith.addf %237, %239 : vector<16x512xf32>
    %241 = vector.extract_strided_slice %240 {offsets = [0, 0], sizes = [8, 512], strides = [1, 1]} : vector<16x512xf32> to vector<8x512xf32>
    %cst_95 = arith.constant 1.000000e+00 : f32
    %242 = vector.broadcast %cst_95 : f32 to vector<8x512xf32>
    %243 = arith.cmpf oge, %241, %242 : vector<8x512xf32>
    %244 = arith.extui %243 : vector<8x512xi1> to vector<8x512xi32>
    %245 = arith.sitofp %244 : vector<8x512xi32> to vector<8x512xf32>
    %246 = vector.extract_strided_slice %240 {offsets = [8, 0], sizes = [8, 512], strides = [1, 1]} : vector<16x512xf32> to vector<8x512xf32>
    %cst_96 = arith.constant 1.000000e+00 : f32
    %247 = vector.broadcast %cst_96 : f32 to vector<8x512xf32>
    %248 = arith.cmpf oge, %246, %247 : vector<8x512xf32>
    %249 = arith.extui %248 : vector<8x512xi1> to vector<8x512xi32>
    %250 = arith.sitofp %249 : vector<8x512xi32> to vector<8x512xf32>
    %cst_97 = arith.constant 0.000000e+00 : f32
    %251 = vector.broadcast %cst_97 : f32 to vector<8x512xf32>
    %c17_i32_98 = arith.constant 17 : i32
    %252 = tpu.dynamic_rotate %245 by %c17_i32_98 dim 1 : vector<8x512xf32>, i32 -> vector<8x512xf32>
    %c-1_i32_99 = arith.constant -1 : i32
    %253 = vector.broadcast %c-1_i32_99 : i32 to vector<1x512xi32>
    %254 = arith.addi %6, %253 : vector<1x512xi32>
    %c0_i32_100 = arith.constant 0 : i32
    %255 = vector.broadcast %c0_i32_100 : i32 to vector<1x512xi32>
    %256 = arith.cmpi sge, %254, %255 : vector<1x512xi32>
    %c-1_i32_101 = arith.constant -1 : i32
    %257 = vector.broadcast %c-1_i32_101 : i32 to vector<1x512xi32>
    %258 = arith.addi %6, %257 : vector<1x512xi32>
    %c16_i32_102 = arith.constant 16 : i32
    %259 = vector.broadcast %c16_i32_102 : i32 to vector<1x512xi32>
    %260 = arith.cmpi slt, %258, %259 : vector<1x512xi32>
    %261 = arith.andi %256, %260 : vector<1x512xi1>
    %c-1_i32_103 = arith.constant -1 : i32
    %262 = vector.broadcast %c-1_i32_103 : i32 to vector<1x512xi32>
    %263 = arith.addi %8, %262 : vector<1x512xi32>
    %c0_i32_104 = arith.constant 0 : i32
    %264 = vector.broadcast %c0_i32_104 : i32 to vector<1x512xi32>
    %265 = arith.cmpi sge, %263, %264 : vector<1x512xi32>
    %266 = arith.andi %261, %265 : vector<1x512xi1>
    %c-1_i32_105 = arith.constant -1 : i32
    %267 = vector.broadcast %c-1_i32_105 : i32 to vector<1x512xi32>
    %268 = arith.addi %8, %267 : vector<1x512xi32>
    %c16_i32_106 = arith.constant 16 : i32
    %269 = vector.broadcast %c16_i32_106 : i32 to vector<1x512xi32>
    %270 = arith.cmpi slt, %268, %269 : vector<1x512xi32>
    %271 = arith.andi %266, %270 : vector<1x512xi1>
    %272 = arith.extui %271 : vector<1x512xi1> to vector<1x512xi32>
    %273 = arith.sitofp %272 : vector<1x512xi32> to vector<1x512xf32>
    %274 = vector.broadcast %273 : vector<1x512xf32> to vector<8x512xf32>
    %275 = arith.mulf %252, %274 : vector<8x512xf32>
    %c0_107 = arith.constant 0 : index
    %c0_108 = arith.constant 0 : index
    %c0_109 = arith.constant 0 : index
    %276 = vector.load %arg2[%c0_107, %c0_108, %c0_109] : memref<9x8x8xf32, #tpu.memory_space<vmem>>, vector<1x8x8xf32>
    %277 = vector.shape_cast %276 : vector<1x8x8xf32> to vector<8x8xf32>
    %cst_110 = arith.constant dense<0.000000e+00> : vector<8x512xf32>
    %278 = tpu.matmul %277, %275, %cst_110 {dimension_numbers = #tpu.dot_dimension_numbers<[1], [0], [0], [1], [0, 0, 1, 1], [], []>} : vector<8x8xf32>, vector<8x512xf32>, vector<8x512xf32> -> vector<8x512xf32>
    %279 = arith.addf %251, %278 : vector<8x512xf32>
    %c16_i32_111 = arith.constant 16 : i32
    %280 = tpu.dynamic_rotate %245 by %c16_i32_111 dim 1 : vector<8x512xf32>, i32 -> vector<8x512xf32>
    %c-1_i32_112 = arith.constant -1 : i32
    %281 = vector.broadcast %c-1_i32_112 : i32 to vector<1x512xi32>
    %282 = arith.addi %6, %281 : vector<1x512xi32>
    %c0_i32_113 = arith.constant 0 : i32
    %283 = vector.broadcast %c0_i32_113 : i32 to vector<1x512xi32>
    %284 = arith.cmpi sge, %282, %283 : vector<1x512xi32>
    %c-1_i32_114 = arith.constant -1 : i32
    %285 = vector.broadcast %c-1_i32_114 : i32 to vector<1x512xi32>
    %286 = arith.addi %6, %285 : vector<1x512xi32>
    %c16_i32_115 = arith.constant 16 : i32
    %287 = vector.broadcast %c16_i32_115 : i32 to vector<1x512xi32>
    %288 = arith.cmpi slt, %286, %287 : vector<1x512xi32>
    %289 = arith.andi %284, %288 : vector<1x512xi1>
    %c0_i32_116 = arith.constant 0 : i32
    %290 = vector.broadcast %c0_i32_116 : i32 to vector<1x512xi32>
    %291 = arith.addi %8, %290 : vector<1x512xi32>
    %c0_i32_117 = arith.constant 0 : i32
    %292 = vector.broadcast %c0_i32_117 : i32 to vector<1x512xi32>
    %293 = arith.cmpi sge, %291, %292 : vector<1x512xi32>
    %294 = arith.andi %289, %293 : vector<1x512xi1>
    %c0_i32_118 = arith.constant 0 : i32
    %295 = vector.broadcast %c0_i32_118 : i32 to vector<1x512xi32>
    %296 = arith.addi %8, %295 : vector<1x512xi32>
    %c16_i32_119 = arith.constant 16 : i32
    %297 = vector.broadcast %c16_i32_119 : i32 to vector<1x512xi32>
    %298 = arith.cmpi slt, %296, %297 : vector<1x512xi32>
    %299 = arith.andi %294, %298 : vector<1x512xi1>
    %300 = arith.extui %299 : vector<1x512xi1> to vector<1x512xi32>
    %301 = arith.sitofp %300 : vector<1x512xi32> to vector<1x512xf32>
    %302 = vector.broadcast %301 : vector<1x512xf32> to vector<8x512xf32>
    %303 = arith.mulf %280, %302 : vector<8x512xf32>
    %c1_120 = arith.constant 1 : index
    %c0_121 = arith.constant 0 : index
    %c0_122 = arith.constant 0 : index
    %304 = vector.load %arg2[%c1_120, %c0_121, %c0_122] : memref<9x8x8xf32, #tpu.memory_space<vmem>>, vector<1x8x8xf32>
    %305 = vector.shape_cast %304 : vector<1x8x8xf32> to vector<8x8xf32>
    %cst_123 = arith.constant dense<0.000000e+00> : vector<8x512xf32>
    %306 = tpu.matmul %305, %303, %cst_123 {dimension_numbers = #tpu.dot_dimension_numbers<[1], [0], [0], [1], [0, 0, 1, 1], [], []>} : vector<8x8xf32>, vector<8x512xf32>, vector<8x512xf32> -> vector<8x512xf32>
    %307 = arith.addf %279, %306 : vector<8x512xf32>
    %c15_i32_124 = arith.constant 15 : i32
    %308 = tpu.dynamic_rotate %245 by %c15_i32_124 dim 1 : vector<8x512xf32>, i32 -> vector<8x512xf32>
    %c-1_i32_125 = arith.constant -1 : i32
    %309 = vector.broadcast %c-1_i32_125 : i32 to vector<1x512xi32>
    %310 = arith.addi %6, %309 : vector<1x512xi32>
    %c0_i32_126 = arith.constant 0 : i32
    %311 = vector.broadcast %c0_i32_126 : i32 to vector<1x512xi32>
    %312 = arith.cmpi sge, %310, %311 : vector<1x512xi32>
    %c-1_i32_127 = arith.constant -1 : i32
    %313 = vector.broadcast %c-1_i32_127 : i32 to vector<1x512xi32>
    %314 = arith.addi %6, %313 : vector<1x512xi32>
    %c16_i32_128 = arith.constant 16 : i32
    %315 = vector.broadcast %c16_i32_128 : i32 to vector<1x512xi32>
    %316 = arith.cmpi slt, %314, %315 : vector<1x512xi32>
    %317 = arith.andi %312, %316 : vector<1x512xi1>
    %c1_i32_129 = arith.constant 1 : i32
    %318 = vector.broadcast %c1_i32_129 : i32 to vector<1x512xi32>
    %319 = arith.addi %8, %318 : vector<1x512xi32>
    %c0_i32_130 = arith.constant 0 : i32
    %320 = vector.broadcast %c0_i32_130 : i32 to vector<1x512xi32>
    %321 = arith.cmpi sge, %319, %320 : vector<1x512xi32>
    %322 = arith.andi %317, %321 : vector<1x512xi1>
    %c1_i32_131 = arith.constant 1 : i32
    %323 = vector.broadcast %c1_i32_131 : i32 to vector<1x512xi32>
    %324 = arith.addi %8, %323 : vector<1x512xi32>
    %c16_i32_132 = arith.constant 16 : i32
    %325 = vector.broadcast %c16_i32_132 : i32 to vector<1x512xi32>
    %326 = arith.cmpi slt, %324, %325 : vector<1x512xi32>
    %327 = arith.andi %322, %326 : vector<1x512xi1>
    %328 = arith.extui %327 : vector<1x512xi1> to vector<1x512xi32>
    %329 = arith.sitofp %328 : vector<1x512xi32> to vector<1x512xf32>
    %330 = vector.broadcast %329 : vector<1x512xf32> to vector<8x512xf32>
    %331 = arith.mulf %308, %330 : vector<8x512xf32>
    %c2_133 = arith.constant 2 : index
    %c0_134 = arith.constant 0 : index
    %c0_135 = arith.constant 0 : index
    %332 = vector.load %arg2[%c2_133, %c0_134, %c0_135] : memref<9x8x8xf32, #tpu.memory_space<vmem>>, vector<1x8x8xf32>
    %333 = vector.shape_cast %332 : vector<1x8x8xf32> to vector<8x8xf32>
    %cst_136 = arith.constant dense<0.000000e+00> : vector<8x512xf32>
    %334 = tpu.matmul %333, %331, %cst_136 {dimension_numbers = #tpu.dot_dimension_numbers<[1], [0], [0], [1], [0, 0, 1, 1], [], []>} : vector<8x8xf32>, vector<8x512xf32>, vector<8x512xf32> -> vector<8x512xf32>
    %335 = arith.addf %307, %334 : vector<8x512xf32>
    %c1_i32_137 = arith.constant 1 : i32
    %336 = tpu.dynamic_rotate %245 by %c1_i32_137 dim 1 : vector<8x512xf32>, i32 -> vector<8x512xf32>
    %c0_i32_138 = arith.constant 0 : i32
    %337 = vector.broadcast %c0_i32_138 : i32 to vector<1x512xi32>
    %338 = arith.addi %6, %337 : vector<1x512xi32>
    %c0_i32_139 = arith.constant 0 : i32
    %339 = vector.broadcast %c0_i32_139 : i32 to vector<1x512xi32>
    %340 = arith.cmpi sge, %338, %339 : vector<1x512xi32>
    %c0_i32_140 = arith.constant 0 : i32
    %341 = vector.broadcast %c0_i32_140 : i32 to vector<1x512xi32>
    %342 = arith.addi %6, %341 : vector<1x512xi32>
    %c16_i32_141 = arith.constant 16 : i32
    %343 = vector.broadcast %c16_i32_141 : i32 to vector<1x512xi32>
    %344 = arith.cmpi slt, %342, %343 : vector<1x512xi32>
    %345 = arith.andi %340, %344 : vector<1x512xi1>
    %c-1_i32_142 = arith.constant -1 : i32
    %346 = vector.broadcast %c-1_i32_142 : i32 to vector<1x512xi32>
    %347 = arith.addi %8, %346 : vector<1x512xi32>
    %c0_i32_143 = arith.constant 0 : i32
    %348 = vector.broadcast %c0_i32_143 : i32 to vector<1x512xi32>
    %349 = arith.cmpi sge, %347, %348 : vector<1x512xi32>
    %350 = arith.andi %345, %349 : vector<1x512xi1>
    %c-1_i32_144 = arith.constant -1 : i32
    %351 = vector.broadcast %c-1_i32_144 : i32 to vector<1x512xi32>
    %352 = arith.addi %8, %351 : vector<1x512xi32>
    %c16_i32_145 = arith.constant 16 : i32
    %353 = vector.broadcast %c16_i32_145 : i32 to vector<1x512xi32>
    %354 = arith.cmpi slt, %352, %353 : vector<1x512xi32>
    %355 = arith.andi %350, %354 : vector<1x512xi1>
    %356 = arith.extui %355 : vector<1x512xi1> to vector<1x512xi32>
    %357 = arith.sitofp %356 : vector<1x512xi32> to vector<1x512xf32>
    %358 = vector.broadcast %357 : vector<1x512xf32> to vector<8x512xf32>
    %359 = arith.mulf %336, %358 : vector<8x512xf32>
    %c3_146 = arith.constant 3 : index
    %c0_147 = arith.constant 0 : index
    %c0_148 = arith.constant 0 : index
    %360 = vector.load %arg2[%c3_146, %c0_147, %c0_148] : memref<9x8x8xf32, #tpu.memory_space<vmem>>, vector<1x8x8xf32>
    %361 = vector.shape_cast %360 : vector<1x8x8xf32> to vector<8x8xf32>
    %cst_149 = arith.constant dense<0.000000e+00> : vector<8x512xf32>
    %362 = tpu.matmul %361, %359, %cst_149 {dimension_numbers = #tpu.dot_dimension_numbers<[1], [0], [0], [1], [0, 0, 1, 1], [], []>} : vector<8x8xf32>, vector<8x512xf32>, vector<8x512xf32> -> vector<8x512xf32>
    %363 = arith.addf %335, %362 : vector<8x512xf32>
    %c4_150 = arith.constant 4 : index
    %c0_151 = arith.constant 0 : index
    %c0_152 = arith.constant 0 : index
    %364 = vector.load %arg2[%c4_150, %c0_151, %c0_152] : memref<9x8x8xf32, #tpu.memory_space<vmem>>, vector<1x8x8xf32>
    %365 = vector.shape_cast %364 : vector<1x8x8xf32> to vector<8x8xf32>
    %cst_153 = arith.constant dense<0.000000e+00> : vector<8x512xf32>
    %366 = tpu.matmul %365, %245, %cst_153 {dimension_numbers = #tpu.dot_dimension_numbers<[1], [0], [0], [1], [0, 0, 1, 1], [], []>} : vector<8x8xf32>, vector<8x512xf32>, vector<8x512xf32> -> vector<8x512xf32>
    %367 = arith.addf %363, %366 : vector<8x512xf32>
    %c511_i32_154 = arith.constant 511 : i32
    %368 = tpu.dynamic_rotate %245 by %c511_i32_154 dim 1 : vector<8x512xf32>, i32 -> vector<8x512xf32>
    %c0_i32_155 = arith.constant 0 : i32
    %369 = vector.broadcast %c0_i32_155 : i32 to vector<1x512xi32>
    %370 = arith.addi %6, %369 : vector<1x512xi32>
    %c0_i32_156 = arith.constant 0 : i32
    %371 = vector.broadcast %c0_i32_156 : i32 to vector<1x512xi32>
    %372 = arith.cmpi sge, %370, %371 : vector<1x512xi32>
    %c0_i32_157 = arith.constant 0 : i32
    %373 = vector.broadcast %c0_i32_157 : i32 to vector<1x512xi32>
    %374 = arith.addi %6, %373 : vector<1x512xi32>
    %c16_i32_158 = arith.constant 16 : i32
    %375 = vector.broadcast %c16_i32_158 : i32 to vector<1x512xi32>
    %376 = arith.cmpi slt, %374, %375 : vector<1x512xi32>
    %377 = arith.andi %372, %376 : vector<1x512xi1>
    %c1_i32_159 = arith.constant 1 : i32
    %378 = vector.broadcast %c1_i32_159 : i32 to vector<1x512xi32>
    %379 = arith.addi %8, %378 : vector<1x512xi32>
    %c0_i32_160 = arith.constant 0 : i32
    %380 = vector.broadcast %c0_i32_160 : i32 to vector<1x512xi32>
    %381 = arith.cmpi sge, %379, %380 : vector<1x512xi32>
    %382 = arith.andi %377, %381 : vector<1x512xi1>
    %c1_i32_161 = arith.constant 1 : i32
    %383 = vector.broadcast %c1_i32_161 : i32 to vector<1x512xi32>
    %384 = arith.addi %8, %383 : vector<1x512xi32>
    %c16_i32_162 = arith.constant 16 : i32
    %385 = vector.broadcast %c16_i32_162 : i32 to vector<1x512xi32>
    %386 = arith.cmpi slt, %384, %385 : vector<1x512xi32>
    %387 = arith.andi %382, %386 : vector<1x512xi1>
    %388 = arith.extui %387 : vector<1x512xi1> to vector<1x512xi32>
    %389 = arith.sitofp %388 : vector<1x512xi32> to vector<1x512xf32>
    %390 = vector.broadcast %389 : vector<1x512xf32> to vector<8x512xf32>
    %391 = arith.mulf %368, %390 : vector<8x512xf32>
    %c5_163 = arith.constant 5 : index
    %c0_164 = arith.constant 0 : index
    %c0_165 = arith.constant 0 : index
    %392 = vector.load %arg2[%c5_163, %c0_164, %c0_165] : memref<9x8x8xf32, #tpu.memory_space<vmem>>, vector<1x8x8xf32>
    %393 = vector.shape_cast %392 : vector<1x8x8xf32> to vector<8x8xf32>
    %cst_166 = arith.constant dense<0.000000e+00> : vector<8x512xf32>
    %394 = tpu.matmul %393, %391, %cst_166 {dimension_numbers = #tpu.dot_dimension_numbers<[1], [0], [0], [1], [0, 0, 1, 1], [], []>} : vector<8x8xf32>, vector<8x512xf32>, vector<8x512xf32> -> vector<8x512xf32>
    %395 = arith.addf %367, %394 : vector<8x512xf32>
    %c497_i32_167 = arith.constant 497 : i32
    %396 = tpu.dynamic_rotate %245 by %c497_i32_167 dim 1 : vector<8x512xf32>, i32 -> vector<8x512xf32>
    %c1_i32_168 = arith.constant 1 : i32
    %397 = vector.broadcast %c1_i32_168 : i32 to vector<1x512xi32>
    %398 = arith.addi %6, %397 : vector<1x512xi32>
    %c0_i32_169 = arith.constant 0 : i32
    %399 = vector.broadcast %c0_i32_169 : i32 to vector<1x512xi32>
    %400 = arith.cmpi sge, %398, %399 : vector<1x512xi32>
    %c1_i32_170 = arith.constant 1 : i32
    %401 = vector.broadcast %c1_i32_170 : i32 to vector<1x512xi32>
    %402 = arith.addi %6, %401 : vector<1x512xi32>
    %c16_i32_171 = arith.constant 16 : i32
    %403 = vector.broadcast %c16_i32_171 : i32 to vector<1x512xi32>
    %404 = arith.cmpi slt, %402, %403 : vector<1x512xi32>
    %405 = arith.andi %400, %404 : vector<1x512xi1>
    %c-1_i32_172 = arith.constant -1 : i32
    %406 = vector.broadcast %c-1_i32_172 : i32 to vector<1x512xi32>
    %407 = arith.addi %8, %406 : vector<1x512xi32>
    %c0_i32_173 = arith.constant 0 : i32
    %408 = vector.broadcast %c0_i32_173 : i32 to vector<1x512xi32>
    %409 = arith.cmpi sge, %407, %408 : vector<1x512xi32>
    %410 = arith.andi %405, %409 : vector<1x512xi1>
    %c-1_i32_174 = arith.constant -1 : i32
    %411 = vector.broadcast %c-1_i32_174 : i32 to vector<1x512xi32>
    %412 = arith.addi %8, %411 : vector<1x512xi32>
    %c16_i32_175 = arith.constant 16 : i32
    %413 = vector.broadcast %c16_i32_175 : i32 to vector<1x512xi32>
    %414 = arith.cmpi slt, %412, %413 : vector<1x512xi32>
    %415 = arith.andi %410, %414 : vector<1x512xi1>
    %416 = arith.extui %415 : vector<1x512xi1> to vector<1x512xi32>
    %417 = arith.sitofp %416 : vector<1x512xi32> to vector<1x512xf32>
    %418 = vector.broadcast %417 : vector<1x512xf32> to vector<8x512xf32>
    %419 = arith.mulf %396, %418 : vector<8x512xf32>
    %c6_176 = arith.constant 6 : index
    %c0_177 = arith.constant 0 : index
    %c0_178 = arith.constant 0 : index
    %420 = vector.load %arg2[%c6_176, %c0_177, %c0_178] : memref<9x8x8xf32, #tpu.memory_space<vmem>>, vector<1x8x8xf32>
    %421 = vector.shape_cast %420 : vector<1x8x8xf32> to vector<8x8xf32>
    %cst_179 = arith.constant dense<0.000000e+00> : vector<8x512xf32>
    %422 = tpu.matmul %421, %419, %cst_179 {dimension_numbers = #tpu.dot_dimension_numbers<[1], [0], [0], [1], [0, 0, 1, 1], [], []>} : vector<8x8xf32>, vector<8x512xf32>, vector<8x512xf32> -> vector<8x512xf32>
    %423 = arith.addf %395, %422 : vector<8x512xf32>
    %c496_i32_180 = arith.constant 496 : i32
    %424 = tpu.dynamic_rotate %245 by %c496_i32_180 dim 1 : vector<8x512xf32>, i32 -> vector<8x512xf32>
    %c1_i32_181 = arith.constant 1 : i32
    %425 = vector.broadcast %c1_i32_181 : i32 to vector<1x512xi32>
    %426 = arith.addi %6, %425 : vector<1x512xi32>
    %c0_i32_182 = arith.constant 0 : i32
    %427 = vector.broadcast %c0_i32_182 : i32 to vector<1x512xi32>
    %428 = arith.cmpi sge, %426, %427 : vector<1x512xi32>
    %c1_i32_183 = arith.constant 1 : i32
    %429 = vector.broadcast %c1_i32_183 : i32 to vector<1x512xi32>
    %430 = arith.addi %6, %429 : vector<1x512xi32>
    %c16_i32_184 = arith.constant 16 : i32
    %431 = vector.broadcast %c16_i32_184 : i32 to vector<1x512xi32>
    %432 = arith.cmpi slt, %430, %431 : vector<1x512xi32>
    %433 = arith.andi %428, %432 : vector<1x512xi1>
    %c0_i32_185 = arith.constant 0 : i32
    %434 = vector.broadcast %c0_i32_185 : i32 to vector<1x512xi32>
    %435 = arith.addi %8, %434 : vector<1x512xi32>
    %c0_i32_186 = arith.constant 0 : i32
    %436 = vector.broadcast %c0_i32_186 : i32 to vector<1x512xi32>
    %437 = arith.cmpi sge, %435, %436 : vector<1x512xi32>
    %438 = arith.andi %433, %437 : vector<1x512xi1>
    %c0_i32_187 = arith.constant 0 : i32
    %439 = vector.broadcast %c0_i32_187 : i32 to vector<1x512xi32>
    %440 = arith.addi %8, %439 : vector<1x512xi32>
    %c16_i32_188 = arith.constant 16 : i32
    %441 = vector.broadcast %c16_i32_188 : i32 to vector<1x512xi32>
    %442 = arith.cmpi slt, %440, %441 : vector<1x512xi32>
    %443 = arith.andi %438, %442 : vector<1x512xi1>
    %444 = arith.extui %443 : vector<1x512xi1> to vector<1x512xi32>
    %445 = arith.sitofp %444 : vector<1x512xi32> to vector<1x512xf32>
    %446 = vector.broadcast %445 : vector<1x512xf32> to vector<8x512xf32>
    %447 = arith.mulf %424, %446 : vector<8x512xf32>
    %c7_189 = arith.constant 7 : index
    %c0_190 = arith.constant 0 : index
    %c0_191 = arith.constant 0 : index
    %448 = vector.load %arg2[%c7_189, %c0_190, %c0_191] : memref<9x8x8xf32, #tpu.memory_space<vmem>>, vector<1x8x8xf32>
    %449 = vector.shape_cast %448 : vector<1x8x8xf32> to vector<8x8xf32>
    %cst_192 = arith.constant dense<0.000000e+00> : vector<8x512xf32>
    %450 = tpu.matmul %449, %447, %cst_192 {dimension_numbers = #tpu.dot_dimension_numbers<[1], [0], [0], [1], [0, 0, 1, 1], [], []>} : vector<8x8xf32>, vector<8x512xf32>, vector<8x512xf32> -> vector<8x512xf32>
    %451 = arith.addf %423, %450 : vector<8x512xf32>
    %c495_i32_193 = arith.constant 495 : i32
    %452 = tpu.dynamic_rotate %245 by %c495_i32_193 dim 1 : vector<8x512xf32>, i32 -> vector<8x512xf32>
    %c1_i32_194 = arith.constant 1 : i32
    %453 = vector.broadcast %c1_i32_194 : i32 to vector<1x512xi32>
    %454 = arith.addi %6, %453 : vector<1x512xi32>
    %c0_i32_195 = arith.constant 0 : i32
    %455 = vector.broadcast %c0_i32_195 : i32 to vector<1x512xi32>
    %456 = arith.cmpi sge, %454, %455 : vector<1x512xi32>
    %c1_i32_196 = arith.constant 1 : i32
    %457 = vector.broadcast %c1_i32_196 : i32 to vector<1x512xi32>
    %458 = arith.addi %6, %457 : vector<1x512xi32>
    %c16_i32_197 = arith.constant 16 : i32
    %459 = vector.broadcast %c16_i32_197 : i32 to vector<1x512xi32>
    %460 = arith.cmpi slt, %458, %459 : vector<1x512xi32>
    %461 = arith.andi %456, %460 : vector<1x512xi1>
    %c1_i32_198 = arith.constant 1 : i32
    %462 = vector.broadcast %c1_i32_198 : i32 to vector<1x512xi32>
    %463 = arith.addi %8, %462 : vector<1x512xi32>
    %c0_i32_199 = arith.constant 0 : i32
    %464 = vector.broadcast %c0_i32_199 : i32 to vector<1x512xi32>
    %465 = arith.cmpi sge, %463, %464 : vector<1x512xi32>
    %466 = arith.andi %461, %465 : vector<1x512xi1>
    %c1_i32_200 = arith.constant 1 : i32
    %467 = vector.broadcast %c1_i32_200 : i32 to vector<1x512xi32>
    %468 = arith.addi %8, %467 : vector<1x512xi32>
    %c16_i32_201 = arith.constant 16 : i32
    %469 = vector.broadcast %c16_i32_201 : i32 to vector<1x512xi32>
    %470 = arith.cmpi slt, %468, %469 : vector<1x512xi32>
    %471 = arith.andi %466, %470 : vector<1x512xi1>
    %472 = arith.extui %471 : vector<1x512xi1> to vector<1x512xi32>
    %473 = arith.sitofp %472 : vector<1x512xi32> to vector<1x512xf32>
    %474 = vector.broadcast %473 : vector<1x512xf32> to vector<8x512xf32>
    %475 = arith.mulf %452, %474 : vector<8x512xf32>
    %c8_202 = arith.constant 8 : index
    %c0_203 = arith.constant 0 : index
    %c0_204 = arith.constant 0 : index
    %476 = vector.load %arg2[%c8_202, %c0_203, %c0_204] : memref<9x8x8xf32, #tpu.memory_space<vmem>>, vector<1x8x8xf32>
    %477 = vector.shape_cast %476 : vector<1x8x8xf32> to vector<8x8xf32>
    %cst_205 = arith.constant dense<0.000000e+00> : vector<8x512xf32>
    %478 = tpu.matmul %477, %475, %cst_205 {dimension_numbers = #tpu.dot_dimension_numbers<[1], [0], [0], [1], [0, 0, 1, 1], [], []>} : vector<8x8xf32>, vector<8x512xf32>, vector<8x512xf32> -> vector<8x512xf32>
    %479 = arith.addf %451, %478 : vector<8x512xf32>
    %480 = vector.extract_strided_slice %1 {offsets = [0, 1], sizes = [8, 1], strides = [1, 1]} : vector<16x2xf32> to vector<8x1xf32>
    %481 = vector.broadcast %480 : vector<8x1xf32> to vector<8x512xf32>
    %482 = arith.addf %479, %481 : vector<8x512xf32>
    %cst_206 = arith.constant 1.000000e+00 : f32
    %483 = vector.broadcast %cst_206 : f32 to vector<8x512xf32>
    %484 = arith.cmpf oge, %482, %483 : vector<8x512xf32>
    %485 = arith.extui %484 : vector<8x512xi1> to vector<8x512xi32>
    %486 = arith.sitofp %485 : vector<8x512xi32> to vector<8x512xf32>
    %487 = arith.addf %486, %250 : vector<8x512xf32>
    %c0_207 = arith.constant 0 : index
    %c0_208 = arith.constant 0 : index
    %488 = vector.load %arg4[%c0_207, %c0_208] : memref<8x512xf32, #tpu.memory_space<vmem>>, vector<8x512xf32>
    tpu.vector_store %arg4[%c0_207, %c0_208], %487 {strides = array<i32>} : memref<8x512xf32, #tpu.memory_space<vmem>>, vector<8x512xf32>,
    return
  }
}

</mosaic_0001>

<llo_original>
// kernel: quantized_basic_block.1
$region0: #{quantized_basic_block.1}
  #allocation0 [shape = 'u32[]', space=smem, size = 0x4, offset = 0x4, fixed_abs, tag = 'smem constant byte address 0x4 - core index']
  #allocation1 [shape = 'u32[144,128]{1,0:T(1,128)}', space=vmem, size = 0x12000, scoped, tag = 'internal scratch']
  %s0 = inlined_call_operand.vmem [shape: f32[4,512], index: 0, kind: input, shape index: {}]
  %s1 = inlined_call_operand.vmem [shape: f32[9,16,4], index: 1, kind: input, shape index: {}]
  %s2 = inlined_call_operand.vmem [shape: f32[9,8,8], index: 2, kind: input, shape index: {}]
  %s3 = inlined_call_operand.vmem [shape: f32[16,2], index: 3, kind: input, shape index: {}]
  %s4 = inlined_call_operand.vmem [shape: f32[8,512], index: 4, kind: output, shape index: {}]
  %s5 = sld [smem:[#allocation0]]
  $region26: #{quantized_basic_block.1} parent=0
    _
  %s7 = ssub.s32 1, %s5
  %s8 = scalar_select 0, %s7, %s5
  // Predicated region
  $region2: #{quantized_basic_block.1} parent=0 // pred_check
    _
  $region3: #{quantized_basic_block.1} parent=0 // pred_check_branch
    %10 = sbr.rel (0) target = $region5
  $region4: #{quantized_basic_block.1} parent=0 // pred_region
    _
  $region5: #{quantized_basic_block.1} parent=0 // pred_fallthru
    _
  // Predicated region
  $region6: #{quantized_basic_block.1} parent=0 // pred_check
    _
  $region7: #{quantized_basic_block.1} parent=0 // pred_check_branch
    %12 = sbr.rel (0) target = $region9
  $region8: #{quantized_basic_block.1} parent=0 // pred_region
    _
  $region9: #{quantized_basic_block.1} parent=0 // pred_fallthru
    _
  // Predicated region
  $region10: #{quantized_basic_block.1} parent=0 // pred_check
    _
  $region11: #{quantized_basic_block.1} parent=0 // pred_check_branch
    %14 = sbr.rel (0) target = $region13
  $region12: #{quantized_basic_block.1} parent=0 // pred_region
    _
  $region13: #{quantized_basic_block.1} parent=0 // pred_fallthru
    _
  // Predicated region
  $region14: #{quantized_basic_block.1} parent=0 // pred_check
    _
  $region15: #{quantized_basic_block.1} parent=0 // pred_check_branch
    %16 = sbr.rel (0) target = $region17
  $region16: #{quantized_basic_block.1} parent=0 // pred_region
    _
  $region17: #{quantized_basic_block.1} parent=0 // pred_fallthru
    _
  %v17 = vld [vmem:[%s0] sm:$0xff]
  %v18 = vld [vmem:[%s0 + $0x8] sm:$0xff]
  %v19 = vld [vmem:[%s3] sm:$0xff]
  %v20 = vld [vmem:[%s3 + $0x8] sm:$0xff]
  %v21 = vlaneseq
  %v22 = vand.u32 %v21, 127
  %v23 = vadd.s32 %v22, 128
  %v24 = vadd.s32 %v22, 256
  %v25 = vadd.s32 %v22, 384
  %v26 = vshra.s32 %v22, 4
  %v27 = vshra.s32 %v23, 4
  %v28 = vshra.s32 %v24, 4
  %v29 = vshra.s32 %v25, 4
  %v30 = vand.u32 %v26, 15
  %v31 = vand.u32 %v27, 15
  %v32 = vand.u32 %v28, 15
  %v33 = vand.u32 %v29, 15
  %v34 = vand.u32 %v22, 15
  %v35 = vand.u32 %v23, 15
  %v36 = vand.u32 %v24, 15
  %v37 = vand.u32 %v25, 15
  %v40 = vcombine.high %v17, %v17
  %v41 = vcombine.high %v18, %v18
  %44 = vrot.lane.b32.xlu0 %v17, 17
  %v45 = vpop.permute.xlu0 %44
  %46 = vrot.lane.b32.xlu0 %v40, 17
  %v47 = vpop.permute.xlu0 %46
  %48 = vrot.lane.b32.xlu0 %v18, 17
  %v49 = vpop.permute.xlu0 %48
  %50 = vrot.lane.b32.xlu0 %v41, 17
  %v51 = vpop.permute.xlu0 %50
  %vm52 = vcmp.lt.s32.totalorder %v22, 17
  %v53 = vsel %vm52, %v49, %v51
  %v54 = vsel %vm52, %v47, %v49
  %v55 = vsel %vm52, %v45, %v47
  %v56 = vsel %vm52, %v51, %v45
  %v57 = vadd.s32 %v30, 4294967295
  %v58 = vadd.s32 %v31, 4294967295
  %v59 = vadd.s32 %v32, 4294967295
  %v60 = vadd.s32 %v33, 4294967295
  %vm61 = vcmp.ge.s32.totalorder %v57, 0
  %vm62 = vcmp.ge.s32.totalorder %v58, 0
  %vm63 = vcmp.ge.s32.totalorder %v59, 0
  %vm64 = vcmp.ge.s32.totalorder %v60, 0
  %vm65 = vcmp.lt.s32.totalorder %v57, 16
  %vm66 = vcmp.lt.s32.totalorder %v58, 16
  %vm67 = vcmp.lt.s32.totalorder %v59, 16
  %vm68 = vcmp.lt.s32.totalorder %v60, 16
  %vm69 = vmand %vm61, %vm65
  %vm70 = vmand %vm62, %vm66
  %vm71 = vmand %vm63, %vm67
  %vm72 = vmand %vm64, %vm68
  %v73 = vadd.s32 %v34, 4294967295
  %v74 = vadd.s32 %v35, 4294967295
  %v75 = vadd.s32 %v36, 4294967295
  %v76 = vadd.s32 %v37, 4294967295
  %vm77 = vcmp.ge.s32.totalorder %v73, 0
  %vm78 = vcmp.ge.s32.totalorder %v74, 0
  %vm79 = vcmp.ge.s32.totalorder %v75, 0
  %vm80 = vcmp.ge.s32.totalorder %v76, 0
  %vm81 = vmand %vm69, %vm77
  %vm82 = vmand %vm70, %vm78
  %vm83 = vmand %vm71, %vm79
  %vm84 = vmand %vm72, %vm80
  %vm85 = vcmp.lt.s32.totalorder %v73, 16
  %vm86 = vcmp.lt.s32.totalorder %v74, 16
  %vm87 = vcmp.lt.s32.totalorder %v75, 16
  %vm88 = vcmp.lt.s32.totalorder %v76, 16
  %vm89 = vmand %vm81, %vm85
  %vm90 = vmand %vm82, %vm86
  %vm91 = vmand %vm83, %vm87
  %vm92 = vmand %vm84, %vm88
  %v93 = vsel %vm89, 1, 0
  %v94 = vsel %vm90, 1, 0
  %v95 = vsel %vm91, 1, 0
  %v96 = vsel %vm92, 1, 0
  %v97 = vcvt.s32.f32 %v93
  %v98 = vcvt.s32.f32 %v94
  %v99 = vcvt.s32.f32 %v95
  %v100 = vcvt.s32.f32 %v96
  %v101 = vmul.f32 %v56, %v97
  %v102 = vmul.f32 %v55, %v98
  %v103 = vmul.f32 %v54, %v99
  %v104 = vmul.f32 %v53, %v100
  %v105 = vld [vmem:[%s1] sm:$0xff]
  %v106 = vld [vmem:[%s1 + $0x8] sm:$0xff]
  %107 = vrot.lane.b32.xlu0 %v17, 16
  %v108 = vpop.permute.xlu0 %107
  %109 = vrot.lane.b32.xlu0 %v40, 16
  %v110 = vpop.permute.xlu0 %109
  %111 = vrot.lane.b32.xlu0 %v18, 16
  %v112 = vpop.permute.xlu0 %111
  %113 = vrot.lane.b32.xlu0 %v41, 16
  %v114 = vpop.permute.xlu0 %113
  %vm115 = vcmp.lt.s32.totalorder %v22, 16
  %v116 = vsel %vm115, %v112, %v114
  %v117 = vsel %vm115, %v110, %v112
  %v118 = vsel %vm115, %v108, %v110
  %v119 = vsel %vm115, %v114, %v108
  %vm120 = vcmp.ge.s32.totalorder %v34, 0
  %vm121 = vcmp.ge.s32.totalorder %v35, 0
  %vm122 = vcmp.ge.s32.totalorder %v36, 0
  %vm123 = vcmp.ge.s32.totalorder %v37, 0
  %vm124 = vmand %vm69, %vm120
  %vm125 = vmand %vm70, %vm121
  %vm126 = vmand %vm71, %vm122
  %vm127 = vmand %vm72, %vm123
  %vm128 = vcmp.lt.s32.totalorder %v34, 16
  %vm129 = vcmp.lt.s32.totalorder %v35, 16
  %vm130 = vcmp.lt.s32.totalorder %v36, 16
  %vm131 = vcmp.lt.s32.totalorder %v37, 16
  %vm132 = vmand %vm124, %vm128
  %vm133 = vmand %vm125, %vm129
  %vm134 = vmand %vm126, %vm130
  %vm135 = vmand %vm127, %vm131
  %v136 = vsel %vm132, 1, 0
  %v137 = vsel %vm133, 1, 0
  %v138 = vsel %vm134, 1, 0
  %v139 = vsel %vm135, 1, 0
  %v140 = vcvt.s32.f32 %v136
  %v141 = vcvt.s32.f32 %v137
  %v142 = vcvt.s32.f32 %v138
  %v143 = vcvt.s32.f32 %v139
  %v144 = vmul.f32 %v119, %v140
  %v145 = vmul.f32 %v118, %v141
  %v146 = vmul.f32 %v117, %v142
  %v147 = vmul.f32 %v116, %v143
  %s148 = scalar_lea.vmem %s1, 16
  %v149 = vld [vmem:[%s148] sm:$0xff]
  %v150 = vld [vmem:[%s148 + $0x8] sm:$0xff]
  %vm151 = vcmask 31744
  %v153 = vsel %vm151, %v149, 0
  %v156 = vsel %vm151, %v150, 0
  %vm158 = vcmask 1043456
  %v160 = vsel %vm158, %v144, 0
  %v163 = vsel %vm158, %v145, 0
  %v166 = vsel %vm158, %v146, 0
  %v169 = vsel %vm158, %v147, 0
  %171 = vmatprep.subr.mxu0 %v163
  %172 = vmatpush1.msra.mxu0 %v160
  %173 = vmatprep.subr.mxu0 0.0
  %174 = vmatpush1.msra.mxu0 0.0
  %175 = vmatprep.subr.mxu0 0.0
  %176 = vmatpush1.msra.mxu0 0.0
  %177 = vmatprep.subr.mxu0 0.0
  %178 = vmatpush1.msra.mxu0 0.0
  %179 = vmatprep.subr.mxu0 0.0
  %180 = vmatpush1.msra.mxu0 0.0
  %181 = vmatprep.subr.mxu0 0.0
  %182 = vmatpush1.msra.mxu0 0.0
  %183 = vmatprep.subr.mxu0 0.0
  %184 = vmatpush1.msra.mxu0 0.0
  %185 = vmatprep.subr.mxu0 0.0
  %186 = vmatpush1.msra.mxu0 0.0
  %187 = vmatprep.subr.mxu0 0.0
  %188 = vmatpush1.msra.mxu0 0.0
  %189 = vmatprep.subr.mxu0 0.0
  %190 = vmatpush1.msra.mxu0 0.0
  %191 = vmatprep.subr.mxu0 0.0
  %192 = vmatpush1.msra.mxu0 0.0
  %193 = vmatprep.subr.mxu0 0.0
  %194 = vmatpush1.msra.mxu0 0.0
  %195 = vmatprep.subr.mxu0 0.0
  %196 = vmatpush1.msra.mxu0 0.0
  %197 = vmatprep.subr.mxu0 0.0
  %198 = vmatpush1.msra.mxu0 0.0
  %199 = vmatprep.subr.mxu0 0.0
  %200 = vmatpush1.msra.mxu0 0.0
  %201 = vmatprep.subr.mxu0 0.0
  %202 = vmatpush1.msra.mxu0 0.0
  %203 = vmatprep.subr.mxu0 0.0
  %204 = vmatpush1.msra.mxu0 0.0
  %205 = vmatprep.subr.mxu0 0.0
  %206 = vmatpush1.msra.mxu0 0.0
  %207 = vmatprep.subr.mxu0 0.0
  %208 = vmatpush1.msra.mxu0 0.0
  %209 = vmatprep.subr.mxu0 0.0
  %210 = vmatpush1.msra.mxu0 0.0
  %211 = vmatprep.subr.mxu0 0.0
  %212 = vmatpush1.msra.mxu0 0.0
  %213 = vmatprep.subr.mxu0 0.0
  %214 = vmatpush1.msra.mxu0 0.0
  %215 = vmatprep.subr.mxu0 0.0
  %216 = vmatpush1.msra.mxu0 0.0
  %217 = vmatprep.subr.mxu0 0.0
  %218 = vmatpush1.msra.mxu0 0.0
  %219 = vmatprep.subr.mxu0 0.0
  %220 = vmatpush1.msra.mxu0 0.0
  %221 = vmatprep.subr.mxu0 0.0
  %222 = vmatpush1.msra.mxu0 0.0
  %223 = vmatprep.subr.mxu0 0.0
  %224 = vmatpush1.msra.mxu0 0.0
  %225 = vmatprep.subr.mxu0 0.0
  %226 = vmatpush1.msra.mxu0 0.0
  %227 = vmatprep.subr.mxu0 0.0
  %228 = vmatpush1.msra.mxu0 0.0
  %229 = vmatprep.subr.mxu0 0.0
  %230 = vmatpush1.msra.mxu0 0.0
  %231 = vmatprep.subr.mxu0 0.0
  %232 = vmatpush1.msra.mxu0 0.0
  %233 = vmatprep.subr.mxu0 0.0
  %234 = vmatpush1.msra.mxu0 0.0
  %235 = vmatprep.mubr.f32.mxu0 0.0
  %236 = vmatmul.mubr.f32.gmra.mrb[0].mxu0 %v153
  %v237 = vpop.f32.mrb[0].mxu0
  %v238 = vadd.f32 0.0, %v237
  %v239 = vpop.f32.mrb[0].mxu0
  %v240 = vadd.f32 0.0, %v239
  %241 = vmatprep.mubr.f32.mxu0 0.0
  %242 = vmatmul.mubr.f32.gmra.mrb[0].mxu0 %v156
  %v243 = vpop.f32.mrb[0].mxu0
  %v244 = vadd.f32 0.0, %v243
  %v245 = vpop.f32.mrb[0].mxu0
  %v246 = vadd.f32 0.0, %v245
  %247 = vdwg.mxu0
  %248 = vmatprep.subr.mxu0 %v169
  %249 = vmatpush1.msra.mxu0 %v166
  %250 = vmatprep.subr.mxu0 0.0
  %251 = vmatpush1.msra.mxu0 0.0
  %252 = vmatprep.subr.mxu0 0.0
  %253 = vmatpush1.msra.mxu0 0.0
  %254 = vmatprep.subr.mxu0 0.0
  %255 = vmatpush1.msra.mxu0 0.0
  %256 = vmatprep.subr.mxu0 0.0
  %257 = vmatpush1.msra.mxu0 0.0
  %258 = vmatprep.subr.mxu0 0.0
  %259 = vmatpush1.msra.mxu0 0.0
  %260 = vmatprep.subr.mxu0 0.0
  %261 = vmatpush1.msra.mxu0 0.0
  %262 = vmatprep.subr.mxu0 0.0
  %263 = vmatpush1.msra.mxu0 0.0
  %264 = vmatprep.subr.mxu0 0.0
  %265 = vmatpush1.msra.mxu0 0.0
  %266 = vmatprep.subr.mxu0 0.0
  %267 = vmatpush1.msra.mxu0 0.0
  %268 = vmatprep.subr.mxu0 0.0
  %269 = vmatpush1.msra.mxu0 0.0
  %270 = vmatprep.subr.mxu0 0.0
  %271 = vmatpush1.msra.mxu0 0.0
  %272 = vmatprep.subr.mxu0 0.0
  %273 = vmatpush1.msra.mxu0 0.0
  %274 = vmatprep.subr.mxu0 0.0
  %275 = vmatpush1.msra.mxu0 0.0
  %276 = vmatprep.subr.mxu0 0.0
  %277 = vmatpush1.msra.mxu0 0.0
  %278 = vmatprep.subr.mxu0 0.0
  %279 = vmatpush1.msra.mxu0 0.0
  %280 = vmatprep.subr.mxu0 0.0
  %281 = vmatpush1.msra.mxu0 0.0
  %282 = vmatprep.subr.mxu0 0.0
  %283 = vmatpush1.msra.mxu0 0.0
  %284 = vmatprep.subr.mxu0 0.0
  %285 = vmatpush1.msra.mxu0 0.0
  %286 = vmatprep.subr.mxu0 0.0
  %287 = vmatpush1.msra.mxu0 0.0
  %288 = vmatprep.subr.mxu0 0.0
  %289 = vmatpush1.msra.mxu0 0.0
  %290 = vmatprep.subr.mxu0 0.0
  %291 = vmatpush1.msra.mxu0 0.0
  %292 = vmatprep.subr.mxu0 0.0
  %293 = vmatpush1.msra.mxu0 0.0
  %294 = vmatprep.subr.mxu0 0.0
  %295 = vmatpush1.msra.mxu0 0.0
  %296 = vmatprep.subr.mxu0 0.0
  %297 = vmatpush1.msra.mxu0 0.0
  %298 = vmatprep.subr.mxu0 0.0
  %299 = vmatpush1.msra.mxu0 0.0
  %300 = vmatprep.subr.mxu0 0.0
  %301 = vmatpush1.msra.mxu0 0.0
  %302 = vmatprep.subr.mxu0 0.0
  %303 = vmatpush1.msra.mxu0 0.0
  %304 = vmatprep.subr.mxu0 0.0
  %305 = vmatpush1.msra.mxu0 0.0
  %306 = vmatprep.subr.mxu0 0.0
  %307 = vmatpush1.msra.mxu0 0.0
  %308 = vmatprep.subr.mxu0 0.0
  %309 = vmatpush1.msra.mxu0 0.0
  %310 = vmatprep.subr.mxu0 0.0
  %311 = vmatpush1.msra.mxu0 0.0
  %312 = vmatprep.mubr.f32.mxu0 0.0
  %313 = vmatmul.mubr.f32.gmra.mrb[0].mxu0 %v153
  %v314 = vpop.f32.mrb[0].mxu0
  %v315 = vadd.f32 0.0, %v314
  %v316 = vpop.f32.mrb[0].mxu0
  %v317 = vadd.f32 0.0, %v316
  %318 = vmatprep.mubr.f32.mxu0 0.0
  %319 = vmatmul.mubr.f32.gmra.mrb[0].mxu0 %v156
  %v320 = vpop.f32.mrb[0].mxu0
  %v321 = vadd.f32 0.0, %v320
  %v322 = vpop.f32.mrb[0].mxu0
  %v323 = vadd.f32 0.0, %v322
  %324 = vdwg.mxu0
  %v326 = vsel %vm151, %v105, 0
  %v329 = vsel %vm151, %v106, 0
  %v332 = vsel %vm158, %v101, 0
  %v335 = vsel %vm158, %v102, 0
  %v338 = vsel %vm158, %v103, 0
  %v341 = vsel %vm158, %v104, 0
  %343 = vmatprep.subr.mxu0 %v335
  %344 = vmatpush1.msra.mxu0 %v332
  %345 = vmatprep.subr.mxu0 0.0
  %346 = vmatpush1.msra.mxu0 0.0
  %347 = vmatprep.subr.mxu0 0.0
  %348 = vmatpush1.msra.mxu0 0.0
  %349 = vmatprep.subr.mxu0 0.0
  %350 = vmatpush1.msra.mxu0 0.0
  %351 = vmatprep.subr.mxu0 0.0
  %352 = vmatpush1.msra.mxu0 0.0
  %353 = vmatprep.subr.mxu0 0.0
  %354 = vmatpush1.msra.mxu0 0.0
  %355 = vmatprep.subr.mxu0 0.0
  %356 = vmatpush1.msra.mxu0 0.0
  %357 = vmatprep.subr.mxu0 0.0
  %358 = vmatpush1.msra.mxu0 0.0
  %359 = vmatprep.subr.mxu0 0.0
  %360 = vmatpush1.msra.mxu0 0.0
  %361 = vmatprep.subr.mxu0 0.0
  %362 = vmatpush1.msra.mxu0 0.0
  %363 = vmatprep.subr.mxu0 0.0
  %364 = vmatpush1.msra.mxu0 0.0
  %365 = vmatprep.subr.mxu0 0.0
  %366 = vmatpush1.msra.mxu0 0.0
  %367 = vmatprep.subr.mxu0 0.0
  %368 = vmatpush1.msra.mxu0 0.0
  %369 = vmatprep.subr.mxu0 0.0
  %370 = vmatpush1.msra.mxu0 0.0
  %371 = vmatprep.subr.mxu0 0.0
  %372 = vmatpush1.msra.mxu0 0.0
  %373 = vmatprep.subr.mxu0 0.0
  %374 = vmatpush1.msra.mxu0 0.0
  %375 = vmatprep.subr.mxu0 0.0
  %376 = vmatpush1.msra.mxu0 0.0
  %377 = vmatprep.subr.mxu0 0.0
  %378 = vmatpush1.msra.mxu0 0.0
  %379 = vmatprep.subr.mxu0 0.0
  %380 = vmatpush1.msra.mxu0 0.0
  %381 = vmatprep.subr.mxu0 0.0
  %382 = vmatpush1.msra.mxu0 0.0
  %383 = vmatprep.subr.mxu0 0.0
  %384 = vmatpush1.msra.mxu0 0.0
  %385 = vmatprep.subr.mxu0 0.0
  %386 = vmatpush1.msra.mxu0 0.0
  %387 = vmatprep.subr.mxu0 0.0
  %388 = vmatpush1.msra.mxu0 0.0
  %389 = vmatprep.subr.mxu0 0.0
  %390 = vmatpush1.msra.mxu0 0.0
  %391 = vmatprep.subr.mxu0 0.0
  %392 = vmatpush1.msra.mxu0 0.0
  %393 = vmatprep.subr.mxu0 0.0
  %394 = vmatpush1.msra.mxu0 0.0
  %395 = vmatprep.subr.mxu0 0.0
  %396 = vmatpush1.msra.mxu0 0.0
  %397 = vmatprep.subr.mxu0 0.0
  %398 = vmatpush1.msra.mxu0 0.0
  %399 = vmatprep.subr.mxu0 0.0
  %400 = vmatpush1.msra.mxu0 0.0
  %401 = vmatprep.subr.mxu0 0.0
  %402 = vmatpush1.msra.mxu0 0.0
  %403 = vmatprep.subr.mxu0 0.0
  %404 = vmatpush1.msra.mxu0 0.0
  %405 = vmatprep.subr.mxu0 0.0
  %406 = vmatpush1.msra.mxu0 0.0
  %407 = vmatprep.mubr.f32.mxu0 0.0
  %408 = vmatmul.mubr.f32.gmra.mrb[0].mxu0 %v326
  %v409 = vpop.f32.mrb[0].mxu0
  %v410 = vadd.f32 %v238, %v409
  %v411 = vpop.f32.mrb[0].mxu0
  %v412 = vadd.f32 %v240, %v411
  %413 = vmatprep.mubr.f32.mxu0 0.0
  %414 = vmatmul.mubr.f32.gmra.mrb[0].mxu0 %v329
  %v415 = vpop.f32.mrb[0].mxu0
  %v416 = vadd.f32 %v244, %v415
  %v417 = vpop.f32.mrb[0].mxu0
  %v418 = vadd.f32 %v246, %v417
  %419 = vdwg.mxu0
  %420 = vmatprep.subr.mxu0 %v341
  %421 = vmatpush1.msra.mxu0 %v338
  %422 = vmatprep.subr.mxu0 0.0
  %423 = vmatpush1.msra.mxu0 0.0
  %424 = vmatprep.subr.mxu0 0.0
  %425 = vmatpush1.msra.mxu0 0.0
  %426 = vmatprep.subr.mxu0 0.0
  %427 = vmatpush1.msra.mxu0 0.0
  %428 = vmatprep.subr.mxu0 0.0
  %429 = vmatpush1.msra.mxu0 0.0
  %430 = vmatprep.subr.mxu0 0.0
  %431 = vmatpush1.msra.mxu0 0.0
  %432 = vmatprep.subr.mxu0 0.0
  %433 = vmatpush1.msra.mxu0 0.0
  %434 = vmatprep.subr.mxu0 0.0
  %435 = vmatpush1.msra.mxu0 0.0
  %436 = vmatprep.subr.mxu0 0.0
  %437 = vmatpush1.msra.mxu0 0.0
  %438 = vmatprep.subr.mxu0 0.0
  %439 = vmatpush1.msra.mxu0 0.0
  %440 = vmatprep.subr.mxu0 0.0
  %441 = vmatpush1.msra.mxu0 0.0
  %442 = vmatprep.subr.mxu0 0.0
  %443 = vmatpush1.msra.mxu0 0.0
  %444 = vmatprep.subr.mxu0 0.0
  %445 = vmatpush1.msra.mxu0 0.0
  %446 = vmatprep.subr.mxu0 0.0
  %447 = vmatpush1.msra.mxu0 0.0
  %448 = vmatprep.subr.mxu0 0.0
  %449 = vmatpush1.msra.mxu0 0.0
  %450 = vmatprep.subr.mxu0 0.0
  %451 = vmatpush1.msra.mxu0 0.0
  %452 = vmatprep.subr.mxu0 0.0
  %453 = vmatpush1.msra.mxu0 0.0
  %454 = vmatprep.subr.mxu0 0.0
  %455 = vmatpush1.msra.mxu0 0.0
  %456 = vmatprep.subr.mxu0 0.0
  %457 = vmatpush1.msra.mxu0 0.0
  %458 = vmatprep.subr.mxu0 0.0
  %459 = vmatpush1.msra.mxu0 0.0
  %460 = vmatprep.subr.mxu0 0.0
  %461 = vmatpush1.msra.mxu0 0.0
  %462 = vmatprep.subr.mxu0 0.0
  %463 = vmatpush1.msra.mxu0 0.0
  %464 = vmatprep.subr.mxu0 0.0
  %465 = vmatpush1.msra.mxu0 0.0
  %466 = vmatprep.subr.mxu0 0.0
  %467 = vmatpush1.msra.mxu0 0.0
  %468 = vmatprep.subr.mxu0 0.0
  %469 = vmatpush1.msra.mxu0 0.0
  %470 = vmatprep.subr.mxu0 0.0
  %471 = vmatpush1.msra.mxu0 0.0
  %472 = vmatprep.subr.mxu0 0.0
  %473 = vmatpush1.msra.mxu0 0.0
  %474 = vmatprep.subr.mxu0 0.0
  %475 = vmatpush1.msra.mxu0 0.0
  %476 = vmatprep.subr.mxu0 0.0
  %477 = vmatpush1.msra.mxu0 0.0
  %478 = vmatprep.subr.mxu0 0.0
  %479 = vmatpush1.msra.mxu0 0.0
  %480 = vmatprep.subr.mxu0 0.0
  %481 = vmatpush1.msra.mxu0 0.0
  %482 = vmatprep.subr.mxu0 0.0
  %483 = vmatpush1.msra.mxu0 0.0
  %484 = vmatprep.mubr.f32.mxu0 0.0
  %485 = vmatmul.mubr.f32.gmra.mrb[0].mxu0 %v326
  %v486 = vpop.f32.mrb[0].mxu0
  %v487 = vadd.f32 %v315, %v486
  %v488 = vpop.f32.mrb[0].mxu0
  %v489 = vadd.f32 %v317, %v488
  %490 = vmatprep.mubr.f32.mxu0 0.0
  %491 = vmatmul.mubr.f32.gmra.mrb[0].mxu0 %v329
  %v492 = vpop.f32.mrb[0].mxu0
  %v493 = vadd.f32 %v321, %v492
  %v494 = vpop.f32.mrb[0].mxu0
  %v495 = vadd.f32 %v323, %v494
  %496 = vdwg.mxu0
  %497 = vrot.lane.b32.xlu0 %v17, 15
  %v498 = vpop.permute.xlu0 %497
  %499 = vrot.lane.b32.xlu0 %v40, 15
  %v500 = vpop.permute.xlu0 %499
  %501 = vrot.lane.b32.xlu0 %v18, 15
  %v502 = vpop.permute.xlu0 %501
  %503 = vrot.lane.b32.xlu0 %v41, 15
  %v504 = vpop.permute.xlu0 %503
  %vm505 = vcmp.lt.s32.totalorder %v22, 15
  %v506 = vsel %vm505, %v502, %v504
  %v507 = vsel %vm505, %v500, %v502
  %v508 = vsel %vm505, %v498, %v500
  %v509 = vsel %vm505, %v504, %v498
  %v510 = vadd.s32 %v34, 1
  %v511 = vadd.s32 %v35, 1
  %v512 = vadd.s32 %v36, 1
  %v513 = vadd.s32 %v37, 1
  %vm514 = vcmp.ge.s32.totalorder %v510, 0
  %vm515 = vcmp.ge.s32.totalorder %v511, 0
  %vm516 = vcmp.ge.s32.totalorder %v512, 0
  %vm517 = vcmp.ge.s32.totalorder %v513, 0
  %vm518 = vmand %vm69, %vm514
  %vm519 = vmand %vm70, %vm515
  %vm520 = vmand %vm71, %vm516
  %vm521 = vmand %vm72, %vm517
  %vm522 = vcmp.lt.s32.totalorder %v510, 16
  %vm523 = vcmp.lt.s32.totalorder %v511, 16
  %vm524 = vcmp.lt.s32.totalorder %v512, 16
  %vm525 = vcmp.lt.s32.totalorder %v513, 16
  %vm526 = vmand %vm518, %vm522
  %vm527 = vmand %vm519, %vm523
  %vm528 = vmand %vm520, %vm524
  %vm529 = vmand %vm521, %vm525
  %v530 = vsel %vm526, 1, 0
  %v531 = vsel %vm527, 1, 0
  %v532 = vsel %vm528, 1, 0
  %v533 = vsel %vm529, 1, 0
  %v534 = vcvt.s32.f32 %v530
  %v535 = vcvt.s32.f32 %v531
  %v536 = vcvt.s32.f32 %v532
  %v537 = vcvt.s32.f32 %v533
  %v538 = vmul.f32 %v509, %v534
  %v539 = vmul.f32 %v508, %v535
  %v540 = vmul.f32 %v507, %v536
  %v541 = vmul.f32 %v506, %v537
  %s542 = scalar_lea.vmem %s1, 32
  %v543 = vld [vmem:[%s542] sm:$0xff]
  %v544 = vld [vmem:[%s542 + $0x8] sm:$0xff]
  %v546 = vsel %vm151, %v543, 0
  %v549 = vsel %vm151, %v544, 0
  %v552 = vsel %vm158, %v538, 0
  %v555 = vsel %vm158, %v539, 0
  %v558 = vsel %vm158, %v540, 0
  %v561 = vsel %vm158, %v541, 0
  %563 = vmatprep.subr.mxu0 %v555
  %564 = vmatpush1.msra.mxu0 %v552
  %565 = vmatprep.subr.mxu0 0.0
  %566 = vmatpush1.msra.mxu0 0.0
  %567 = vmatprep.subr.mxu0 0.0
  %568 = vmatpush1.msra.mxu0 0.0
  %569 = vmatprep.subr.mxu0 0.0
  %570 = vmatpush1.msra.mxu0 0.0
  %571 = vmatprep.subr.mxu0 0.0
  %572 = vmatpush1.msra.mxu0 0.0
  %573 = vmatprep.subr.mxu0 0.0
  %574 = vmatpush1.msra.mxu0 0.0
  %575 = vmatprep.subr.mxu0 0.0
  %576 = vmatpush1.msra.mxu0 0.0
  %577 = vmatprep.subr.mxu0 0.0
  %578 = vmatpush1.msra.mxu0 0.0
  %579 = vmatprep.subr.mxu0 0.0
  %580 = vmatpush1.msra.mxu0 0.0
  %581 = vmatprep.subr.mxu0 0.0
  %582 = vmatpush1.msra.mxu0 0.0
  %583 = vmatprep.subr.mxu0 0.0
  %584 = vmatpush1.msra.mxu0 0.0
  %585 = vmatprep.subr.mxu0 0.0
  %586 = vmatpush1.msra.mxu0 0.0
  %587 = vmatprep.subr.mxu0 0.0
  %588 = vmatpush1.msra.mxu0 0.0
  %589 = vmatprep.subr.mxu0 0.0
  %590 = vmatpush1.msra.mxu0 0.0
  %591 = vmatprep.subr.mxu0 0.0
  %592 = vmatpush1.msra.mxu0 0.0
  %593 = vmatprep.subr.mxu0 0.0
  %594 = vmatpush1.msra.mxu0 0.0
  %595 = vmatprep.subr.mxu0 0.0
  %596 = vmatpush1.msra.mxu0 0.0
  %597 = vmatprep.subr.mxu0 0.0
  %598 = vmatpush1.msra.mxu0 0.0
  %599 = vmatprep.subr.mxu0 0.0
  %600 = vmatpush1.msra.mxu0 0.0
  %601 = vmatprep.subr.mxu0 0.0
  %602 = vmatpush1.msra.mxu0 0.0
  %603 = vmatprep.subr.mxu0 0.0
  %604 = vmatpush1.msra.mxu0 0.0
  %605 = vmatprep.subr.mxu0 0.0
  %606 = vmatpush1.msra.mxu0 0.0
  %607 = vmatprep.subr.mxu0 0.0
  %608 = vmatpush1.msra.mxu0 0.0
  %609 = vmatprep.subr.mxu0 0.0
  %610 = vmatpush1.msra.mxu0 0.0
  %611 = vmatprep.subr.mxu0 0.0
  %612 = vmatpush1.msra.mxu0 0.0
  %613 = vmatprep.subr.mxu0 0.0
  %614 = vmatpush1.msra.mxu0 0.0
  %615 = vmatprep.subr.mxu0 0.0
  %616 = vmatpush1.msra.mxu0 0.0
  %617 = vmatprep.subr.mxu0 0.0
  %618 = vmatpush1.msra.mxu0 0.0
  %619 = vmatprep.subr.mxu0 0.0
  %620 = vmatpush1.msra.mxu0 0.0
  %621 = vmatprep.subr.mxu0 0.0
  %622 = vmatpush1.msra.mxu0 0.0
  %623 = vmatprep.subr.mxu0 0.0
  %624 = vmatpush1.msra.mxu0 0.0
  %625 = vmatprep.subr.mxu0 0.0
  %626 = vmatpush1.msra.mxu0 0.0
  %627 = vmatprep.mubr.f32.mxu0 0.0
  %628 = vmatmul.mubr.f32.gmra.mrb[0].mxu0 %v546
  %v629 = vpop.f32.mrb[0].mxu0
  %v630 = vadd.f32 0.0, %v629
  %v631 = vpop.f32.mrb[0].mxu0
  %v632 = vadd.f32 0.0, %v631
  %633 = vmatprep.mubr.f32.mxu0 0.0
  %634 = vmatmul.mubr.f32.gmra.mrb[0].mxu0 %v549
  %v635 = vpop.f32.mrb[0].mxu0
  %v636 = vadd.f32 0.0, %v635
  %v637 = vpop.f32.mrb[0].mxu0
  %v638 = vadd.f32 0.0, %v637
  %639 = vdwg.mxu0
  %640 = vmatprep.subr.mxu0 %v561
  %641 = vmatpush1.msra.mxu0 %v558
  %642 = vmatprep.subr.mxu0 0.0
  %643 = vmatpush1.msra.mxu0 0.0
  %644 = vmatprep.subr.mxu0 0.0
  %645 = vmatpush1.msra.mxu0 0.0
  %646 = vmatprep.subr.mxu0 0.0
  %647 = vmatpush1.msra.mxu0 0.0
  %648 = vmatprep.subr.mxu0 0.0
  %649 = vmatpush1.msra.mxu0 0.0
  %650 = vmatprep.subr.mxu0 0.0
  %651 = vmatpush1.msra.mxu0 0.0
  %652 = vmatprep.subr.mxu0 0.0
  %653 = vmatpush1.msra.mxu0 0.0
  %654 = vmatprep.subr.mxu0 0.0
  %655 = vmatpush1.msra.mxu0 0.0
  %656 = vmatprep.subr.mxu0 0.0
  %657 = vmatpush1.msra.mxu0 0.0
  %658 = vmatprep.subr.mxu0 0.0
  %659 = vmatpush1.msra.mxu0 0.0
  %660 = vmatprep.subr.mxu0 0.0
  %661 = vmatpush1.msra.mxu0 0.0
  %662 = vmatprep.subr.mxu0 0.0
  %663 = vmatpush1.msra.mxu0 0.0
  %664 = vmatprep.subr.mxu0 0.0
  %665 = vmatpush1.msra.mxu0 0.0
  %666 = vmatprep.subr.mxu0 0.0
  %667 = vmatpush1.msra.mxu0 0.0
  %668 = vmatprep.subr.mxu0 0.0
  %669 = vmatpush1.msra.mxu0 0.0
  %670 = vmatprep.subr.mxu0 0.0
  %671 = vmatpush1.msra.mxu0 0.0
  %672 = vmatprep.subr.mxu0 0.0
  %673 = vmatpush1.msra.mxu0 0.0
  %674 = vmatprep.subr.mxu0 0.0
  %675 = vmatpush1.msra.mxu0 0.0
  %676 = vmatprep.subr.mxu0 0.0
  %677 = vmatpush1.msra.mxu0 0.0
  %678 = vmatprep.subr.mxu0 0.0
  %679 = vmatpush1.msra.mxu0 0.0
  %680 = vmatprep.subr.mxu0 0.0
  %681 = vmatpush1.msra.mxu0 0.0
  %682 = vmatprep.subr.mxu0 0.0
  %683 = vmatpush1.msra.mxu0 0.0
  %684 = vmatprep.subr.mxu0 0.0
  %685 = vmatpush1.msra.mxu0 0.0
  %686 = vmatprep.subr.mxu0 0.0
  %687 = vmatpush1.msra.mxu0 0.0
  %688 = vmatprep.subr.mxu0 0.0
  %689 = vmatpush1.msra.mxu0 0.0
  %690 = vmatprep.subr.mxu0 0.0
  %691 = vmatpush1.msra.mxu0 0.0
  %692 = vmatprep.subr.mxu0 0.0
  %693 = vmatpush1.msra.mxu0 0.0
  %694 = vmatprep.subr.mxu0 0.0
  %695 = vmatpush1.msra.mxu0 0.0
  %696 = vmatprep.subr.mxu0 0.0
  %697 = vmatpush1.msra.mxu0 0.0
  %698 = vmatprep.subr.mxu0 0.0
  %699 = vmatpush1.msra.mxu0 0.0
  %700 = vmatprep.subr.mxu0 0.0
  %701 = vmatpush1.msra.mxu0 0.0
  %702 = vmatprep.subr.mxu0 0.0
  %703 = vmatpush1.msra.mxu0 0.0
  %704 = vmatprep.mubr.f32.mxu0 0.0
  %705 = vmatmul.mubr.f32.gmra.mrb[0].mxu0 %v546
  %v706 = vpop.f32.mrb[0].mxu0
  %v707 = vadd.f32 0.0, %v706
  %v708 = vpop.f32.mrb[0].mxu0
  %v709 = vadd.f32 0.0, %v708
  %710 = vmatprep.mubr.f32.mxu0 0.0
  %711 = vmatmul.mubr.f32.gmra.mrb[0].mxu0 %v549
  %v712 = vpop.f32.mrb[0].mxu0
  %v713 = vadd.f32 0.0, %v712
  %v714 = vpop.f32.mrb[0].mxu0
  %v715 = vadd.f32 0.0, %v714
  %716 = vdwg.mxu0
  %v717 = vadd.f32 %v410, %v630
  %v718 = vadd.f32 %v412, %v632
  %v719 = vadd.f32 %v487, %v707
  %v720 = vadd.f32 %v489, %v709
  %v721 = vadd.f32 %v416, %v636
  %v722 = vadd.f32 %v418, %v638
  %v723 = vadd.f32 %v493, %v713
  %v724 = vadd.f32 %v495, %v715
  %725 = vrot.lane.b32.xlu0 %v17, 1
  %v726 = vpop.permute.xlu0 %725
  %727 = vrot.lane.b32.xlu0 %v40, 1
  %v728 = vpop.permute.xlu0 %727
  %729 = vrot.lane.b32.xlu0 %v18, 1
  %v730 = vpop.permute.xlu0 %729
  %731 = vrot.lane.b32.xlu0 %v41, 1
  %v732 = vpop.permute.xlu0 %731
  %vm733 = vcmp.lt.s32.totalorder %v22, 1
  %v734 = vsel %vm733, %v730, %v732
  %v735 = vsel %vm733, %v728, %v730
  %v736 = vsel %vm733, %v726, %v728
  %v737 = vsel %vm733, %v732, %v726
  %vm738 = vcmp.ge.s32.totalorder %v30, 0
  %vm739 = vcmp.ge.s32.totalorder %v31, 0
  %vm740 = vcmp.ge.s32.totalorder %v32, 0
  %vm741 = vcmp.ge.s32.totalorder %v33, 0
  %vm742 = vcmp.lt.s32.totalorder %v30, 16
  %vm743 = vcmp.lt.s32.totalorder %v31, 16
  %vm744 = vcmp.lt.s32.totalorder %v32, 16
  %vm745 = vcmp.lt.s32.totalorder %v33, 16
  %vm746 = vmand %vm738, %vm742
  %vm747 = vmand %vm739, %vm743
  %vm748 = vmand %vm740, %vm744
  %vm749 = vmand %vm741, %vm745
  %vm750 = vmand %vm746, %vm77
  %vm751 = vmand %vm747, %vm78
  %vm752 = vmand %vm748, %vm79
  %vm753 = vmand %vm749, %vm80
  %vm754 = vmand %vm750, %vm85
  %vm755 = vmand %vm751, %vm86
  %vm756 = vmand %vm752, %vm87
  %vm757 = vmand %vm753, %vm88
  %v758 = vsel %vm754, 1, 0
  %v759 = vsel %vm755, 1, 0
  %v760 = vsel %vm756, 1, 0
  %v761 = vsel %vm757, 1, 0
  %v762 = vcvt.s32.f32 %v758
  %v763 = vcvt.s32.f32 %v759
  %v764 = vcvt.s32.f32 %v760
  %v765 = vcvt.s32.f32 %v761
  %v766 = vmul.f32 %v737, %v762
  %v767 = vmul.f32 %v736, %v763
  %v768 = vmul.f32 %v735, %v764
  %v769 = vmul.f32 %v734, %v765
  %s770 = scalar_lea.vmem %s1, 48
  %v771 = vld [vmem:[%s770] sm:$0xff]
  %v772 = vld [vmem:[%s770 + $0x8] sm:$0xff]
  %v774 = vsel %vm151, %v771, 0
  %v777 = vsel %vm151, %v772, 0
  %v780 = vsel %vm158, %v766, 0
  %v783 = vsel %vm158, %v767, 0
  %v786 = vsel %vm158, %v768, 0
  %v789 = vsel %vm158, %v769, 0
  %791 = vmatprep.subr.mxu0 %v783
  %792 = vmatpush1.msra.mxu0 %v780
  %793 = vmatprep.subr.mxu0 0.0
  %794 = vmatpush1.msra.mxu0 0.0
  %795 = vmatprep.subr.mxu0 0.0
  %796 = vmatpush1.msra.mxu0 0.0
  %797 = vmatprep.subr.mxu0 0.0
  %798 = vmatpush1.msra.mxu0 0.0
  %799 = vmatprep.subr.mxu0 0.0
  %800 = vmatpush1.msra.mxu0 0.0
  %801 = vmatprep.subr.mxu0 0.0
  %802 = vmatpush1.msra.mxu0 0.0
  %803 = vmatprep.subr.mxu0 0.0
  %804 = vmatpush1.msra.mxu0 0.0
  %805 = vmatprep.subr.mxu0 0.0
  %806 = vmatpush1.msra.mxu0 0.0
  %807 = vmatprep.subr.mxu0 0.0
  %808 = vmatpush1.msra.mxu0 0.0
  %809 = vmatprep.subr.mxu0 0.0
  %810 = vmatpush1.msra.mxu0 0.0
  %811 = vmatprep.subr.mxu0 0.0
  %812 = vmatpush1.msra.mxu0 0.0
  %813 = vmatprep.subr.mxu0 0.0
  %814 = vmatpush1.msra.mxu0 0.0
  %815 = vmatprep.subr.mxu0 0.0
  %816 = vmatpush1.msra.mxu0 0.0
  %817 = vmatprep.subr.mxu0 0.0
  %818 = vmatpush1.msra.mxu0 0.0
  %819 = vmatprep.subr.mxu0 0.0
  %820 = vmatpush1.msra.mxu0 0.0
  %821 = vmatprep.subr.mxu0 0.0
  %822 = vmatpush1.msra.mxu0 0.0
  %823 = vmatprep.subr.mxu0 0.0
  %824 = vmatpush1.msra.mxu0 0.0
  %825 = vmatprep.subr.mxu0 0.0
  %826 = vmatpush1.msra.mxu0 0.0
  %827 = vmatprep.subr.mxu0 0.0
  %828 = vmatpush1.msra.mxu0 0.0
  %829 = vmatprep.subr.mxu0 0.0
  %830 = vmatpush1.msra.mxu0 0.0
  %831 = vmatprep.subr.mxu0 0.0
  %832 = vmatpush1.msra.mxu0 0.0
  %833 = vmatprep.subr.mxu0 0.0
  %834 = vmatpush1.msra.mxu0 0.0
  %835 = vmatprep.subr.mxu0 0.0
  %836 = vmatpush1.msra.mxu0 0.0
  %837 = vmatprep.subr.mxu0 0.0
  %838 = vmatpush1.msra.mxu0 0.0
  %839 = vmatprep.subr.mxu0 0.0
  %840 = vmatpush1.msra.mxu0 0.0
  %841 = vmatprep.subr.mxu0 0.0
  %842 = vmatpush1.msra.mxu0 0.0
  %843 = vmatprep.subr.mxu0 0.0
  %844 = vmatpush1.msra.mxu0 0.0
  %845 = vmatprep.subr.mxu0 0.0
  %846 = vmatpush1.msra.mxu0 0.0
  %847 = vmatprep.subr.mxu0 0.0
  %848 = vmatpush1.msra.mxu0 0.0
  %849 = vmatprep.subr.mxu0 0.0
  %850 = vmatpush1.msra.mxu0 0.0
  %851 = vmatprep.subr.mxu0 0.0
  %852 = vmatpush1.msra.mxu0 0.0
  %853 = vmatprep.subr.mxu0 0.0
  %854 = vmatpush1.msra.mxu0 0.0
  %855 = vmatprep.mubr.f32.mxu0 0.0
  %856 = vmatmul.mubr.f32.gmra.mrb[0].mxu0 %v774
  %v857 = vpop.f32.mrb[0].mxu0
  %v858 = vadd.f32 0.0, %v857
  %v859 = vpop.f32.mrb[0].mxu0
  %v860 = vadd.f32 0.0, %v859
  %861 = vmatprep.mubr.f32.mxu0 0.0
  %862 = vmatmul.mubr.f32.gmra.mrb[0].mxu0 %v777
  %v863 = vpop.f32.mrb[0].mxu0
  %v864 = vadd.f32 0.0, %v863
  %v865 = vpop.f32.mrb[0].mxu0
  %v866 = vadd.f32 0.0, %v865
  %867 = vdwg.mxu0
  %868 = vmatprep.subr.mxu0 %v789
  %869 = vmatpush1.msra.mxu0 %v786
  %870 = vmatprep.subr.mxu0 0.0
  %871 = vmatpush1.msra.mxu0 0.0
  %872 = vmatprep.subr.mxu0 0.0
  %873 = vmatpush1.msra.mxu0 0.0
  %874 = vmatprep.subr.mxu0 0.0
  %875 = vmatpush1.msra.mxu0 0.0
  %876 = vmatprep.subr.mxu0 0.0
  %877 = vmatpush1.msra.mxu0 0.0
  %878 = vmatprep.subr.mxu0 0.0
  %879 = vmatpush1.msra.mxu0 0.0
  %880 = vmatprep.subr.mxu0 0.0
  %881 = vmatpush1.msra.mxu0 0.0
  %882 = vmatprep.subr.mxu0 0.0
  %883 = vmatpush1.msra.mxu0 0.0
  %884 = vmatprep.subr.mxu0 0.0
  %885 = vmatpush1.msra.mxu0 0.0
  %886 = vmatprep.subr.mxu0 0.0
  %887 = vmatpush1.msra.mxu0 0.0
  %888 = vmatprep.subr.mxu0 0.0
  %889 = vmatpush1.msra.mxu0 0.0
  %890 = vmatprep.subr.mxu0 0.0
  %891 = vmatpush1.msra.mxu0 0.0
  %892 = vmatprep.subr.mxu0 0.0
  %893 = vmatpush1.msra.mxu0 0.0
  %894 = vmatprep.subr.mxu0 0.0
  %895 = vmatpush1.msra.mxu0 0.0
  %896 = vmatprep.subr.mxu0 0.0
  %897 = vmatpush1.msra.mxu0 0.0
  %898 = vmatprep.subr.mxu0 0.0
  %899 = vmatpush1.msra.mxu0 0.0
  %900 = vmatprep.subr.mxu0 0.0
  %901 = vmatpush1.msra.mxu0 0.0
  %902 = vmatprep.subr.mxu0 0.0
  %903 = vmatpush1.msra.mxu0 0.0
  %904 = vmatprep.subr.mxu0 0.0
  %905 = vmatpush1.msra.mxu0 0.0
  %906 = vmatprep.subr.mxu0 0.0
  %907 = vmatpush1.msra.mxu0 0.0
  %908 = vmatprep.subr.mxu0 0.0
  %909 = vmatpush1.msra.mxu0 0.0
  %910 = vmatprep.subr.mxu0 0.0
  %911 = vmatpush1.msra.mxu0 0.0
  %912 = vmatprep.subr.mxu0 0.0
  %913 = vmatpush1.msra.mxu0 0.0
  %914 = vmatprep.subr.mxu0 0.0
  %915 = vmatpush1.msra.mxu0 0.0
  %916 = vmatprep.subr.mxu0 0.0
  %917 = vmatpush1.msra.mxu0 0.0
  %918 = vmatprep.subr.mxu0 0.0
  %919 = vmatpush1.msra.mxu0 0.0
  %920 = vmatprep.subr.mxu0 0.0
  %921 = vmatpush1.msra.mxu0 0.0
  %922 = vmatprep.subr.mxu0 0.0
  %923 = vmatpush1.msra.mxu0 0.0
  %924 = vmatprep.subr.mxu0 0.0
  %925 = vmatpush1.msra.mxu0 0.0
  %926 = vmatprep.subr.mxu0 0.0
  %927 = vmatpush1.msra.mxu0 0.0
  %928 = vmatprep.subr.mxu0 0.0
  %929 = vmatpush1.msra.mxu0 0.0
  %930 = vmatprep.subr.mxu0 0.0
  %931 = vmatpush1.msra.mxu0 0.0
  %932 = vmatprep.mubr.f32.mxu0 0.0
  %933 = vmatmul.mubr.f32.gmra.mrb[0].mxu0 %v774
  %v934 = vpop.f32.mrb[0].mxu0
  %v935 = vadd.f32 0.0, %v934
  %v936 = vpop.f32.mrb[0].mxu0
  %v937 = vadd.f32 0.0, %v936
  %938 = vmatprep.mubr.f32.mxu0 0.0
  %939 = vmatmul.mubr.f32.gmra.mrb[0].mxu0 %v777
  %v940 = vpop.f32.mrb[0].mxu0
  %v941 = vadd.f32 0.0, %v940
  %v942 = vpop.f32.mrb[0].mxu0
  %v943 = vadd.f32 0.0, %v942
  %944 = vdwg.mxu0
  %v945 = vadd.f32 %v717, %v858
  %v946 = vadd.f32 %v718, %v860
  %v947 = vadd.f32 %v719, %v935
  %v948 = vadd.f32 %v720, %v937
  %v949 = vadd.f32 %v721, %v864
  %v950 = vadd.f32 %v722, %v866
  %v951 = vadd.f32 %v723, %v941
  %v952 = vadd.f32 %v724, %v943
  %s953 = scalar_lea.vmem %s1, 64
  %v954 = vld [vmem:[%s953] sm:$0xff]
  %v955 = vld [vmem:[%s953 + $0x8] sm:$0xff]
  %v957 = vsel %vm151, %v954, 0
  %v960 = vsel %vm151, %v955, 0
  %v962 = vsel %vm158, %v17, 0
  %v964 = vsel %vm158, %v40, 0
  %v966 = vsel %vm158, %v18, 0
  %v968 = vsel %vm158, %v41, 0
  %970 = vmatprep.subr.mxu0 %v964
  %971 = vmatpush1.msra.mxu0 %v962
  %972 = vmatprep.subr.mxu0 0.0
  %973 = vmatpush1.msra.mxu0 0.0
  %974 = vmatprep.subr.mxu0 0.0
  %975 = vmatpush1.msra.mxu0 0.0
  %976 = vmatprep.subr.mxu0 0.0
  %977 = vmatpush1.msra.mxu0 0.0
  %978 = vmatprep.subr.mxu0 0.0
  %979 = vmatpush1.msra.mxu0 0.0
  %980 = vmatprep.subr.mxu0 0.0
  %981 = vmatpush1.msra.mxu0 0.0
  %982 = vmatprep.subr.mxu0 0.0
  %983 = vmatpush1.msra.mxu0 0.0
  %984 = vmatprep.subr.mxu0 0.0
  %985 = vmatpush1.msra.mxu0 0.0
  %986 = vmatprep.subr.mxu0 0.0
  %987 = vmatpush1.msra.mxu0 0.0
  %988 = vmatprep.subr.mxu0 0.0
  %989 = vmatpush1.msra.mxu0 0.0
  %990 = vmatprep.subr.mxu0 0.0
  %991 = vmatpush1.msra.mxu0 0.0
  %992 = vmatprep.subr.mxu0 0.0
  %993 = vmatpush1.msra.mxu0 0.0
  %994 = vmatprep.subr.mxu0 0.0
  %995 = vmatpush1.msra.mxu0 0.0
  %996 = vmatprep.subr.mxu0 0.0
  %997 = vmatpush1.msra.mxu0 0.0
  %998 = vmatprep.subr.mxu0 0.0
  %999 = vmatpush1.msra.mxu0 0.0
  %1000 = vmatprep.subr.mxu0 0.0
  %1001 = vmatpush1.msra.mxu0 0.0
  %1002 = vmatprep.subr.mxu0 0.0
  %1003 = vmatpush1.msra.mxu0 0.0
  %1004 = vmatprep.subr.mxu0 0.0
  %1005 = vmatpush1.msra.mxu0 0.0
  %1006 = vmatprep.subr.mxu0 0.0
  %1007 = vmatpush1.msra.mxu0 0.0
  %1008 = vmatprep.subr.mxu0 0.0
  %1009 = vmatpush1.msra.mxu0 0.0
  %1010 = vmatprep.subr.mxu0 0.0
  %1011 = vmatpush1.msra.mxu0 0.0
  %1012 = vmatprep.subr.mxu0 0.0
  %1013 = vmatpush1.msra.mxu0 0.0
  %1014 = vmatprep.subr.mxu0 0.0
  %1015 = vmatpush1.msra.mxu0 0.0
  %1016 = vmatprep.subr.mxu0 0.0
  %1017 = vmatpush1.msra.mxu0 0.0
  %1018 = vmatprep.subr.mxu0 0.0
  %1019 = vmatpush1.msra.mxu0 0.0
  %1020 = vmatprep.subr.mxu0 0.0
  %1021 = vmatpush1.msra.mxu0 0.0
  %1022 = vmatprep.subr.mxu0 0.0
  %1023 = vmatpush1.msra.mxu0 0.0
  %1024 = vmatprep.subr.mxu0 0.0
  %1025 = vmatpush1.msra.mxu0 0.0
  %1026 = vmatprep.subr.mxu0 0.0
  %1027 = vmatpush1.msra.mxu0 0.0
  %1028 = vmatprep.subr.mxu0 0.0
  %1029 = vmatpush1.msra.mxu0 0.0
  %1030 = vmatprep.subr.mxu0 0.0
  %1031 = vmatpush1.msra.mxu0 0.0
  %1032 = vmatprep.subr.mxu0 0.0
  %1033 = vmatpush1.msra.mxu0 0.0
  %1034 = vmatprep.mubr.f32.mxu0 0.0
  %1035 = vmatmul.mubr.f32.gmra.mrb[0].mxu0 %v957
  %v1036 = vpop.f32.mrb[0].mxu0
  %v1037 = vadd.f32 0.0, %v1036
  %v1038 = vpop.f32.mrb[0].mxu0
  %v1039 = vadd.f32 0.0, %v1038
  %1040 = vmatprep.mubr.f32.mxu0 0.0
  %1041 = vmatmul.mubr.f32.gmra.mrb[0].mxu0 %v960
  %v1042 = vpop.f32.mrb[0].mxu0
  %v1043 = vadd.f32 0.0, %v1042
  %v1044 = vpop.f32.mrb[0].mxu0
  %v1045 = vadd.f32 0.0, %v1044
  %1046 = vdwg.mxu0
  %1047 = vmatprep.subr.mxu0 %v968
  %1048 = vmatpush1.msra.mxu0 %v966
  %1049 = vmatprep.subr.mxu0 0.0
  %1050 = vmatpush1.msra.mxu0 0.0
  %1051 = vmatprep.subr.mxu0 0.0
  %1052 = vmatpush1.msra.mxu0 0.0
  %1053 = vmatprep.subr.mxu0 0.0
  %1054 = vmatpush1.msra.mxu0 0.0
  %1055 = vmatprep.subr.mxu0 0.0
  %1056 = vmatpush1.msra.mxu0 0.0
  %1057 = vmatprep.subr.mxu0 0.0
  %1058 = vmatpush1.msra.mxu0 0.0
  %1059 = vmatprep.subr.mxu0 0.0
  %1060 = vmatpush1.msra.mxu0 0.0
  %1061 = vmatprep.subr.mxu0 0.0
  %1062 = vmatpush1.msra.mxu0 0.0
  %1063 = vmatprep.subr.mxu0 0.0
  %1064 = vmatpush1.msra.mxu0 0.0
  %1065 = vmatprep.subr.mxu0 0.0
  %1066 = vmatpush1.msra.mxu0 0.0
  %1067 = vmatprep.subr.mxu0 0.0
  %1068 = vmatpush1.msra.mxu0 0.0
  %1069 = vmatprep.subr.mxu0 0.0
  %1070 = vmatpush1.msra.mxu0 0.0
  %1071 = vmatprep.subr.mxu0 0.0
  %1072 = vmatpush1.msra.mxu0 0.0
  %1073 = vmatprep.subr.mxu0 0.0
  %1074 = vmatpush1.msra.mxu0 0.0
  %1075 = vmatprep.subr.mxu0 0.0
  %1076 = vmatpush1.msra.mxu0 0.0
  %1077 = vmatprep.subr.mxu0 0.0
  %1078 = vmatpush1.msra.mxu0 0.0
  %1079 = vmatprep.subr.mxu0 0.0
  %1080 = vmatpush1.msra.mxu0 0.0
  %1081 = vmatprep.subr.mxu0 0.0
  %1082 = vmatpush1.msra.mxu0 0.0
  %1083 = vmatprep.subr.mxu0 0.0
  %1084 = vmatpush1.msra.mxu0 0.0
  %1085 = vmatprep.subr.mxu0 0.0
  %1086 = vmatpush1.msra.mxu0 0.0
  %1087 = vmatprep.subr.mxu0 0.0
  %1088 = vmatpush1.msra.mxu0 0.0
  %1089 = vmatprep.subr.mxu0 0.0
  %1090 = vmatpush1.msra.mxu0 0.0
  %1091 = vmatprep.subr.mxu0 0.0
  %1092 = vmatpush1.msra.mxu0 0.0
  %1093 = vmatprep.subr.mxu0 0.0
  %1094 = vmatpush1.msra.mxu0 0.0
  %1095 = vmatprep.subr.mxu0 0.0
  %1096 = vmatpush1.msra.mxu0 0.0
  %1097 = vmatprep.subr.mxu0 0.0
  %1098 = vmatpush1.msra.mxu0 0.0
  %1099 = vmatprep.subr.mxu0 0.0
  %1100 = vmatpush1.msra.mxu0 0.0
  %1101 = vmatprep.subr.mxu0 0.0
  %1102 = vmatpush1.msra.mxu0 0.0
  %1103 = vmatprep.subr.mxu0 0.0
  %1104 = vmatpush1.msra.mxu0 0.0
  %1105 = vmatprep.subr.mxu0 0.0
  %1106 = vmatpush1.msra.mxu0 0.0
  %1107 = vmatprep.subr.mxu0 0.0
  %1108 = vmatpush1.msra.mxu0 0.0
  %1109 = vmatprep.subr.mxu0 0.0
  %1110 = vmatpush1.msra.mxu0 0.0
  %1111 = vmatprep.mubr.f32.mxu0 0.0
  %1112 = vmatmul.mubr.f32.gmra.mrb[0].mxu0 %v957
  %v1113 = vpop.f32.mrb[0].mxu0
  %v1114 = vadd.f32 0.0, %v1113
  %v1115 = vpop.f32.mrb[0].mxu0
  %v1116 = vadd.f32 0.0, %v1115
  %1117 = vmatprep.mubr.f32.mxu0 0.0
  %1118 = vmatmul.mubr.f32.gmra.mrb[0].mxu0 %v960
  %v1119 = vpop.f32.mrb[0].mxu0
  %v1120 = vadd.f32 0.0, %v1119
  %v1121 = vpop.f32.mrb[0].mxu0
  %v1122 = vadd.f32 0.0, %v1121
  %1123 = vdwg.mxu0
  %v1124 = vadd.f32 %v945, %v1037
  %v1125 = vadd.f32 %v946, %v1039
  %v1126 = vadd.f32 %v947, %v1114
  %v1127 = vadd.f32 %v948, %v1116
  %v1128 = vadd.f32 %v949, %v1043
  %v1129 = vadd.f32 %v950, %v1045
  %v1130 = vadd.f32 %v951, %v1120
  %v1131 = vadd.f32 %v952, %v1122
  %1132 = vrot.lane.b32.xlu0 %v17, 127
  %v1133 = vpop.permute.xlu0 %1132
  %1134 = vrot.lane.b32.xlu0 %v40, 127
  %v1135 = vpop.permute.xlu0 %1134
  %1136 = vrot.lane.b32.xlu0 %v18, 127
  %v1137 = vpop.permute.xlu0 %1136
  %1138 = vrot.lane.b32.xlu0 %v41, 127
  %v1139 = vpop.permute.xlu0 %1138
  %vm1140 = vcmp.lt.s32.totalorder %v22, 127
  %v1141 = vsel %vm1140, %v1137, %v1139
  %v1142 = vsel %vm1140, %v1135, %v1137
  %v1143 = vsel %vm1140, %v1133, %v1135
  %v1144 = vsel %vm1140, %v1139, %v1133
  %vm1145 = vmand %vm746, %vm514
  %vm1146 = vmand %vm747, %vm515
  %vm1147 = vmand %vm748, %vm516
  %vm1148 = vmand %vm749, %vm517
  %vm1149 = vmand %vm1145, %vm522
  %vm1150 = vmand %vm1146, %vm523
  %vm1151 = vmand %vm1147, %vm524
  %vm1152 = vmand %vm1148, %vm525
  %v1153 = vsel %vm1149, 1, 0
  %v1154 = vsel %vm1150, 1, 0
  %v1155 = vsel %vm1151, 1, 0
  %v1156 = vsel %vm1152, 1, 0
  %v1157 = vcvt.s32.f32 %v1153
  %v1158 = vcvt.s32.f32 %v1154
  %v1159 = vcvt.s32.f32 %v1155
  %v1160 = vcvt.s32.f32 %v1156
  %v1161 = vmul.f32 %v1143, %v1157
  %v1162 = vmul.f32 %v1142, %v1158
  %v1163 = vmul.f32 %v1141, %v1159
  %v1164 = vmul.f32 %v1144, %v1160
  %s1165 = scalar_lea.vmem %s1, 80
  %v1166 = vld [vmem:[%s1165] sm:$0xff]
  %v1167 = vld [vmem:[%s1165 + $0x8] sm:$0xff]
  %v1169 = vsel %vm151, %v1166, 0
  %v1172 = vsel %vm151, %v1167, 0
  %v1175 = vsel %vm158, %v1161, 0
  %v1178 = vsel %vm158, %v1162, 0
  %v1181 = vsel %vm158, %v1163, 0
  %v1184 = vsel %vm158, %v1164, 0
  %1186 = vmatprep.subr.mxu0 %v1178
  %1187 = vmatpush1.msra.mxu0 %v1175
  %1188 = vmatprep.subr.mxu0 0.0
  %1189 = vmatpush1.msra.mxu0 0.0
  %1190 = vmatprep.subr.mxu0 0.0
  %1191 = vmatpush1.msra.mxu0 0.0
  %1192 = vmatprep.subr.mxu0 0.0
  %1193 = vmatpush1.msra.mxu0 0.0
  %1194 = vmatprep.subr.mxu0 0.0
  %1195 = vmatpush1.msra.mxu0 0.0
  %1196 = vmatprep.subr.mxu0 0.0
  %1197 = vmatpush1.msra.mxu0 0.0
  %1198 = vmatprep.subr.mxu0 0.0
  %1199 = vmatpush1.msra.mxu0 0.0
  %1200 = vmatprep.subr.mxu0 0.0
  %1201 = vmatpush1.msra.mxu0 0.0
  %1202 = vmatprep.subr.mxu0 0.0
  %1203 = vmatpush1.msra.mxu0 0.0
  %1204 = vmatprep.subr.mxu0 0.0
  %1205 = vmatpush1.msra.mxu0 0.0
  %1206 = vmatprep.subr.mxu0 0.0
  %1207 = vmatpush1.msra.mxu0 0.0
  %1208 = vmatprep.subr.mxu0 0.0
  %1209 = vmatpush1.msra.mxu0 0.0
  %1210 = vmatprep.subr.mxu0 0.0
  %1211 = vmatpush1.msra.mxu0 0.0
  %1212 = vmatprep.subr.mxu0 0.0
  %1213 = vmatpush1.msra.mxu0 0.0
  %1214 = vmatprep.subr.mxu0 0.0
  %1215 = vmatpush1.msra.mxu0 0.0
  %1216 = vmatprep.subr.mxu0 0.0
  %1217 = vmatpush1.msra.mxu0 0.0
  %1218 = vmatprep.subr.mxu0 0.0
  %1219 = vmatpush1.msra.mxu0 0.0
  %1220 = vmatprep.subr.mxu0 0.0
  %1221 = vmatpush1.msra.mxu0 0.0
  %1222 = vmatprep.subr.mxu0 0.0
  %1223 = vmatpush1.msra.mxu0 0.0
  %1224 = vmatprep.subr.mxu0 0.0
  %1225 = vmatpush1.msra.mxu0 0.0
  %1226 = vmatprep.subr.mxu0 0.0
  %1227 = vmatpush1.msra.mxu0 0.0
  %1228 = vmatprep.subr.mxu0 0.0
  %1229 = vmatpush1.msra.mxu0 0.0
  %1230 = vmatprep.subr.mxu0 0.0
  %1231 = vmatpush1.msra.mxu0 0.0
  %1232 = vmatprep.subr.mxu0 0.0
  %1233 = vmatpush1.msra.mxu0 0.0
  %1234 = vmatprep.subr.mxu0 0.0
  %1235 = vmatpush1.msra.mxu0 0.0
  %1236 = vmatprep.subr.mxu0 0.0
  %1237 = vmatpush1.msra.mxu0 0.0
  %1238 = vmatprep.subr.mxu0 0.0
  %1239 = vmatpush1.msra.mxu0 0.0
  %1240 = vmatprep.subr.mxu0 0.0
  %1241 = vmatpush1.msra.mxu0 0.0
  %1242 = vmatprep.subr.mxu0 0.0
  %1243 = vmatpush1.msra.mxu0 0.0
  %1244 = vmatprep.subr.mxu0 0.0
  %1245 = vmatpush1.msra.mxu0 0.0
  %1246 = vmatprep.subr.mxu0 0.0
  %1247 = vmatpush1.msra.mxu0 0.0
  %1248 = vmatprep.subr.mxu0 0.0
  %1249 = vmatpush1.msra.mxu0 0.0
  %1250 = vmatprep.mubr.f32.mxu0 0.0
  %1251 = vmatmul.mubr.f32.gmra.mrb[0].mxu0 %v1169
  %v1252 = vpop.f32.mrb[0].mxu0
  %v1253 = vadd.f32 0.0, %v1252
  %v1254 = vpop.f32.mrb[0].mxu0
  %v1255 = vadd.f32 0.0, %v1254
  %1256 = vmatprep.mubr.f32.mxu0 0.0
  %1257 = vmatmul.mubr.f32.gmra.mrb[0].mxu0 %v1172
  %v1258 = vpop.f32.mrb[0].mxu0
  %v1259 = vadd.f32 0.0, %v1258
  %v1260 = vpop.f32.mrb[0].mxu0
  %v1261 = vadd.f32 0.0, %v1260
  %1262 = vdwg.mxu0
  %1263 = vmatprep.subr.mxu0 %v1184
  %1264 = vmatpush1.msra.mxu0 %v1181
  %1265 = vmatprep.subr.mxu0 0.0
  %1266 = vmatpush1.msra.mxu0 0.0
  %1267 = vmatprep.subr.mxu0 0.0
  %1268 = vmatpush1.msra.mxu0 0.0
  %1269 = vmatprep.subr.mxu0 0.0
  %1270 = vmatpush1.msra.mxu0 0.0
  %1271 = vmatprep.subr.mxu0 0.0
  %1272 = vmatpush1.msra.mxu0 0.0
  %1273 = vmatprep.subr.mxu0 0.0
  %1274 = vmatpush1.msra.mxu0 0.0
  %1275 = vmatprep.subr.mxu0 0.0
  %1276 = vmatpush1.msra.mxu0 0.0
  %1277 = vmatprep.subr.mxu0 0.0
  %1278 = vmatpush1.msra.mxu0 0.0
  %1279 = vmatprep.subr.mxu0 0.0
  %1280 = vmatpush1.msra.mxu0 0.0
  %1281 = vmatprep.subr.mxu0 0.0
  %1282 = vmatpush1.msra.mxu0 0.0
  %1283 = vmatprep.subr.mxu0 0.0
  %1284 = vmatpush1.msra.mxu0 0.0
  %1285 = vmatprep.subr.mxu0 0.0
  %1286 = vmatpush1.msra.mxu0 0.0
  %1287 = vmatprep.subr.mxu0 0.0
  %1288 = vmatpush1.msra.mxu0 0.0
  %1289 = vmatprep.subr.mxu0 0.0
  %1290 = vmatpush1.msra.mxu0 0.0
  %1291 = vmatprep.subr.mxu0 0.0
  %1292 = vmatpush1.msra.mxu0 0.0
  %1293 = vmatprep.subr.mxu0 0.0
  %1294 = vmatpush1.msra.mxu0 0.0
  %1295 = vmatprep.subr.mxu0 0.0
  %1296 = vmatpush1.msra.mxu0 0.0
  %1297 = vmatprep.subr.mxu0 0.0
  %1298 = vmatpush1.msra.mxu0 0.0
  %1299 = vmatprep.subr.mxu0 0.0
  %1300 = vmatpush1.msra.mxu0 0.0
  %1301 = vmatprep.subr.mxu0 0.0
  %1302 = vmatpush1.msra.mxu0 0.0
  %1303 = vmatprep.subr.mxu0 0.0
  %1304 = vmatpush1.msra.mxu0 0.0
  %1305 = vmatprep.subr.mxu0 0.0
  %1306 = vmatpush1.msra.mxu0 0.0
  %1307 = vmatprep.subr.mxu0 0.0
  %1308 = vmatpush1.msra.mxu0 0.0
  %1309 = vmatprep.subr.mxu0 0.0
  %1310 = vmatpush1.msra.mxu0 0.0
  %1311 = vmatprep.subr.mxu0 0.0
  %1312 = vmatpush1.msra.mxu0 0.0
  %1313 = vmatprep.subr.mxu0 0.0
  %1314 = vmatpush1.msra.mxu0 0.0
  %1315 = vmatprep.subr.mxu0 0.0
  %1316 = vmatpush1.msra.mxu0 0.0
  %1317 = vmatprep.subr.mxu0 0.0
  %1318 = vmatpush1.msra.mxu0 0.0
  %1319 = vmatprep.subr.mxu0 0.0
  %1320 = vmatpush1.msra.mxu0 0.0
  %1321 = vmatprep.subr.mxu0 0.0
  %1322 = vmatpush1.msra.mxu0 0.0
  %1323 = vmatprep.subr.mxu0 0.0
  %1324 = vmatpush1.msra.mxu0 0.0
  %1325 = vmatprep.subr.mxu0 0.0
  %1326 = vmatpush1.msra.mxu0 0.0
  %1327 = vmatprep.mubr.f32.mxu0 0.0
  %1328 = vmatmul.mubr.f32.gmra.mrb[0].mxu0 %v1169
  %v1329 = vpop.f32.mrb[0].mxu0
  %v1330 = vadd.f32 0.0, %v1329
  %v1331 = vpop.f32.mrb[0].mxu0
  %v1332 = vadd.f32 0.0, %v1331
  %1333 = vmatprep.mubr.f32.mxu0 0.0
  %1334 = vmatmul.mubr.f32.gmra.mrb[0].mxu0 %v1172
  %v1335 = vpop.f32.mrb[0].mxu0
  %v1336 = vadd.f32 0.0, %v1335
  %v1337 = vpop.f32.mrb[0].mxu0
  %v1338 = vadd.f32 0.0, %v1337
  %1339 = vdwg.mxu0
  %v1340 = vadd.f32 %v1124, %v1253
  %v1341 = vadd.f32 %v1125, %v1255
  %v1342 = vadd.f32 %v1126, %v1330
  %v1343 = vadd.f32 %v1127, %v1332
  %v1344 = vadd.f32 %v1128, %v1259
  %v1345 = vadd.f32 %v1129, %v1261
  %v1346 = vadd.f32 %v1130, %v1336
  %v1347 = vadd.f32 %v1131, %v1338
  %1348 = vrot.lane.b32.xlu0 %v17, 113
  %v1349 = vpop.permute.xlu0 %1348
  %1350 = vrot.lane.b32.xlu0 %v40, 113
  %v1351 = vpop.permute.xlu0 %1350
  %1352 = vrot.lane.b32.xlu0 %v18, 113
  %v1353 = vpop.permute.xlu0 %1352
  %1354 = vrot.lane.b32.xlu0 %v41, 113
  %v1355 = vpop.permute.xlu0 %1354
  %vm1356 = vcmp.lt.s32.totalorder %v22, 113
  %v1357 = vsel %vm1356, %v1353, %v1355
  %v1358 = vsel %vm1356, %v1351, %v1353
  %v1359 = vsel %vm1356, %v1349, %v1351
  %v1360 = vsel %vm1356, %v1355, %v1349
  %v1361 = vadd.s32 %v30, 1
  %v1362 = vadd.s32 %v31, 1
  %v1363 = vadd.s32 %v32, 1
  %v1364 = vadd.s32 %v33, 1
  %vm1365 = vcmp.ge.s32.totalorder %v1361, 0
  %vm1366 = vcmp.ge.s32.totalorder %v1362, 0
  %vm1367 = vcmp.ge.s32.totalorder %v1363, 0
  %vm1368 = vcmp.ge.s32.totalorder %v1364, 0
  %vm1369 = vcmp.lt.s32.totalorder %v1361, 16
  %vm1370 = vcmp.lt.s32.totalorder %v1362, 16
  %vm1371 = vcmp.lt.s32.totalorder %v1363, 16
  %vm1372 = vcmp.lt.s32.totalorder %v1364, 16
  %vm1373 = vmand %vm1365, %vm1369
  %vm1374 = vmand %vm1366, %vm1370
  %vm1375 = vmand %vm1367, %vm1371
  %vm1376 = vmand %vm1368, %vm1372
  %vm1377 = vmand %vm1373, %vm77
  %vm1378 = vmand %vm1374, %vm78
  %vm1379 = vmand %vm1375, %vm79
  %vm1380 = vmand %vm1376, %vm80
  %vm1381 = vmand %vm1377, %vm85
  %vm1382 = vmand %vm1378, %vm86
  %vm1383 = vmand %vm1379, %vm87
  %vm1384 = vmand %vm1380, %vm88
  %v1385 = vsel %vm1381, 1, 0
  %v1386 = vsel %vm1382, 1, 0
  %v1387 = vsel %vm1383, 1, 0
  %v1388 = vsel %vm1384, 1, 0
  %v1389 = vcvt.s32.f32 %v1385
  %v1390 = vcvt.s32.f32 %v1386
  %v1391 = vcvt.s32.f32 %v1387
  %v1392 = vcvt.s32.f32 %v1388
  %v1393 = vmul.f32 %v1359, %v1389
  %v1394 = vmul.f32 %v1358, %v1390
  %v1395 = vmul.f32 %v1357, %v1391
  %v1396 = vmul.f32 %v1360, %v1392
  %s1397 = scalar_lea.vmem %s1, 96
  %v1398 = vld [vmem:[%s1397] sm:$0xff]
  %v1399 = vld [vmem:[%s1397 + $0x8] sm:$0xff]
  %v1401 = vsel %vm151, %v1398, 0
  %v1404 = vsel %vm151, %v1399, 0
  %v1407 = vsel %vm158, %v1393, 0
  %v1410 = vsel %vm158, %v1394, 0
  %v1413 = vsel %vm158, %v1395, 0
  %v1416 = vsel %vm158, %v1396, 0
  %1418 = vmatprep.subr.mxu0 %v1410
  %1419 = vmatpush1.msra.mxu0 %v1407
  %1420 = vmatprep.subr.mxu0 0.0
  %1421 = vmatpush1.msra.mxu0 0.0
  %1422 = vmatprep.subr.mxu0 0.0
  %1423 = vmatpush1.msra.mxu0 0.0
  %1424 = vmatprep.subr.mxu0 0.0
  %1425 = vmatpush1.msra.mxu0 0.0
  %1426 = vmatprep.subr.mxu0 0.0
  %1427 = vmatpush1.msra.mxu0 0.0
  %1428 = vmatprep.subr.mxu0 0.0
  %1429 = vmatpush1.msra.mxu0 0.0
  %1430 = vmatprep.subr.mxu0 0.0
  %1431 = vmatpush1.msra.mxu0 0.0
  %1432 = vmatprep.subr.mxu0 0.0
  %1433 = vmatpush1.msra.mxu0 0.0
  %1434 = vmatprep.subr.mxu0 0.0
  %1435 = vmatpush1.msra.mxu0 0.0
  %1436 = vmatprep.subr.mxu0 0.0
  %1437 = vmatpush1.msra.mxu0 0.0
  %1438 = vmatprep.subr.mxu0 0.0
  %1439 = vmatpush1.msra.mxu0 0.0
  %1440 = vmatprep.subr.mxu0 0.0
  %1441 = vmatpush1.msra.mxu0 0.0
  %1442 = vmatprep.subr.mxu0 0.0
  %1443 = vmatpush1.msra.mxu0 0.0
  %1444 = vmatprep.subr.mxu0 0.0
  %1445 = vmatpush1.msra.mxu0 0.0
  %1446 = vmatprep.subr.mxu0 0.0
  %1447 = vmatpush1.msra.mxu0 0.0
  %1448 = vmatprep.subr.mxu0 0.0
  %1449 = vmatpush1.msra.mxu0 0.0
  %1450 = vmatprep.subr.mxu0 0.0
  %1451 = vmatpush1.msra.mxu0 0.0
  %1452 = vmatprep.subr.mxu0 0.0
  %1453 = vmatpush1.msra.mxu0 0.0
  %1454 = vmatprep.subr.mxu0 0.0
  %1455 = vmatpush1.msra.mxu0 0.0
  %1456 = vmatprep.subr.mxu0 0.0
  %1457 = vmatpush1.msra.mxu0 0.0
  %1458 = vmatprep.subr.mxu0 0.0
  %1459 = vmatpush1.msra.mxu0 0.0
  %1460 = vmatprep.subr.mxu0 0.0
  %1461 = vmatpush1.msra.mxu0 0.0
  %1462 = vmatprep.subr.mxu0 0.0
  %1463 = vmatpush1.msra.mxu0 0.0
  %1464 = vmatprep.subr.mxu0 0.0
  %1465 = vmatpush1.msra.mxu0 0.0
  %1466 = vmatprep.subr.mxu0 0.0
  %1467 = vmatpush1.msra.mxu0 0.0
  %1468 = vmatprep.subr.mxu0 0.0
  %1469 = vmatpush1.msra.mxu0 0.0
  %1470 = vmatprep.subr.mxu0 0.0
  %1471 = vmatpush1.msra.mxu0 0.0
  %1472 = vmatprep.subr.mxu0 0.0
  %1473 = vmatpush1.msra.mxu0 0.0
  %1474 = vmatprep.subr.mxu0 0.0
  %1475 = vmatpush1.msra.mxu0 0.0
  %1476 = vmatprep.subr.mxu0 0.0
  %1477 = vmatpush1.msra.mxu0 0.0
  %1478 = vmatprep.subr.mxu0 0.0
  %1479 = vmatpush1.msra.mxu0 0.0
  %1480 = vmatprep.subr.mxu0 0.0
  %1481 = vmatpush1.msra.mxu0 0.0
  %1482 = vmatprep.mubr.f32.mxu0 0.0
  %1483 = vmatmul.mubr.f32.gmra.mrb[0].mxu0 %v1401
  %v1484 = vpop.f32.mrb[0].mxu0
  %v1485 = vadd.f32 0.0, %v1484
  %v1486 = vpop.f32.mrb[0].mxu0
  %v1487 = vadd.f32 0.0, %v1486
  %1488 = vmatprep.mubr.f32.mxu0 0.0
  %1489 = vmatmul.mubr.f32.gmra.mrb[0].mxu0 %v1404
  %v1490 = vpop.f32.mrb[0].mxu0
  %v1491 = vadd.f32 0.0, %v1490
  %v1492 = vpop.f32.mrb[0].mxu0
  %v1493 = vadd.f32 0.0, %v1492
  %1494 = vdwg.mxu0
  %1495 = vmatprep.subr.mxu0 %v1416
  %1496 = vmatpush1.msra.mxu0 %v1413
  %1497 = vmatprep.subr.mxu0 0.0
  %1498 = vmatpush1.msra.mxu0 0.0
  %1499 = vmatprep.subr.mxu0 0.0
  %1500 = vmatpush1.msra.mxu0 0.0
  %1501 = vmatprep.subr.mxu0 0.0
  %1502 = vmatpush1.msra.mxu0 0.0
  %1503 = vmatprep.subr.mxu0 0.0
  %1504 = vmatpush1.msra.mxu0 0.0
  %1505 = vmatprep.subr.mxu0 0.0
  %1506 = vmatpush1.msra.mxu0 0.0
  %1507 = vmatprep.subr.mxu0 0.0
  %1508 = vmatpush1.msra.mxu0 0.0
  %1509 = vmatprep.subr.mxu0 0.0
  %1510 = vmatpush1.msra.mxu0 0.0
  %1511 = vmatprep.subr.mxu0 0.0
  %1512 = vmatpush1.msra.mxu0 0.0
  %1513 = vmatprep.subr.mxu0 0.0
  %1514 = vmatpush1.msra.mxu0 0.0
  %1515 = vmatprep.subr.mxu0 0.0
  %1516 = vmatpush1.msra.mxu0 0.0
  %1517 = vmatprep.subr.mxu0 0.0
  %1518 = vmatpush1.msra.mxu0 0.0
  %1519 = vmatprep.subr.mxu0 0.0
  %1520 = vmatpush1.msra.mxu0 0.0
  %1521 = vmatprep.subr.mxu0 0.0
  %1522 = vmatpush1.msra.mxu0 0.0
  %1523 = vmatprep.subr.mxu0 0.0
  %1524 = vmatpush1.msra.mxu0 0.0
  %1525 = vmatprep.subr.mxu0 0.0
  %1526 = vmatpush1.msra.mxu0 0.0
  %1527 = vmatprep.subr.mxu0 0.0
  %1528 = vmatpush1.msra.mxu0 0.0
  %1529 = vmatprep.subr.mxu0 0.0
  %1530 = vmatpush1.msra.mxu0 0.0
  %1531 = vmatprep.subr.mxu0 0.0
  %1532 = vmatpush1.msra.mxu0 0.0
  %1533 = vmatprep.subr.mxu0 0.0
  %1534 = vmatpush1.msra.mxu0 0.0
  %1535 = vmatprep.subr.mxu0 0.0
  %1536 = vmatpush1.msra.mxu0 0.0
  %1537 = vmatprep.subr.mxu0 0.0
  %1538 = vmatpush1.msra.mxu0 0.0
  %1539 = vmatprep.subr.mxu0 0.0
  %1540 = vmatpush1.msra.mxu0 0.0
  %1541 = vmatprep.subr.mxu0 0.0
  %1542 = vmatpush1.msra.mxu0 0.0
  %1543 = vmatprep.subr.mxu0 0.0
  %1544 = vmatpush1.msra.mxu0 0.0
  %1545 = vmatprep.subr.mxu0 0.0
  %1546 = vmatpush1.msra.mxu0 0.0
  %1547 = vmatprep.subr.mxu0 0.0
  %1548 = vmatpush1.msra.mxu0 0.0
  %1549 = vmatprep.subr.mxu0 0.0
  %1550 = vmatpush1.msra.mxu0 0.0
  %1551 = vmatprep.subr.mxu0 0.0
  %1552 = vmatpush1.msra.mxu0 0.0
  %1553 = vmatprep.subr.mxu0 0.0
  %1554 = vmatpush1.msra.mxu0 0.0
  %1555 = vmatprep.subr.mxu0 0.0
  %1556 = vmatpush1.msra.mxu0 0.0
  %1557 = vmatprep.subr.mxu0 0.0
  %1558 = vmatpush1.msra.mxu0 0.0
  %1559 = vmatprep.mubr.f32.mxu0 0.0
  %1560 = vmatmul.mubr.f32.gmra.mrb[0].mxu0 %v1401
  %v1561 = vpop.f32.mrb[0].mxu0
  %v1562 = vadd.f32 0.0, %v1561
  %v1563 = vpop.f32.mrb[0].mxu0
  %v1564 = vadd.f32 0.0, %v1563
  %1565 = vmatprep.mubr.f32.mxu0 0.0
  %1566 = vmatmul.mubr.f32.gmra.mrb[0].mxu0 %v1404
  %v1567 = vpop.f32.mrb[0].mxu0
  %v1568 = vadd.f32 0.0, %v1567
  %v1569 = vpop.f32.mrb[0].mxu0
  %v1570 = vadd.f32 0.0, %v1569
  %1571 = vdwg.mxu0
  %v1572 = vadd.f32 %v1340, %v1485
  %v1573 = vadd.f32 %v1341, %v1487
  %v1574 = vadd.f32 %v1342, %v1562
  %v1575 = vadd.f32 %v1343, %v1564
  %v1576 = vadd.f32 %v1344, %v1491
  %v1577 = vadd.f32 %v1345, %v1493
  %v1578 = vadd.f32 %v1346, %v1568
  %v1579 = vadd.f32 %v1347, %v1570
  %1580 = vrot.lane.b32.xlu0 %v17, 112
  %v1581 = vpop.permute.xlu0 %1580
  %1582 = vrot.lane.b32.xlu0 %v40, 112
  %v1583 = vpop.permute.xlu0 %1582
  %1584 = vrot.lane.b32.xlu0 %v18, 112
  %v1585 = vpop.permute.xlu0 %1584
  %1586 = vrot.lane.b32.xlu0 %v41, 112
  %v1587 = vpop.permute.xlu0 %1586
  %vm1588 = vcmp.lt.s32.totalorder %v22, 112
  %v1589 = vsel %vm1588, %v1585, %v1587
  %v1590 = vsel %vm1588, %v1583, %v1585
  %v1591 = vsel %vm1588, %v1581, %v1583
  %v1592 = vsel %vm1588, %v1587, %v1581
  %vm1593 = vmand %vm1373, %vm120
  %vm1594 = vmand %vm1374, %vm121
  %vm1595 = vmand %vm1375, %vm122
  %vm1596 = vmand %vm1376, %vm123
  %vm1597 = vmand %vm1593, %vm128
  %vm1598 = vmand %vm1594, %vm129
  %vm1599 = vmand %vm1595, %vm130
  %vm1600 = vmand %vm1596, %vm131
  %v1601 = vsel %vm1597, 1, 0
  %v1602 = vsel %vm1598, 1, 0
  %v1603 = vsel %vm1599, 1, 0
  %v1604 = vsel %vm1600, 1, 0
  %v1605 = vcvt.s32.f32 %v1601
  %v1606 = vcvt.s32.f32 %v1602
  %v1607 = vcvt.s32.f32 %v1603
  %v1608 = vcvt.s32.f32 %v1604
  %v1609 = vmul.f32 %v1591, %v1605
  %v1610 = vmul.f32 %v1590, %v1606
  %v1611 = vmul.f32 %v1589, %v1607
  %v1612 = vmul.f32 %v1592, %v1608
  %s1613 = scalar_lea.vmem %s1, 112
  %v1614 = vld [vmem:[%s1613] sm:$0xff]
  %v1615 = vld [vmem:[%s1613 + $0x8] sm:$0xff]
  %v1617 = vsel %vm151, %v1614, 0
  %v1620 = vsel %vm151, %v1615, 0
  %v1623 = vsel %vm158, %v1609, 0
  %v1626 = vsel %vm158, %v1610, 0
  %v1629 = vsel %vm158, %v1611, 0
  %v1632 = vsel %vm158, %v1612, 0
  %1634 = vmatprep.subr.mxu0 %v1626
  %1635 = vmatpush1.msra.mxu0 %v1623
  %1636 = vmatprep.subr.mxu0 0.0
  %1637 = vmatpush1.msra.mxu0 0.0
  %1638 = vmatprep.subr.mxu0 0.0
  %1639 = vmatpush1.msra.mxu0 0.0
  %1640 = vmatprep.subr.mxu0 0.0
  %1641 = vmatpush1.msra.mxu0 0.0
  %1642 = vmatprep.subr.mxu0 0.0
  %1643 = vmatpush1.msra.mxu0 0.0
  %1644 = vmatprep.subr.mxu0 0.0
  %1645 = vmatpush1.msra.mxu0 0.0
  %1646 = vmatprep.subr.mxu0 0.0
  %1647 = vmatpush1.msra.mxu0 0.0
  %1648 = vmatprep.subr.mxu0 0.0
  %1649 = vmatpush1.msra.mxu0 0.0
  %1650 = vmatprep.subr.mxu0 0.0
  %1651 = vmatpush1.msra.mxu0 0.0
  %1652 = vmatprep.subr.mxu0 0.0
  %1653 = vmatpush1.msra.mxu0 0.0
  %1654 = vmatprep.subr.mxu0 0.0
  %1655 = vmatpush1.msra.mxu0 0.0
  %1656 = vmatprep.subr.mxu0 0.0
  %1657 = vmatpush1.msra.mxu0 0.0
  %1658 = vmatprep.subr.mxu0 0.0
  %1659 = vmatpush1.msra.mxu0 0.0
  %1660 = vmatprep.subr.mxu0 0.0
  %1661 = vmatpush1.msra.mxu0 0.0
  %1662 = vmatprep.subr.mxu0 0.0
  %1663 = vmatpush1.msra.mxu0 0.0
  %1664 = vmatprep.subr.mxu0 0.0
  %1665 = vmatpush1.msra.mxu0 0.0
  %1666 = vmatprep.subr.mxu0 0.0
  %1667 = vmatpush1.msra.mxu0 0.0
  %1668 = vmatprep.subr.mxu0 0.0
  %1669 = vmatpush1.msra.mxu0 0.0
  %1670 = vmatprep.subr.mxu0 0.0
  %1671 = vmatpush1.msra.mxu0 0.0
  %1672 = vmatprep.subr.mxu0 0.0
  %1673 = vmatpush1.msra.mxu0 0.0
  %1674 = vmatprep.subr.mxu0 0.0
  %1675 = vmatpush1.msra.mxu0 0.0
  %1676 = vmatprep.subr.mxu0 0.0
  %1677 = vmatpush1.msra.mxu0 0.0
  %1678 = vmatprep.subr.mxu0 0.0
  %1679 = vmatpush1.msra.mxu0 0.0
  %1680 = vmatprep.subr.mxu0 0.0
  %1681 = vmatpush1.msra.mxu0 0.0
  %1682 = vmatprep.subr.mxu0 0.0
  %1683 = vmatpush1.msra.mxu0 0.0
  %1684 = vmatprep.subr.mxu0 0.0
  %1685 = vmatpush1.msra.mxu0 0.0
  %1686 = vmatprep.subr.mxu0 0.0
  %1687 = vmatpush1.msra.mxu0 0.0
  %1688 = vmatprep.subr.mxu0 0.0
  %1689 = vmatpush1.msra.mxu0 0.0
  %1690 = vmatprep.subr.mxu0 0.0
  %1691 = vmatpush1.msra.mxu0 0.0
  %1692 = vmatprep.subr.mxu0 0.0
  %1693 = vmatpush1.msra.mxu0 0.0
  %1694 = vmatprep.subr.mxu0 0.0
  %1695 = vmatpush1.msra.mxu0 0.0
  %1696 = vmatprep.subr.mxu0 0.0
  %1697 = vmatpush1.msra.mxu0 0.0
  %1698 = vmatprep.mubr.f32.mxu0 0.0
  %1699 = vmatmul.mubr.f32.gmra.mrb[0].mxu0 %v1617
  %v1700 = vpop.f32.mrb[0].mxu0
  %v1701 = vadd.f32 0.0, %v1700
  %v1702 = vpop.f32.mrb[0].mxu0
  %v1703 = vadd.f32 0.0, %v1702
  %1704 = vmatprep.mubr.f32.mxu0 0.0
  %1705 = vmatmul.mubr.f32.gmra.mrb[0].mxu0 %v1620
  %v1706 = vpop.f32.mrb[0].mxu0
  %v1707 = vadd.f32 0.0, %v1706
  %v1708 = vpop.f32.mrb[0].mxu0
  %v1709 = vadd.f32 0.0, %v1708
  %1710 = vdwg.mxu0
  %1711 = vmatprep.subr.mxu0 %v1632
  %1712 = vmatpush1.msra.mxu0 %v1629
  %1713 = vmatprep.subr.mxu0 0.0
  %1714 = vmatpush1.msra.mxu0 0.0
  %1715 = vmatprep.subr.mxu0 0.0
  %1716 = vmatpush1.msra.mxu0 0.0
  %1717 = vmatprep.subr.mxu0 0.0
  %1718 = vmatpush1.msra.mxu0 0.0
  %1719 = vmatprep.subr.mxu0 0.0
  %1720 = vmatpush1.msra.mxu0 0.0
  %1721 = vmatprep.subr.mxu0 0.0
  %1722 = vmatpush1.msra.mxu0 0.0
  %1723 = vmatprep.subr.mxu0 0.0
  %1724 = vmatpush1.msra.mxu0 0.0
  %1725 = vmatprep.subr.mxu0 0.0
  %1726 = vmatpush1.msra.mxu0 0.0
  %1727 = vmatprep.subr.mxu0 0.0
  %1728 = vmatpush1.msra.mxu0 0.0
  %1729 = vmatprep.subr.mxu0 0.0
  %1730 = vmatpush1.msra.mxu0 0.0
  %1731 = vmatprep.subr.mxu0 0.0
  %1732 = vmatpush1.msra.mxu0 0.0
  %1733 = vmatprep.subr.mxu0 0.0
  %1734 = vmatpush1.msra.mxu0 0.0
  %1735 = vmatprep.subr.mxu0 0.0
  %1736 = vmatpush1.msra.mxu0 0.0
  %1737 = vmatprep.subr.mxu0 0.0
  %1738 = vmatpush1.msra.mxu0 0.0
  %1739 = vmatprep.subr.mxu0 0.0
  %1740 = vmatpush1.msra.mxu0 0.0
  %1741 = vmatprep.subr.mxu0 0.0
  %1742 = vmatpush1.msra.mxu0 0.0
  %1743 = vmatprep.subr.mxu0 0.0
  %1744 = vmatpush1.msra.mxu0 0.0
  %1745 = vmatprep.subr.mxu0 0.0
  %1746 = vmatpush1.msra.mxu0 0.0
  %1747 = vmatprep.subr.mxu0 0.0
  %1748 = vmatpush1.msra.mxu0 0.0
  %1749 = vmatprep.subr.mxu0 0.0
  %1750 = vmatpush1.msra.mxu0 0.0
  %1751 = vmatprep.subr.mxu0 0.0
  %1752 = vmatpush1.msra.mxu0 0.0
  %1753 = vmatprep.subr.mxu0 0.0
  %1754 = vmatpush1.msra.mxu0 0.0
  %1755 = vmatprep.subr.mxu0 0.0
  %1756 = vmatpush1.msra.mxu0 0.0
  %1757 = vmatprep.subr.mxu0 0.0
  %1758 = vmatpush1.msra.mxu0 0.0
  %1759 = vmatprep.subr.mxu0 0.0
  %1760 = vmatpush1.msra.mxu0 0.0
  %1761 = vmatprep.subr.mxu0 0.0
  %1762 = vmatpush1.msra.mxu0 0.0
  %1763 = vmatprep.subr.mxu0 0.0
  %1764 = vmatpush1.msra.mxu0 0.0
  %1765 = vmatprep.subr.mxu0 0.0
  %1766 = vmatpush1.msra.mxu0 0.0
  %1767 = vmatprep.subr.mxu0 0.0
  %1768 = vmatpush1.msra.mxu0 0.0
  %1769 = vmatprep.subr.mxu0 0.0
  %1770 = vmatpush1.msra.mxu0 0.0
  %1771 = vmatprep.subr.mxu0 0.0
  %1772 = vmatpush1.msra.mxu0 0.0
  %1773 = vmatprep.subr.mxu0 0.0
  %1774 = vmatpush1.msra.mxu0 0.0
  %1775 = vmatprep.mubr.f32.mxu0 0.0
  %1776 = vmatmul.mubr.f32.gmra.mrb[0].mxu0 %v1617
  %v1777 = vpop.f32.mrb[0].mxu0
  %v1778 = vadd.f32 0.0, %v1777
  %v1779 = vpop.f32.mrb[0].mxu0
  %v1780 = vadd.f32 0.0, %v1779
  %1781 = vmatprep.mubr.f32.mxu0 0.0
  %1782 = vmatmul.mubr.f32.gmra.mrb[0].mxu0 %v1620
  %v1783 = vpop.f32.mrb[0].mxu0
  %v1784 = vadd.f32 0.0, %v1783
  %v1785 = vpop.f32.mrb[0].mxu0
  %v1786 = vadd.f32 0.0, %v1785
  %1787 = vdwg.mxu0
  %v1788 = vadd.f32 %v1572, %v1701
  %v1789 = vadd.f32 %v1573, %v1703
  %v1790 = vadd.f32 %v1574, %v1778
  %v1791 = vadd.f32 %v1575, %v1780
  %v1792 = vadd.f32 %v1576, %v1707
  %v1793 = vadd.f32 %v1577, %v1709
  %v1794 = vadd.f32 %v1578, %v1784
  %v1795 = vadd.f32 %v1579, %v1786
  %1796 = vrot.lane.b32.xlu0 %v17, 111
  %v1797 = vpop.permute.xlu0 %1796
  %1798 = vrot.lane.b32.xlu0 %v40, 111
  %v1799 = vpop.permute.xlu0 %1798
  %1800 = vrot.lane.b32.xlu0 %v18, 111
  %v1801 = vpop.permute.xlu0 %1800
  %1802 = vrot.lane.b32.xlu0 %v41, 111
  %v1803 = vpop.permute.xlu0 %1802
  %vm1804 = vcmp.lt.s32.totalorder %v22, 111
  %v1805 = vsel %vm1804, %v1801, %v1803
  %v1806 = vsel %vm1804, %v1799, %v1801
  %v1807 = vsel %vm1804, %v1797, %v1799
  %v1808 = vsel %vm1804, %v1803, %v1797
  %vm1809 = vmand %vm1373, %vm514
  %vm1810 = vmand %vm1374, %vm515
  %vm1811 = vmand %vm1375, %vm516
  %vm1812 = vmand %vm1376, %vm517
  %vm1813 = vmand %vm1809, %vm522
  %vm1814 = vmand %vm1810, %vm523
  %vm1815 = vmand %vm1811, %vm524
  %vm1816 = vmand %vm1812, %vm525
  %v1817 = vsel %vm1813, 1, 0
  %v1818 = vsel %vm1814, 1, 0
  %v1819 = vsel %vm1815, 1, 0
  %v1820 = vsel %vm1816, 1, 0
  %v1821 = vcvt.s32.f32 %v1817
  %v1822 = vcvt.s32.f32 %v1818
  %v1823 = vcvt.s32.f32 %v1819
  %v1824 = vcvt.s32.f32 %v1820
  %v1825 = vmul.f32 %v1807, %v1821
  %v1826 = vmul.f32 %v1806, %v1822
  %v1827 = vmul.f32 %v1805, %v1823
  %v1828 = vmul.f32 %v1808, %v1824
  %s1829 = scalar_lea.vmem %s1, 128
  %v1830 = vld [vmem:[%s1829] sm:$0xff]
  %v1831 = vld [vmem:[%s1829 + $0x8] sm:$0xff]
  %v1833 = vsel %vm151, %v1830, 0
  %v1836 = vsel %vm151, %v1831, 0
  %v1839 = vsel %vm158, %v1825, 0
  %v1842 = vsel %vm158, %v1826, 0
  %v1845 = vsel %vm158, %v1827, 0
  %v1848 = vsel %vm158, %v1828, 0
  %1850 = vmatprep.subr.mxu0 %v1842
  %1851 = vmatpush1.msra.mxu0 %v1839
  %1852 = vmatprep.subr.mxu0 0.0
  %1853 = vmatpush1.msra.mxu0 0.0
  %1854 = vmatprep.subr.mxu0 0.0
  %1855 = vmatpush1.msra.mxu0 0.0
  %1856 = vmatprep.subr.mxu0 0.0
  %1857 = vmatpush1.msra.mxu0 0.0
  %1858 = vmatprep.subr.mxu0 0.0
  %1859 = vmatpush1.msra.mxu0 0.0
  %1860 = vmatprep.subr.mxu0 0.0
  %1861 = vmatpush1.msra.mxu0 0.0
  %1862 = vmatprep.subr.mxu0 0.0
  %1863 = vmatpush1.msra.mxu0 0.0
  %1864 = vmatprep.subr.mxu0 0.0
  %1865 = vmatpush1.msra.mxu0 0.0
  %1866 = vmatprep.subr.mxu0 0.0
  %1867 = vmatpush1.msra.mxu0 0.0
  %1868 = vmatprep.subr.mxu0 0.0
  %1869 = vmatpush1.msra.mxu0 0.0
  %1870 = vmatprep.subr.mxu0 0.0
  %1871 = vmatpush1.msra.mxu0 0.0
  %1872 = vmatprep.subr.mxu0 0.0
  %1873 = vmatpush1.msra.mxu0 0.0
  %1874 = vmatprep.subr.mxu0 0.0
  %1875 = vmatpush1.msra.mxu0 0.0
  %1876 = vmatprep.subr.mxu0 0.0
  %1877 = vmatpush1.msra.mxu0 0.0
  %1878 = vmatprep.subr.mxu0 0.0
  %1879 = vmatpush1.msra.mxu0 0.0
  %1880 = vmatprep.subr.mxu0 0.0
  %1881 = vmatpush1.msra.mxu0 0.0
  %1882 = vmatprep.subr.mxu0 0.0
  %1883 = vmatpush1.msra.mxu0 0.0
  %1884 = vmatprep.subr.mxu0 0.0
  %1885 = vmatpush1.msra.mxu0 0.0
  %1886 = vmatprep.subr.mxu0 0.0
  %1887 = vmatpush1.msra.mxu0 0.0
  %1888 = vmatprep.subr.mxu0 0.0
  %1889 = vmatpush1.msra.mxu0 0.0
  %1890 = vmatprep.subr.mxu0 0.0
  %1891 = vmatpush1.msra.mxu0 0.0
  %1892 = vmatprep.subr.mxu0 0.0
  %1893 = vmatpush1.msra.mxu0 0.0
  %1894 = vmatprep.subr.mxu0 0.0
  %1895 = vmatpush1.msra.mxu0 0.0
  %1896 = vmatprep.subr.mxu0 0.0
  %1897 = vmatpush1.msra.mxu0 0.0
  %1898 = vmatprep.subr.mxu0 0.0
  %1899 = vmatpush1.msra.mxu0 0.0
  %1900 = vmatprep.subr.mxu0 0.0
  %1901 = vmatpush1.msra.mxu0 0.0
  %1902 = vmatprep.subr.mxu0 0.0
  %1903 = vmatpush1.msra.mxu0 0.0
  %1904 = vmatprep.subr.mxu0 0.0
  %1905 = vmatpush1.msra.mxu0 0.0
  %1906 = vmatprep.subr.mxu0 0.0
  %1907 = vmatpush1.msra.mxu0 0.0
  %1908 = vmatprep.subr.mxu0 0.0
  %1909 = vmatpush1.msra.mxu0 0.0
  %1910 = vmatprep.subr.mxu0 0.0
  %1911 = vmatpush1.msra.mxu0 0.0
  %1912 = vmatprep.subr.mxu0 0.0
  %1913 = vmatpush1.msra.mxu0 0.0
  %1914 = vmatprep.mubr.f32.mxu0 0.0
  %1915 = vmatmul.mubr.f32.gmra.mrb[0].mxu0 %v1833
  %v1916 = vpop.f32.mrb[0].mxu0
  %v1917 = vadd.f32 0.0, %v1916
  %v1918 = vpop.f32.mrb[0].mxu0
  %v1919 = vadd.f32 0.0, %v1918
  %1920 = vmatprep.mubr.f32.mxu0 0.0
  %1921 = vmatmul.mubr.f32.gmra.mrb[0].mxu0 %v1836
  %v1922 = vpop.f32.mrb[0].mxu0
  %v1923 = vadd.f32 0.0, %v1922
  %v1924 = vpop.f32.mrb[0].mxu0
  %v1925 = vadd.f32 0.0, %v1924
  %1926 = vdwg.mxu0
  %1927 = vmatprep.subr.mxu0 %v1848
  %1928 = vmatpush1.msra.mxu0 %v1845
  %1929 = vmatprep.subr.mxu0 0.0
  %1930 = vmatpush1.msra.mxu0 0.0
  %1931 = vmatprep.subr.mxu0 0.0
  %1932 = vmatpush1.msra.mxu0 0.0
  %1933 = vmatprep.subr.mxu0 0.0
  %1934 = vmatpush1.msra.mxu0 0.0
  %1935 = vmatprep.subr.mxu0 0.0
  %1936 = vmatpush1.msra.mxu0 0.0
  %1937 = vmatprep.subr.mxu0 0.0
  %1938 = vmatpush1.msra.mxu0 0.0
  %1939 = vmatprep.subr.mxu0 0.0
  %1940 = vmatpush1.msra.mxu0 0.0
  %1941 = vmatprep.subr.mxu0 0.0
  %1942 = vmatpush1.msra.mxu0 0.0
  %1943 = vmatprep.subr.mxu0 0.0
  %1944 = vmatpush1.msra.mxu0 0.0
  %1945 = vmatprep.subr.mxu0 0.0
  %1946 = vmatpush1.msra.mxu0 0.0
  %1947 = vmatprep.subr.mxu0 0.0
  %1948 = vmatpush1.msra.mxu0 0.0
  %1949 = vmatprep.subr.mxu0 0.0
  %1950 = vmatpush1.msra.mxu0 0.0
  %1951 = vmatprep.subr.mxu0 0.0
  %1952 = vmatpush1.msra.mxu0 0.0
  %1953 = vmatprep.subr.mxu0 0.0
  %1954 = vmatpush1.msra.mxu0 0.0
  %1955 = vmatprep.subr.mxu0 0.0
  %1956 = vmatpush1.msra.mxu0 0.0
  %1957 = vmatprep.subr.mxu0 0.0
  %1958 = vmatpush1.msra.mxu0 0.0
  %1959 = vmatprep.subr.mxu0 0.0
  %1960 = vmatpush1.msra.mxu0 0.0
  %1961 = vmatprep.subr.mxu0 0.0
  %1962 = vmatpush1.msra.mxu0 0.0
  %1963 = vmatprep.subr.mxu0 0.0
  %1964 = vmatpush1.msra.mxu0 0.0
  %1965 = vmatprep.subr.mxu0 0.0
  %1966 = vmatpush1.msra.mxu0 0.0
  %1967 = vmatprep.subr.mxu0 0.0
  %1968 = vmatpush1.msra.mxu0 0.0
  %1969 = vmatprep.subr.mxu0 0.0
  %1970 = vmatpush1.msra.mxu0 0.0
  %1971 = vmatprep.subr.mxu0 0.0
  %1972 = vmatpush1.msra.mxu0 0.0
  %1973 = vmatprep.subr.mxu0 0.0
  %1974 = vmatpush1.msra.mxu0 0.0
  %1975 = vmatprep.subr.mxu0 0.0
  %1976 = vmatpush1.msra.mxu0 0.0
  %1977 = vmatprep.subr.mxu0 0.0
  %1978 = vmatpush1.msra.mxu0 0.0
  %1979 = vmatprep.subr.mxu0 0.0
  %1980 = vmatpush1.msra.mxu0 0.0
  %1981 = vmatprep.subr.mxu0 0.0
  %1982 = vmatpush1.msra.mxu0 0.0
  %1983 = vmatprep.subr.mxu0 0.0
  %1984 = vmatpush1.msra.mxu0 0.0
  %1985 = vmatprep.subr.mxu0 0.0
  %1986 = vmatpush1.msra.mxu0 0.0
  %1987 = vmatprep.subr.mxu0 0.0
  %1988 = vmatpush1.msra.mxu0 0.0
  %1989 = vmatprep.subr.mxu0 0.0
  %1990 = vmatpush1.msra.mxu0 0.0
  %1991 = vmatprep.mubr.f32.mxu0 0.0
  %1992 = vmatmul.mubr.f32.gmra.mrb[0].mxu0 %v1833
  %v1993 = vpop.f32.mrb[0].mxu0
  %v1994 = vadd.f32 0.0, %v1993
  %v1995 = vpop.f32.mrb[0].mxu0
  %v1996 = vadd.f32 0.0, %v1995
  %1997 = vmatprep.mubr.f32.mxu0 0.0
  %1998 = vmatmul.mubr.f32.gmra.mrb[0].mxu0 %v1836
  %v1999 = vpop.f32.mrb[0].mxu0
  %v2000 = vadd.f32 0.0, %v1999
  %v2001 = vpop.f32.mrb[0].mxu0
  %v2002 = vadd.f32 0.0, %v2001
  %2003 = vdwg.mxu0
  %v2004 = vadd.f32 %v1788, %v1917
  %v2005 = vadd.f32 %v1789, %v1919
  %v2006 = vadd.f32 %v1790, %v1994
  %v2007 = vadd.f32 %v1791, %v1996
  %v2008 = vadd.f32 %v1792, %v1923
  %v2009 = vadd.f32 %v1793, %v1925
  %v2010 = vadd.f32 %v1794, %v2000
  %v2011 = vadd.f32 %v1795, %v2002
  %2013 = vset.pattern.permute.xlu0 0
  %2014 = vperm.xlu0 %2013, %v19
  %v2015 = vpop.permute.xlu0 %2014
  %2018 = vset.pattern.permute.xlu0 0
  %2019 = vperm.xlu0 %2018, %v20
  %v2020 = vpop.permute.xlu0 %2019
  %v2022 = vadd.f32 %v2004, %v2015
  %v2023 = vadd.f32 %v2005, %v2015
  %v2024 = vadd.f32 %v2006, %v2015
  %v2025 = vadd.f32 %v2007, %v2015
  %v2026 = vadd.f32 %v2008, %v2020
  %v2027 = vadd.f32 %v2009, %v2020
  %v2028 = vadd.f32 %v2010, %v2020
  %v2029 = vadd.f32 %v2011, %v2020
  %vm2030 = vcmp.ge.f32.partialorder %v2022, 1.0
  %vm2031 = vcmp.ge.f32.partialorder %v2023, 1.0
  %vm2032 = vcmp.ge.f32.partialorder %v2024, 1.0
  %vm2033 = vcmp.ge.f32.partialorder %v2025, 1.0
  %v2034 = vsel %vm2030, 1, 0
  %v2035 = vsel %vm2031, 1, 0
  %v2036 = vsel %vm2032, 1, 0
  %v2037 = vsel %vm2033, 1, 0
  %v2038 = vcvt.s32.f32 %v2034
  %v2039 = vcvt.s32.f32 %v2035
  %v2040 = vcvt.s32.f32 %v2036
  %v2041 = vcvt.s32.f32 %v2037
  %vm2042 = vcmp.ge.f32.partialorder %v2026, 1.0
  %vm2043 = vcmp.ge.f32.partialorder %v2027, 1.0
  %vm2044 = vcmp.ge.f32.partialorder %v2028, 1.0
  %vm2045 = vcmp.ge.f32.partialorder %v2029, 1.0
  %v2046 = vsel %vm2042, 1, 0
  %v2047 = vsel %vm2043, 1, 0
  %v2048 = vsel %vm2044, 1, 0
  %v2049 = vsel %vm2045, 1, 0
  %v2050 = vcvt.s32.f32 %v2046
  %v2051 = vcvt.s32.f32 %v2047
  %v2052 = vcvt.s32.f32 %v2048
  %v2053 = vcvt.s32.f32 %v2049
  %2054 = vrot.lane.b32.xlu0 %v2038, 17
  %v2055 = vpop.permute.xlu0 %2054
  %2056 = vrot.lane.b32.xlu0 %v2039, 17
  %v2057 = vpop.permute.xlu0 %2056
  %2058 = vrot.lane.b32.xlu0 %v2040, 17
  %v2059 = vpop.permute.xlu0 %2058
  %2060 = vrot.lane.b32.xlu0 %v2041, 17
  %v2061 = vpop.permute.xlu0 %2060
  %v2062 = vsel %vm52, %v2059, %v2061
  %v2063 = vsel %vm52, %v2057, %v2059
  %v2064 = vsel %vm52, %v2055, %v2057
  %v2065 = vsel %vm52, %v2061, %v2055
  %v2066 = vmul.f32 %v2065, %v97
  %v2067 = vmul.f32 %v2064, %v98
  %v2068 = vmul.f32 %v2063, %v99
  %v2069 = vmul.f32 %v2062, %v100
  %v2070 = vld [vmem:[%s2] sm:$0xff]
  %2071 = vrot.lane.b32.xlu0 %v2038, 16
  %v2072 = vpop.permute.xlu0 %2071
  %2073 = vrot.lane.b32.xlu0 %v2039, 16
  %v2074 = vpop.permute.xlu0 %2073
  %2075 = vrot.lane.b32.xlu0 %v2040, 16
  %v2076 = vpop.permute.xlu0 %2075
  %2077 = vrot.lane.b32.xlu0 %v2041, 16
  %v2078 = vpop.permute.xlu0 %2077
  %v2079 = vsel %vm115, %v2076, %v2078
  %v2080 = vsel %vm115, %v2074, %v2076
  %v2081 = vsel %vm115, %v2072, %v2074
  %v2082 = vsel %vm115, %v2078, %v2072
  %v2083 = vmul.f32 %v2082, %v140
  %v2084 = vmul.f32 %v2081, %v141
  %v2085 = vmul.f32 %v2080, %v142
  %v2086 = vmul.f32 %v2079, %v143
  %s2087 = scalar_lea.vmem %s2, 8
  %v2088 = vld [vmem:[%s2087] sm:$0xff]
  %vm2089 = vcmask 64512
  %v2091 = vsel %vm2089, %v2088, 0
  %2093 = vmatprep.subr.mxu0 %v2084
  %2094 = vmatpush1.msra.mxu0 %v2083
  %2095 = vmatprep.subr.mxu0 0.0
  %2096 = vmatpush1.msra.mxu0 0.0
  %2097 = vmatprep.subr.mxu0 0.0
  %2098 = vmatpush1.msra.mxu0 0.0
  %2099 = vmatprep.subr.mxu0 0.0
  %2100 = vmatpush1.msra.mxu0 0.0
  %2101 = vmatprep.subr.mxu0 0.0
  %2102 = vmatpush1.msra.mxu0 0.0
  %2103 = vmatprep.subr.mxu0 0.0
  %2104 = vmatpush1.msra.mxu0 0.0
  %2105 = vmatprep.subr.mxu0 0.0
  %2106 = vmatpush1.msra.mxu0 0.0
  %2107 = vmatprep.subr.mxu0 0.0
  %2108 = vmatpush1.msra.mxu0 0.0
  %2109 = vmatprep.subr.mxu0 0.0
  %2110 = vmatpush1.msra.mxu0 0.0
  %2111 = vmatprep.subr.mxu0 0.0
  %2112 = vmatpush1.msra.mxu0 0.0
  %2113 = vmatprep.subr.mxu0 0.0
  %2114 = vmatpush1.msra.mxu0 0.0
  %2115 = vmatprep.subr.mxu0 0.0
  %2116 = vmatpush1.msra.mxu0 0.0
  %2117 = vmatprep.subr.mxu0 0.0
  %2118 = vmatpush1.msra.mxu0 0.0
  %2119 = vmatprep.subr.mxu0 0.0
  %2120 = vmatpush1.msra.mxu0 0.0
  %2121 = vmatprep.subr.mxu0 0.0
  %2122 = vmatpush1.msra.mxu0 0.0
  %2123 = vmatprep.subr.mxu0 0.0
  %2124 = vmatpush1.msra.mxu0 0.0
  %2125 = vmatprep.subr.mxu0 0.0
  %2126 = vmatpush1.msra.mxu0 0.0
  %2127 = vmatprep.subr.mxu0 0.0
  %2128 = vmatpush1.msra.mxu0 0.0
  %2129 = vmatprep.subr.mxu0 0.0
  %2130 = vmatpush1.msra.mxu0 0.0
  %2131 = vmatprep.subr.mxu0 0.0
  %2132 = vmatpush1.msra.mxu0 0.0
  %2133 = vmatprep.subr.mxu0 0.0
  %2134 = vmatpush1.msra.mxu0 0.0
  %2135 = vmatprep.subr.mxu0 0.0
  %2136 = vmatpush1.msra.mxu0 0.0
  %2137 = vmatprep.subr.mxu0 0.0
  %2138 = vmatpush1.msra.mxu0 0.0
  %2139 = vmatprep.subr.mxu0 0.0
  %2140 = vmatpush1.msra.mxu0 0.0
  %2141 = vmatprep.subr.mxu0 0.0
  %2142 = vmatpush1.msra.mxu0 0.0
  %2143 = vmatprep.subr.mxu0 0.0
  %2144 = vmatpush1.msra.mxu0 0.0
  %2145 = vmatprep.subr.mxu0 0.0
  %2146 = vmatpush1.msra.mxu0 0.0
  %2147 = vmatprep.subr.mxu0 0.0
  %2148 = vmatpush1.msra.mxu0 0.0
  %2149 = vmatprep.subr.mxu0 0.0
  %2150 = vmatpush1.msra.mxu0 0.0
  %2151 = vmatprep.subr.mxu0 0.0
  %2152 = vmatpush1.msra.mxu0 0.0
  %2153 = vmatprep.subr.mxu0 0.0
  %2154 = vmatpush1.msra.mxu0 0.0
  %2155 = vmatprep.subr.mxu0 0.0
  %2156 = vmatpush1.msra.mxu0 0.0
  %2157 = vmatprep.mubr.f32.mxu0 0.0
  %2158 = vmatmul.mubr.f32.gmra.mrb[0].mxu0 %v2091
  %v2159 = vpop.f32.mrb[0].mxu0
  %v2160 = vadd.f32 0.0, %v2159
  %v2161 = vpop.f32.mrb[0].mxu0
  %v2162 = vadd.f32 0.0, %v2161
  %2163 = vdwg.mxu0
  %2164 = vmatprep.subr.mxu0 %v2086
  %2165 = vmatpush1.msra.mxu0 %v2085
  %2166 = vmatprep.subr.mxu0 0.0
  %2167 = vmatpush1.msra.mxu0 0.0
  %2168 = vmatprep.subr.mxu0 0.0
  %2169 = vmatpush1.msra.mxu0 0.0
  %2170 = vmatprep.subr.mxu0 0.0
  %2171 = vmatpush1.msra.mxu0 0.0
  %2172 = vmatprep.subr.mxu0 0.0
  %2173 = vmatpush1.msra.mxu0 0.0
  %2174 = vmatprep.subr.mxu0 0.0
  %2175 = vmatpush1.msra.mxu0 0.0
  %2176 = vmatprep.subr.mxu0 0.0
  %2177 = vmatpush1.msra.mxu0 0.0
  %2178 = vmatprep.subr.mxu0 0.0
  %2179 = vmatpush1.msra.mxu0 0.0
  %2180 = vmatprep.subr.mxu0 0.0
  %2181 = vmatpush1.msra.mxu0 0.0
  %2182 = vmatprep.subr.mxu0 0.0
  %2183 = vmatpush1.msra.mxu0 0.0
  %2184 = vmatprep.subr.mxu0 0.0
  %2185 = vmatpush1.msra.mxu0 0.0
  %2186 = vmatprep.subr.mxu0 0.0
  %2187 = vmatpush1.msra.mxu0 0.0
  %2188 = vmatprep.subr.mxu0 0.0
  %2189 = vmatpush1.msra.mxu0 0.0
  %2190 = vmatprep.subr.mxu0 0.0
  %2191 = vmatpush1.msra.mxu0 0.0
  %2192 = vmatprep.subr.mxu0 0.0
  %2193 = vmatpush1.msra.mxu0 0.0
  %2194 = vmatprep.subr.mxu0 0.0
  %2195 = vmatpush1.msra.mxu0 0.0
  %2196 = vmatprep.subr.mxu0 0.0
  %2197 = vmatpush1.msra.mxu0 0.0
  %2198 = vmatprep.subr.mxu0 0.0
  %2199 = vmatpush1.msra.mxu0 0.0
  %2200 = vmatprep.subr.mxu0 0.0
  %2201 = vmatpush1.msra.mxu0 0.0
  %2202 = vmatprep.subr.mxu0 0.0
  %2203 = vmatpush1.msra.mxu0 0.0
  %2204 = vmatprep.subr.mxu0 0.0
  %2205 = vmatpush1.msra.mxu0 0.0
  %2206 = vmatprep.subr.mxu0 0.0
  %2207 = vmatpush1.msra.mxu0 0.0
  %2208 = vmatprep.subr.mxu0 0.0
  %2209 = vmatpush1.msra.mxu0 0.0
  %2210 = vmatprep.subr.mxu0 0.0
  %2211 = vmatpush1.msra.mxu0 0.0
  %2212 = vmatprep.subr.mxu0 0.0
  %2213 = vmatpush1.msra.mxu0 0.0
  %2214 = vmatprep.subr.mxu0 0.0
  %2215 = vmatpush1.msra.mxu0 0.0
  %2216 = vmatprep.subr.mxu0 0.0
  %2217 = vmatpush1.msra.mxu0 0.0
  %2218 = vmatprep.subr.mxu0 0.0
  %2219 = vmatpush1.msra.mxu0 0.0
  %2220 = vmatprep.subr.mxu0 0.0
  %2221 = vmatpush1.msra.mxu0 0.0
  %2222 = vmatprep.subr.mxu0 0.0
  %2223 = vmatpush1.msra.mxu0 0.0
  %2224 = vmatprep.subr.mxu0 0.0
  %2225 = vmatpush1.msra.mxu0 0.0
  %2226 = vmatprep.subr.mxu0 0.0
  %2227 = vmatpush1.msra.mxu0 0.0
  %2228 = vmatprep.mubr.f32.mxu0 0.0
  %2229 = vmatmul.mubr.f32.gmra.mrb[0].mxu0 %v2091
  %v2230 = vpop.f32.mrb[0].mxu0
  %v2231 = vadd.f32 0.0, %v2230
  %v2232 = vpop.f32.mrb[0].mxu0
  %v2233 = vadd.f32 0.0, %v2232
  %2234 = vdwg.mxu0
  %v2236 = vsel %vm2089, %v2070, 0
  %2238 = vmatprep.subr.mxu0 %v2067
  %2239 = vmatpush1.msra.mxu0 %v2066
  %2240 = vmatprep.subr.mxu0 0.0
  %2241 = vmatpush1.msra.mxu0 0.0
  %2242 = vmatprep.subr.mxu0 0.0
  %2243 = vmatpush1.msra.mxu0 0.0
  %2244 = vmatprep.subr.mxu0 0.0
  %2245 = vmatpush1.msra.mxu0 0.0
  %2246 = vmatprep.subr.mxu0 0.0
  %2247 = vmatpush1.msra.mxu0 0.0
  %2248 = vmatprep.subr.mxu0 0.0
  %2249 = vmatpush1.msra.mxu0 0.0
  %2250 = vmatprep.subr.mxu0 0.0
  %2251 = vmatpush1.msra.mxu0 0.0
  %2252 = vmatprep.subr.mxu0 0.0
  %2253 = vmatpush1.msra.mxu0 0.0
  %2254 = vmatprep.subr.mxu0 0.0
  %2255 = vmatpush1.msra.mxu0 0.0
  %2256 = vmatprep.subr.mxu0 0.0
  %2257 = vmatpush1.msra.mxu0 0.0
  %2258 = vmatprep.subr.mxu0 0.0
  %2259 = vmatpush1.msra.mxu0 0.0
  %2260 = vmatprep.subr.mxu0 0.0
  %2261 = vmatpush1.msra.mxu0 0.0
  %2262 = vmatprep.subr.mxu0 0.0
  %2263 = vmatpush1.msra.mxu0 0.0
  %2264 = vmatprep.subr.mxu0 0.0
  %2265 = vmatpush1.msra.mxu0 0.0
  %2266 = vmatprep.subr.mxu0 0.0
  %2267 = vmatpush1.msra.mxu0 0.0
  %2268 = vmatprep.subr.mxu0 0.0
  %2269 = vmatpush1.msra.mxu0 0.0
  %2270 = vmatprep.subr.mxu0 0.0
  %2271 = vmatpush1.msra.mxu0 0.0
  %2272 = vmatprep.subr.mxu0 0.0
  %2273 = vmatpush1.msra.mxu0 0.0
  %2274 = vmatprep.subr.mxu0 0.0
  %2275 = vmatpush1.msra.mxu0 0.0
  %2276 = vmatprep.subr.mxu0 0.0
  %2277 = vmatpush1.msra.mxu0 0.0
  %2278 = vmatprep.subr.mxu0 0.0
  %2279 = vmatpush1.msra.mxu0 0.0
  %2280 = vmatprep.subr.mxu0 0.0
  %2281 = vmatpush1.msra.mxu0 0.0
  %2282 = vmatprep.subr.mxu0 0.0
  %2283 = vmatpush1.msra.mxu0 0.0
  %2284 = vmatprep.subr.mxu0 0.0
  %2285 = vmatpush1.msra.mxu0 0.0
  %2286 = vmatprep.subr.mxu0 0.0
  %2287 = vmatpush1.msra.mxu0 0.0
  %2288 = vmatprep.subr.mxu0 0.0
  %2289 = vmatpush1.msra.mxu0 0.0
  %2290 = vmatprep.subr.mxu0 0.0
  %2291 = vmatpush1.msra.mxu0 0.0
  %2292 = vmatprep.subr.mxu0 0.0
  %2293 = vmatpush1.msra.mxu0 0.0
  %2294 = vmatprep.subr.mxu0 0.0
  %2295 = vmatpush1.msra.mxu0 0.0
  %2296 = vmatprep.subr.mxu0 0.0
  %2297 = vmatpush1.msra.mxu0 0.0
  %2298 = vmatprep.subr.mxu0 0.0
  %2299 = vmatpush1.msra.mxu0 0.0
  %2300 = vmatprep.subr.mxu0 0.0
  %2301 = vmatpush1.msra.mxu0 0.0
  %2302 = vmatprep.mubr.f32.mxu0 0.0
  %2303 = vmatmul.mubr.f32.gmra.mrb[0].mxu0 %v2236
  %v2304 = vpop.f32.mrb[0].mxu0
  %v2305 = vadd.f32 %v2160, %v2304
  %v2306 = vpop.f32.mrb[0].mxu0
  %v2307 = vadd.f32 %v2162, %v2306
  %2308 = vdwg.mxu0
  %2309 = vmatprep.subr.mxu0 %v2069
  %2310 = vmatpush1.msra.mxu0 %v2068
  %2311 = vmatprep.subr.mxu0 0.0
  %2312 = vmatpush1.msra.mxu0 0.0
  %2313 = vmatprep.subr.mxu0 0.0
  %2314 = vmatpush1.msra.mxu0 0.0
  %2315 = vmatprep.subr.mxu0 0.0
  %2316 = vmatpush1.msra.mxu0 0.0
  %2317 = vmatprep.subr.mxu0 0.0
  %2318 = vmatpush1.msra.mxu0 0.0
  %2319 = vmatprep.subr.mxu0 0.0
  %2320 = vmatpush1.msra.mxu0 0.0
  %2321 = vmatprep.subr.mxu0 0.0
  %2322 = vmatpush1.msra.mxu0 0.0
  %2323 = vmatprep.subr.mxu0 0.0
  %2324 = vmatpush1.msra.mxu0 0.0
  %2325 = vmatprep.subr.mxu0 0.0
  %2326 = vmatpush1.msra.mxu0 0.0
  %2327 = vmatprep.subr.mxu0 0.0
  %2328 = vmatpush1.msra.mxu0 0.0
  %2329 = vmatprep.subr.mxu0 0.0
  %2330 = vmatpush1.msra.mxu0 0.0
  %2331 = vmatprep.subr.mxu0 0.0
  %2332 = vmatpush1.msra.mxu0 0.0
  %2333 = vmatprep.subr.mxu0 0.0
  %2334 = vmatpush1.msra.mxu0 0.0
  %2335 = vmatprep.subr.mxu0 0.0
  %2336 = vmatpush1.msra.mxu0 0.0
  %2337 = vmatprep.subr.mxu0 0.0
  %2338 = vmatpush1.msra.mxu0 0.0
  %2339 = vmatprep.subr.mxu0 0.0
  %2340 = vmatpush1.msra.mxu0 0.0
  %2341 = vmatprep.subr.mxu0 0.0
  %2342 = vmatpush1.msra.mxu0 0.0
  %2343 = vmatprep.subr.mxu0 0.0
  %2344 = vmatpush1.msra.mxu0 0.0
  %2345 = vmatprep.subr.mxu0 0.0
  %2346 = vmatpush1.msra.mxu0 0.0
  %2347 = vmatprep.subr.mxu0 0.0
  %2348 = vmatpush1.msra.mxu0 0.0
  %2349 = vmatprep.subr.mxu0 0.0
  %2350 = vmatpush1.msra.mxu0 0.0
  %2351 = vmatprep.subr.mxu0 0.0
  %2352 = vmatpush1.msra.mxu0 0.0
  %2353 = vmatprep.subr.mxu0 0.0
  %2354 = vmatpush1.msra.mxu0 0.0
  %2355 = vmatprep.subr.mxu0 0.0
  %2356 = vmatpush1.msra.mxu0 0.0
  %2357 = vmatprep.subr.mxu0 0.0
  %2358 = vmatpush1.msra.mxu0 0.0
  %2359 = vmatprep.subr.mxu0 0.0
  %2360 = vmatpush1.msra.mxu0 0.0
  %2361 = vmatprep.subr.mxu0 0.0
  %2362 = vmatpush1.msra.mxu0 0.0
  %2363 = vmatprep.subr.mxu0 0.0
  %2364 = vmatpush1.msra.mxu0 0.0
  %2365 = vmatprep.subr.mxu0 0.0
  %2366 = vmatpush1.msra.mxu0 0.0
  %2367 = vmatprep.subr.mxu0 0.0
  %2368 = vmatpush1.msra.mxu0 0.0
  %2369 = vmatprep.subr.mxu0 0.0
  %2370 = vmatpush1.msra.mxu0 0.0
  %2371 = vmatprep.subr.mxu0 0.0
  %2372 = vmatpush1.msra.mxu0 0.0
  %2373 = vmatprep.mubr.f32.mxu0 0.0
  %2374 = vmatmul.mubr.f32.gmra.mrb[0].mxu0 %v2236
  %v2375 = vpop.f32.mrb[0].mxu0
  %v2376 = vadd.f32 %v2231, %v2375
  %v2377 = vpop.f32.mrb[0].mxu0
  %v2378 = vadd.f32 %v2233, %v2377
  %2379 = vdwg.mxu0
  %2380 = vrot.lane.b32.xlu0 %v2038, 15
  %v2381 = vpop.permute.xlu0 %2380
  %2382 = vrot.lane.b32.xlu0 %v2039, 15
  %v2383 = vpop.permute.xlu0 %2382
  %2384 = vrot.lane.b32.xlu0 %v2040, 15
  %v2385 = vpop.permute.xlu0 %2384
  %2386 = vrot.lane.b32.xlu0 %v2041, 15
  %v2387 = vpop.permute.xlu0 %2386
  %v2388 = vsel %vm505, %v2385, %v2387
  %v2389 = vsel %vm505, %v2383, %v2385
  %v2390 = vsel %vm505, %v2381, %v2383
  %v2391 = vsel %vm505, %v2387, %v2381
  %v2392 = vmul.f32 %v2391, %v534
  %v2393 = vmul.f32 %v2390, %v535
  %v2394 = vmul.f32 %v2389, %v536
  %v2395 = vmul.f32 %v2388, %v537
  %s2396 = scalar_lea.vmem %s2, 16
  %v2397 = vld [vmem:[%s2396] sm:$0xff]
  %v2399 = vsel %vm2089, %v2397, 0
  %2401 = vmatprep.subr.mxu0 %v2393
  %2402 = vmatpush1.msra.mxu0 %v2392
  %2403 = vmatprep.subr.mxu0 0.0
  %2404 = vmatpush1.msra.mxu0 0.0
  %2405 = vmatprep.subr.mxu0 0.0
  %2406 = vmatpush1.msra.mxu0 0.0
  %2407 = vmatprep.subr.mxu0 0.0
  %2408 = vmatpush1.msra.mxu0 0.0
  %2409 = vmatprep.subr.mxu0 0.0
  %2410 = vmatpush1.msra.mxu0 0.0
  %2411 = vmatprep.subr.mxu0 0.0
  %2412 = vmatpush1.msra.mxu0 0.0
  %2413 = vmatprep.subr.mxu0 0.0
  %2414 = vmatpush1.msra.mxu0 0.0
  %2415 = vmatprep.subr.mxu0 0.0
  %2416 = vmatpush1.msra.mxu0 0.0
  %2417 = vmatprep.subr.mxu0 0.0
  %2418 = vmatpush1.msra.mxu0 0.0
  %2419 = vmatprep.subr.mxu0 0.0
  %2420 = vmatpush1.msra.mxu0 0.0
  %2421 = vmatprep.subr.mxu0 0.0
  %2422 = vmatpush1.msra.mxu0 0.0
  %2423 = vmatprep.subr.mxu0 0.0
  %2424 = vmatpush1.msra.mxu0 0.0
  %2425 = vmatprep.subr.mxu0 0.0
  %2426 = vmatpush1.msra.mxu0 0.0
  %2427 = vmatprep.subr.mxu0 0.0
  %2428 = vmatpush1.msra.mxu0 0.0
  %2429 = vmatprep.subr.mxu0 0.0
  %2430 = vmatpush1.msra.mxu0 0.0
  %2431 = vmatprep.subr.mxu0 0.0
  %2432 = vmatpush1.msra.mxu0 0.0
  %2433 = vmatprep.subr.mxu0 0.0
  %2434 = vmatpush1.msra.mxu0 0.0
  %2435 = vmatprep.subr.mxu0 0.0
  %2436 = vmatpush1.msra.mxu0 0.0
  %2437 = vmatprep.subr.mxu0 0.0
  %2438 = vmatpush1.msra.mxu0 0.0
  %2439 = vmatprep.subr.mxu0 0.0
  %2440 = vmatpush1.msra.mxu0 0.0
  %2441 = vmatprep.subr.mxu0 0.0
  %2442 = vmatpush1.msra.mxu0 0.0
  %2443 = vmatprep.subr.mxu0 0.0
  %2444 = vmatpush1.msra.mxu0 0.0
  %2445 = vmatprep.subr.mxu0 0.0
  %2446 = vmatpush1.msra.mxu0 0.0
  %2447 = vmatprep.subr.mxu0 0.0
  %2448 = vmatpush1.msra.mxu0 0.0
  %2449 = vmatprep.subr.mxu0 0.0
  %2450 = vmatpush1.msra.mxu0 0.0
  %2451 = vmatprep.subr.mxu0 0.0
  %2452 = vmatpush1.msra.mxu0 0.0
  %2453 = vmatprep.subr.mxu0 0.0
  %2454 = vmatpush1.msra.mxu0 0.0
  %2455 = vmatprep.subr.mxu0 0.0
  %2456 = vmatpush1.msra.mxu0 0.0
  %2457 = vmatprep.subr.mxu0 0.0
  %2458 = vmatpush1.msra.mxu0 0.0
  %2459 = vmatprep.subr.mxu0 0.0
  %2460 = vmatpush1.msra.mxu0 0.0
  %2461 = vmatprep.subr.mxu0 0.0
  %2462 = vmatpush1.msra.mxu0 0.0
  %2463 = vmatprep.subr.mxu0 0.0
  %2464 = vmatpush1.msra.mxu0 0.0
  %2465 = vmatprep.mubr.f32.mxu0 0.0
  %2466 = vmatmul.mubr.f32.gmra.mrb[0].mxu0 %v2399
  %v2467 = vpop.f32.mrb[0].mxu0
  %v2468 = vadd.f32 0.0, %v2467
  %v2469 = vpop.f32.mrb[0].mxu0
  %v2470 = vadd.f32 0.0, %v2469
  %2471 = vdwg.mxu0
  %2472 = vmatprep.subr.mxu0 %v2395
  %2473 = vmatpush1.msra.mxu0 %v2394
  %2474 = vmatprep.subr.mxu0 0.0
  %2475 = vmatpush1.msra.mxu0 0.0
  %2476 = vmatprep.subr.mxu0 0.0
  %2477 = vmatpush1.msra.mxu0 0.0
  %2478 = vmatprep.subr.mxu0 0.0
  %2479 = vmatpush1.msra.mxu0 0.0
  %2480 = vmatprep.subr.mxu0 0.0
  %2481 = vmatpush1.msra.mxu0 0.0
  %2482 = vmatprep.subr.mxu0 0.0
  %2483 = vmatpush1.msra.mxu0 0.0
  %2484 = vmatprep.subr.mxu0 0.0
  %2485 = vmatpush1.msra.mxu0 0.0
  %2486 = vmatprep.subr.mxu0 0.0
  %2487 = vmatpush1.msra.mxu0 0.0
  %2488 = vmatprep.subr.mxu0 0.0
  %2489 = vmatpush1.msra.mxu0 0.0
  %2490 = vmatprep.subr.mxu0 0.0
  %2491 = vmatpush1.msra.mxu0 0.0
  %2492 = vmatprep.subr.mxu0 0.0
  %2493 = vmatpush1.msra.mxu0 0.0
  %2494 = vmatprep.subr.mxu0 0.0
  %2495 = vmatpush1.msra.mxu0 0.0
  %2496 = vmatprep.subr.mxu0 0.0
  %2497 = vmatpush1.msra.mxu0 0.0
  %2498 = vmatprep.subr.mxu0 0.0
  %2499 = vmatpush1.msra.mxu0 0.0
  %2500 = vmatprep.subr.mxu0 0.0
  %2501 = vmatpush1.msra.mxu0 0.0
  %2502 = vmatprep.subr.mxu0 0.0
  %2503 = vmatpush1.msra.mxu0 0.0
  %2504 = vmatprep.subr.mxu0 0.0
  %2505 = vmatpush1.msra.mxu0 0.0
  %2506 = vmatprep.subr.mxu0 0.0
  %2507 = vmatpush1.msra.mxu0 0.0
  %2508 = vmatprep.subr.mxu0 0.0
  %2509 = vmatpush1.msra.mxu0 0.0
  %2510 = vmatprep.subr.mxu0 0.0
  %2511 = vmatpush1.msra.mxu0 0.0
  %2512 = vmatprep.subr.mxu0 0.0
  %2513 = vmatpush1.msra.mxu0 0.0
  %2514 = vmatprep.subr.mxu0 0.0
  %2515 = vmatpush1.msra.mxu0 0.0
  %2516 = vmatprep.subr.mxu0 0.0
  %2517 = vmatpush1.msra.mxu0 0.0
  %2518 = vmatprep.subr.mxu0 0.0
  %2519 = vmatpush1.msra.mxu0 0.0
  %2520 = vmatprep.subr.mxu0 0.0
  %2521 = vmatpush1.msra.mxu0 0.0
  %2522 = vmatprep.subr.mxu0 0.0
  %2523 = vmatpush1.msra.mxu0 0.0
  %2524 = vmatprep.subr.mxu0 0.0
  %2525 = vmatpush1.msra.mxu0 0.0
  %2526 = vmatprep.subr.mxu0 0.0
  %2527 = vmatpush1.msra.mxu0 0.0
  %2528 = vmatprep.subr.mxu0 0.0
  %2529 = vmatpush1.msra.mxu0 0.0
  %2530 = vmatprep.subr.mxu0 0.0
  %2531 = vmatpush1.msra.mxu0 0.0
  %2532 = vmatprep.subr.mxu0 0.0
  %2533 = vmatpush1.msra.mxu0 0.0
  %2534 = vmatprep.subr.mxu0 0.0
  %2535 = vmatpush1.msra.mxu0 0.0
  %2536 = vmatprep.mubr.f32.mxu0 0.0
  %2537 = vmatmul.mubr.f32.gmra.mrb[0].mxu0 %v2399
  %v2538 = vpop.f32.mrb[0].mxu0
  %v2539 = vadd.f32 0.0, %v2538
  %v2540 = vpop.f32.mrb[0].mxu0
  %v2541 = vadd.f32 0.0, %v2540
  %2542 = vdwg.mxu0
  %v2543 = vadd.f32 %v2305, %v2468
  %v2544 = vadd.f32 %v2307, %v2470
  %v2545 = vadd.f32 %v2376, %v2539
  %v2546 = vadd.f32 %v2378, %v2541
  %2547 = vrot.lane.b32.xlu0 %v2038, 1
  %v2548 = vpop.permute.xlu0 %2547
  %2549 = vrot.lane.b32.xlu0 %v2039, 1
  %v2550 = vpop.permute.xlu0 %2549
  %2551 = vrot.lane.b32.xlu0 %v2040, 1
  %v2552 = vpop.permute.xlu0 %2551
  %2553 = vrot.lane.b32.xlu0 %v2041, 1
  %v2554 = vpop.permute.xlu0 %2553
  %v2555 = vsel %vm733, %v2552, %v2554
  %v2556 = vsel %vm733, %v2550, %v2552
  %v2557 = vsel %vm733, %v2548, %v2550
  %v2558 = vsel %vm733, %v2554, %v2548
  %v2559 = vmul.f32 %v2558, %v762
  %v2560 = vmul.f32 %v2557, %v763
  %v2561 = vmul.f32 %v2556, %v764
  %v2562 = vmul.f32 %v2555, %v765
  %s2563 = scalar_lea.vmem %s2, 24
  %v2564 = vld [vmem:[%s2563] sm:$0xff]
  %v2566 = vsel %vm2089, %v2564, 0
  %2568 = vmatprep.subr.mxu0 %v2560
  %2569 = vmatpush1.msra.mxu0 %v2559
  %2570 = vmatprep.subr.mxu0 0.0
  %2571 = vmatpush1.msra.mxu0 0.0
  %2572 = vmatprep.subr.mxu0 0.0
  %2573 = vmatpush1.msra.mxu0 0.0
  %2574 = vmatprep.subr.mxu0 0.0
  %2575 = vmatpush1.msra.mxu0 0.0
  %2576 = vmatprep.subr.mxu0 0.0
  %2577 = vmatpush1.msra.mxu0 0.0
  %2578 = vmatprep.subr.mxu0 0.0
  %2579 = vmatpush1.msra.mxu0 0.0
  %2580 = vmatprep.subr.mxu0 0.0
  %2581 = vmatpush1.msra.mxu0 0.0
  %2582 = vmatprep.subr.mxu0 0.0
  %2583 = vmatpush1.msra.mxu0 0.0
  %2584 = vmatprep.subr.mxu0 0.0
  %2585 = vmatpush1.msra.mxu0 0.0
  %2586 = vmatprep.subr.mxu0 0.0
  %2587 = vmatpush1.msra.mxu0 0.0
  %2588 = vmatprep.subr.mxu0 0.0
  %2589 = vmatpush1.msra.mxu0 0.0
  %2590 = vmatprep.subr.mxu0 0.0
  %2591 = vmatpush1.msra.mxu0 0.0
  %2592 = vmatprep.subr.mxu0 0.0
  %2593 = vmatpush1.msra.mxu0 0.0
  %2594 = vmatprep.subr.mxu0 0.0
  %2595 = vmatpush1.msra.mxu0 0.0
  %2596 = vmatprep.subr.mxu0 0.0
  %2597 = vmatpush1.msra.mxu0 0.0
  %2598 = vmatprep.subr.mxu0 0.0
  %2599 = vmatpush1.msra.mxu0 0.0
  %2600 = vmatprep.subr.mxu0 0.0
  %2601 = vmatpush1.msra.mxu0 0.0
  %2602 = vmatprep.subr.mxu0 0.0
  %2603 = vmatpush1.msra.mxu0 0.0
  %2604 = vmatprep.subr.mxu0 0.0
  %2605 = vmatpush1.msra.mxu0 0.0
  %2606 = vmatprep.subr.mxu0 0.0
  %2607 = vmatpush1.msra.mxu0 0.0
  %2608 = vmatprep.subr.mxu0 0.0
  %2609 = vmatpush1.msra.mxu0 0.0
  %2610 = vmatprep.subr.mxu0 0.0
  %2611 = vmatpush1.msra.mxu0 0.0
  %2612 = vmatprep.subr.mxu0 0.0
  %2613 = vmatpush1.msra.mxu0 0.0
  %2614 = vmatprep.subr.mxu0 0.0
  %2615 = vmatpush1.msra.mxu0 0.0
  %2616 = vmatprep.subr.mxu0 0.0
  %2617 = vmatpush1.msra.mxu0 0.0
  %2618 = vmatprep.subr.mxu0 0.0
  %2619 = vmatpush1.msra.mxu0 0.0
  %2620 = vmatprep.subr.mxu0 0.0
  %2621 = vmatpush1.msra.mxu0 0.0
  %2622 = vmatprep.subr.mxu0 0.0
  %2623 = vmatpush1.msra.mxu0 0.0
  %2624 = vmatprep.subr.mxu0 0.0
  %2625 = vmatpush1.msra.mxu0 0.0
  %2626 = vmatprep.subr.mxu0 0.0
  %2627 = vmatpush1.msra.mxu0 0.0
  %2628 = vmatprep.subr.mxu0 0.0
  %2629 = vmatpush1.msra.mxu0 0.0
  %2630 = vmatprep.subr.mxu0 0.0
  %2631 = vmatpush1.msra.mxu0 0.0
  %2632 = vmatprep.mubr.f32.mxu0 0.0
  %2633 = vmatmul.mubr.f32.gmra.mrb[0].mxu0 %v2566
  %v2634 = vpop.f32.mrb[0].mxu0
  %v2635 = vadd.f32 0.0, %v2634
  %v2636 = vpop.f32.mrb[0].mxu0
  %v2637 = vadd.f32 0.0, %v2636
  %2638 = vdwg.mxu0
  %2639 = vmatprep.subr.mxu0 %v2562
  %2640 = vmatpush1.msra.mxu0 %v2561
  %2641 = vmatprep.subr.mxu0 0.0
  %2642 = vmatpush1.msra.mxu0 0.0
  %2643 = vmatprep.subr.mxu0 0.0
  %2644 = vmatpush1.msra.mxu0 0.0
  %2645 = vmatprep.subr.mxu0 0.0
  %2646 = vmatpush1.msra.mxu0 0.0
  %2647 = vmatprep.subr.mxu0 0.0
  %2648 = vmatpush1.msra.mxu0 0.0
  %2649 = vmatprep.subr.mxu0 0.0
  %2650 = vmatpush1.msra.mxu0 0.0
  %2651 = vmatprep.subr.mxu0 0.0
  %2652 = vmatpush1.msra.mxu0 0.0
  %2653 = vmatprep.subr.mxu0 0.0
  %2654 = vmatpush1.msra.mxu0 0.0
  %2655 = vmatprep.subr.mxu0 0.0
  %2656 = vmatpush1.msra.mxu0 0.0
  %2657 = vmatprep.subr.mxu0 0.0
  %2658 = vmatpush1.msra.mxu0 0.0
  %2659 = vmatprep.subr.mxu0 0.0
  %2660 = vmatpush1.msra.mxu0 0.0
  %2661 = vmatprep.subr.mxu0 0.0
  %2662 = vmatpush1.msra.mxu0 0.0
  %2663 = vmatprep.subr.mxu0 0.0
  %2664 = vmatpush1.msra.mxu0 0.0
  %2665 = vmatprep.subr.mxu0 0.0
  %2666 = vmatpush1.msra.mxu0 0.0
  %2667 = vmatprep.subr.mxu0 0.0
  %2668 = vmatpush1.msra.mxu0 0.0
  %2669 = vmatprep.subr.mxu0 0.0
  %2670 = vmatpush1.msra.mxu0 0.0
  %2671 = vmatprep.subr.mxu0 0.0
  %2672 = vmatpush1.msra.mxu0 0.0
  %2673 = vmatprep.subr.mxu0 0.0
  %2674 = vmatpush1.msra.mxu0 0.0
  %2675 = vmatprep.subr.mxu0 0.0
  %2676 = vmatpush1.msra.mxu0 0.0
  %2677 = vmatprep.subr.mxu0 0.0
  %2678 = vmatpush1.msra.mxu0 0.0
  %2679 = vmatprep.subr.mxu0 0.0
  %2680 = vmatpush1.msra.mxu0 0.0
  %2681 = vmatprep.subr.mxu0 0.0
  %2682 = vmatpush1.msra.mxu0 0.0
  %2683 = vmatprep.subr.mxu0 0.0
  %2684 = vmatpush1.msra.mxu0 0.0
  %2685 = vmatprep.subr.mxu0 0.0
  %2686 = vmatpush1.msra.mxu0 0.0
  %2687 = vmatprep.subr.mxu0 0.0
  %2688 = vmatpush1.msra.mxu0 0.0
  %2689 = vmatprep.subr.mxu0 0.0
  %2690 = vmatpush1.msra.mxu0 0.0
  %2691 = vmatprep.subr.mxu0 0.0
  %2692 = vmatpush1.msra.mxu0 0.0
  %2693 = vmatprep.subr.mxu0 0.0
  %2694 = vmatpush1.msra.mxu0 0.0
  %2695 = vmatprep.subr.mxu0 0.0
  %2696 = vmatpush1.msra.mxu0 0.0
  %2697 = vmatprep.subr.mxu0 0.0
  %2698 = vmatpush1.msra.mxu0 0.0
  %2699 = vmatprep.subr.mxu0 0.0
  %2700 = vmatpush1.msra.mxu0 0.0
  %2701 = vmatprep.subr.mxu0 0.0
  %2702 = vmatpush1.msra.mxu0 0.0
  %2703 = vmatprep.mubr.f32.mxu0 0.0
  %2704 = vmatmul.mubr.f32.gmra.mrb[0].mxu0 %v2566
  %v2705 = vpop.f32.mrb[0].mxu0
  %v2706 = vadd.f32 0.0, %v2705
  %v2707 = vpop.f32.mrb[0].mxu0
  %v2708 = vadd.f32 0.0, %v2707
  %2709 = vdwg.mxu0
  %v2710 = vadd.f32 %v2543, %v2635
  %v2711 = vadd.f32 %v2544, %v2637
  %v2712 = vadd.f32 %v2545, %v2706
  %v2713 = vadd.f32 %v2546, %v2708
  %s2714 = scalar_lea.vmem %s2, 32
  %v2715 = vld [vmem:[%s2714] sm:$0xff]
  %v2717 = vsel %vm2089, %v2715, 0
  %2719 = vmatprep.subr.mxu0 %v2039
  %2720 = vmatpush1.msra.mxu0 %v2038
  %2721 = vmatprep.subr.mxu0 0.0
  %2722 = vmatpush1.msra.mxu0 0.0
  %2723 = vmatprep.subr.mxu0 0.0
  %2724 = vmatpush1.msra.mxu0 0.0
  %2725 = vmatprep.subr.mxu0 0.0
  %2726 = vmatpush1.msra.mxu0 0.0
  %2727 = vmatprep.subr.mxu0 0.0
  %2728 = vmatpush1.msra.mxu0 0.0
  %2729 = vmatprep.subr.mxu0 0.0
  %2730 = vmatpush1.msra.mxu0 0.0
  %2731 = vmatprep.subr.mxu0 0.0
  %2732 = vmatpush1.msra.mxu0 0.0
  %2733 = vmatprep.subr.mxu0 0.0
  %2734 = vmatpush1.msra.mxu0 0.0
  %2735 = vmatprep.subr.mxu0 0.0
  %2736 = vmatpush1.msra.mxu0 0.0
  %2737 = vmatprep.subr.mxu0 0.0
  %2738 = vmatpush1.msra.mxu0 0.0
  %2739 = vmatprep.subr.mxu0 0.0
  %2740 = vmatpush1.msra.mxu0 0.0
  %2741 = vmatprep.subr.mxu0 0.0
  %2742 = vmatpush1.msra.mxu0 0.0
  %2743 = vmatprep.subr.mxu0 0.0
  %2744 = vmatpush1.msra.mxu0 0.0
  %2745 = vmatprep.subr.mxu0 0.0
  %2746 = vmatpush1.msra.mxu0 0.0
  %2747 = vmatprep.subr.mxu0 0.0
  %2748 = vmatpush1.msra.mxu0 0.0
  %2749 = vmatprep.subr.mxu0 0.0
  %2750 = vmatpush1.msra.mxu0 0.0
  %2751 = vmatprep.subr.mxu0 0.0
  %2752 = vmatpush1.msra.mxu0 0.0
  %2753 = vmatprep.subr.mxu0 0.0
  %2754 = vmatpush1.msra.mxu0 0.0
  %2755 = vmatprep.subr.mxu0 0.0
  %2756 = vmatpush1.msra.mxu0 0.0
  %2757 = vmatprep.subr.mxu0 0.0
  %2758 = vmatpush1.msra.mxu0 0.0
  %2759 = vmatprep.subr.mxu0 0.0
  %2760 = vmatpush1.msra.mxu0 0.0
  %2761 = vmatprep.subr.mxu0 0.0
  %2762 = vmatpush1.msra.mxu0 0.0
  %2763 = vmatprep.subr.mxu0 0.0
  %2764 = vmatpush1.msra.mxu0 0.0
  %2765 = vmatprep.subr.mxu0 0.0
  %2766 = vmatpush1.msra.mxu0 0.0
  %2767 = vmatprep.subr.mxu0 0.0
  %2768 = vmatpush1.msra.mxu0 0.0
  %2769 = vmatprep.subr.mxu0 0.0
  %2770 = vmatpush1.msra.mxu0 0.0
  %2771 = vmatprep.subr.mxu0 0.0
  %2772 = vmatpush1.msra.mxu0 0.0
  %2773 = vmatprep.subr.mxu0 0.0
  %2774 = vmatpush1.msra.mxu0 0.0
  %2775 = vmatprep.subr.mxu0 0.0
  %2776 = vmatpush1.msra.mxu0 0.0
  %2777 = vmatprep.subr.mxu0 0.0
  %2778 = vmatpush1.msra.mxu0 0.0
  %2779 = vmatprep.subr.mxu0 0.0
  %2780 = vmatpush1.msra.mxu0 0.0
  %2781 = vmatprep.subr.mxu0 0.0
  %2782 = vmatpush1.msra.mxu0 0.0
  %2783 = vmatprep.mubr.f32.mxu0 0.0
  %2784 = vmatmul.mubr.f32.gmra.mrb[0].mxu0 %v2717
  %v2785 = vpop.f32.mrb[0].mxu0
  %v2786 = vadd.f32 0.0, %v2785
  %v2787 = vpop.f32.mrb[0].mxu0
  %v2788 = vadd.f32 0.0, %v2787
  %2789 = vdwg.mxu0
  %2790 = vmatprep.subr.mxu0 %v2041
  %2791 = vmatpush1.msra.mxu0 %v2040
  %2792 = vmatprep.subr.mxu0 0.0
  %2793 = vmatpush1.msra.mxu0 0.0
  %2794 = vmatprep.subr.mxu0 0.0
  %2795 = vmatpush1.msra.mxu0 0.0
  %2796 = vmatprep.subr.mxu0 0.0
  %2797 = vmatpush1.msra.mxu0 0.0
  %2798 = vmatprep.subr.mxu0 0.0
  %2799 = vmatpush1.msra.mxu0 0.0
  %2800 = vmatprep.subr.mxu0 0.0
  %2801 = vmatpush1.msra.mxu0 0.0
  %2802 = vmatprep.subr.mxu0 0.0
  %2803 = vmatpush1.msra.mxu0 0.0
  %2804 = vmatprep.subr.mxu0 0.0
  %2805 = vmatpush1.msra.mxu0 0.0
  %2806 = vmatprep.subr.mxu0 0.0
  %2807 = vmatpush1.msra.mxu0 0.0
  %2808 = vmatprep.subr.mxu0 0.0
  %2809 = vmatpush1.msra.mxu0 0.0
  %2810 = vmatprep.subr.mxu0 0.0
  %2811 = vmatpush1.msra.mxu0 0.0
  %2812 = vmatprep.subr.mxu0 0.0
  %2813 = vmatpush1.msra.mxu0 0.0
  %2814 = vmatprep.subr.mxu0 0.0
  %2815 = vmatpush1.msra.mxu0 0.0
  %2816 = vmatprep.subr.mxu0 0.0
  %2817 = vmatpush1.msra.mxu0 0.0
  %2818 = vmatprep.subr.mxu0 0.0
  %2819 = vmatpush1.msra.mxu0 0.0
  %2820 = vmatprep.subr.mxu0 0.0
  %2821 = vmatpush1.msra.mxu0 0.0
  %2822 = vmatprep.subr.mxu0 0.0
  %2823 = vmatpush1.msra.mxu0 0.0
  %2824 = vmatprep.subr.mxu0 0.0
  %2825 = vmatpush1.msra.mxu0 0.0
  %2826 = vmatprep.subr.mxu0 0.0
  %2827 = vmatpush1.msra.mxu0 0.0
  %2828 = vmatprep.subr.mxu0 0.0
  %2829 = vmatpush1.msra.mxu0 0.0
  %2830 = vmatprep.subr.mxu0 0.0
  %2831 = vmatpush1.msra.mxu0 0.0
  %2832 = vmatprep.subr.mxu0 0.0
  %2833 = vmatpush1.msra.mxu0 0.0
  %2834 = vmatprep.subr.mxu0 0.0
  %2835 = vmatpush1.msra.mxu0 0.0
  %2836 = vmatprep.subr.mxu0 0.0
  %2837 = vmatpush1.msra.mxu0 0.0
  %2838 = vmatprep.subr.mxu0 0.0
  %2839 = vmatpush1.msra.mxu0 0.0
  %2840 = vmatprep.subr.mxu0 0.0
  %2841 = vmatpush1.msra.mxu0 0.0
  %2842 = vmatprep.subr.mxu0 0.0
  %2843 = vmatpush1.msra.mxu0 0.0
  %2844 = vmatprep.subr.mxu0 0.0
  %2845 = vmatpush1.msra.mxu0 0.0
  %2846 = vmatprep.subr.mxu0 0.0
  %2847 = vmatpush1.msra.mxu0 0.0
  %2848 = vmatprep.subr.mxu0 0.0
  %2849 = vmatpush1.msra.mxu0 0.0
  %2850 = vmatprep.subr.mxu0 0.0
  %2851 = vmatpush1.msra.mxu0 0.0
  %2852 = vmatprep.subr.mxu0 0.0
  %2853 = vmatpush1.msra.mxu0 0.0
  %2854 = vmatprep.mubr.f32.mxu0 0.0
  %2855 = vmatmul.mubr.f32.gmra.mrb[0].mxu0 %v2717
  %v2856 = vpop.f32.mrb[0].mxu0
  %v2857 = vadd.f32 0.0, %v2856
  %v2858 = vpop.f32.mrb[0].mxu0
  %v2859 = vadd.f32 0.0, %v2858
  %2860 = vdwg.mxu0
  %v2861 = vadd.f32 %v2710, %v2786
  %v2862 = vadd.f32 %v2711, %v2788
  %v2863 = vadd.f32 %v2712, %v2857
  %v2864 = vadd.f32 %v2713, %v2859
  %2865 = vrot.lane.b32.xlu0 %v2038, 127
  %v2866 = vpop.permute.xlu0 %2865
  %2867 = vrot.lane.b32.xlu0 %v2039, 127
  %v2868 = vpop.permute.xlu0 %2867
  %2869 = vrot.lane.b32.xlu0 %v2040, 127
  %v2870 = vpop.permute.xlu0 %2869
  %2871 = vrot.lane.b32.xlu0 %v2041, 127
  %v2872 = vpop.permute.xlu0 %2871
  %v2873 = vsel %vm1140, %v2870, %v2872
  %v2874 = vsel %vm1140, %v2868, %v2870
  %v2875 = vsel %vm1140, %v2866, %v2868
  %v2876 = vsel %vm1140, %v2872, %v2866
  %v2877 = vmul.f32 %v2875, %v1157
  %v2878 = vmul.f32 %v2874, %v1158
  %v2879 = vmul.f32 %v2873, %v1159
  %v2880 = vmul.f32 %v2876, %v1160
  %s2881 = scalar_lea.vmem %s2, 40
  %v2882 = vld [vmem:[%s2881] sm:$0xff]
  %v2884 = vsel %vm2089, %v2882, 0
  %2886 = vmatprep.subr.mxu0 %v2878
  %2887 = vmatpush1.msra.mxu0 %v2877
  %2888 = vmatprep.subr.mxu0 0.0
  %2889 = vmatpush1.msra.mxu0 0.0
  %2890 = vmatprep.subr.mxu0 0.0
  %2891 = vmatpush1.msra.mxu0 0.0
  %2892 = vmatprep.subr.mxu0 0.0
  %2893 = vmatpush1.msra.mxu0 0.0
  %2894 = vmatprep.subr.mxu0 0.0
  %2895 = vmatpush1.msra.mxu0 0.0
  %2896 = vmatprep.subr.mxu0 0.0
  %2897 = vmatpush1.msra.mxu0 0.0
  %2898 = vmatprep.subr.mxu0 0.0
  %2899 = vmatpush1.msra.mxu0 0.0
  %2900 = vmatprep.subr.mxu0 0.0
  %2901 = vmatpush1.msra.mxu0 0.0
  %2902 = vmatprep.subr.mxu0 0.0
  %2903 = vmatpush1.msra.mxu0 0.0
  %2904 = vmatprep.subr.mxu0 0.0
  %2905 = vmatpush1.msra.mxu0 0.0
  %2906 = vmatprep.subr.mxu0 0.0
  %2907 = vmatpush1.msra.mxu0 0.0
  %2908 = vmatprep.subr.mxu0 0.0
  %2909 = vmatpush1.msra.mxu0 0.0
  %2910 = vmatprep.subr.mxu0 0.0
  %2911 = vmatpush1.msra.mxu0 0.0
  %2912 = vmatprep.subr.mxu0 0.0
  %2913 = vmatpush1.msra.mxu0 0.0
  %2914 = vmatprep.subr.mxu0 0.0
  %2915 = vmatpush1.msra.mxu0 0.0
  %2916 = vmatprep.subr.mxu0 0.0
  %2917 = vmatpush1.msra.mxu0 0.0
  %2918 = vmatprep.subr.mxu0 0.0
  %2919 = vmatpush1.msra.mxu0 0.0
  %2920 = vmatprep.subr.mxu0 0.0
  %2921 = vmatpush1.msra.mxu0 0.0
  %2922 = vmatprep.subr.mxu0 0.0
  %2923 = vmatpush1.msra.mxu0 0.0
  %2924 = vmatprep.subr.mxu0 0.0
  %2925 = vmatpush1.msra.mxu0 0.0
  %2926 = vmatprep.subr.mxu0 0.0
  %2927 = vmatpush1.msra.mxu0 0.0
  %2928 = vmatprep.subr.mxu0 0.0
  %2929 = vmatpush1.msra.mxu0 0.0
  %2930 = vmatprep.subr.mxu0 0.0
  %2931 = vmatpush1.msra.mxu0 0.0
  %2932 = vmatprep.subr.mxu0 0.0
  %2933 = vmatpush1.msra.mxu0 0.0
  %2934 = vmatprep.subr.mxu0 0.0
  %2935 = vmatpush1.msra.mxu0 0.0
  %2936 = vmatprep.subr.mxu0 0.0
  %2937 = vmatpush1.msra.mxu0 0.0
  %2938 = vmatprep.subr.mxu0 0.0
  %2939 = vmatpush1.msra.mxu0 0.0
  %2940 = vmatprep.subr.mxu0 0.0
  %2941 = vmatpush1.msra.mxu0 0.0
  %2942 = vmatprep.subr.mxu0 0.0
  %2943 = vmatpush1.msra.mxu0 0.0
  %2944 = vmatprep.subr.mxu0 0.0
  %2945 = vmatpush1.msra.mxu0 0.0
  %2946 = vmatprep.subr.mxu0 0.0
  %2947 = vmatpush1.msra.mxu0 0.0
  %2948 = vmatprep.subr.mxu0 0.0
  %2949 = vmatpush1.msra.mxu0 0.0
  %2950 = vmatprep.mubr.f32.mxu0 0.0
  %2951 = vmatmul.mubr.f32.gmra.mrb[0].mxu0 %v2884
  %v2952 = vpop.f32.mrb[0].mxu0
  %v2953 = vadd.f32 0.0, %v2952
  %v2954 = vpop.f32.mrb[0].mxu0
  %v2955 = vadd.f32 0.0, %v2954
  %2956 = vdwg.mxu0
  %2957 = vmatprep.subr.mxu0 %v2880
  %2958 = vmatpush1.msra.mxu0 %v2879
  %2959 = vmatprep.subr.mxu0 0.0
  %2960 = vmatpush1.msra.mxu0 0.0
  %2961 = vmatprep.subr.mxu0 0.0
  %2962 = vmatpush1.msra.mxu0 0.0
  %2963 = vmatprep.subr.mxu0 0.0
  %2964 = vmatpush1.msra.mxu0 0.0
  %2965 = vmatprep.subr.mxu0 0.0
  %2966 = vmatpush1.msra.mxu0 0.0
  %2967 = vmatprep.subr.mxu0 0.0
  %2968 = vmatpush1.msra.mxu0 0.0
  %2969 = vmatprep.subr.mxu0 0.0
  %2970 = vmatpush1.msra.mxu0 0.0
  %2971 = vmatprep.subr.mxu0 0.0
  %2972 = vmatpush1.msra.mxu0 0.0
  %2973 = vmatprep.subr.mxu0 0.0
  %2974 = vmatpush1.msra.mxu0 0.0
  %2975 = vmatprep.subr.mxu0 0.0
  %2976 = vmatpush1.msra.mxu0 0.0
  %2977 = vmatprep.subr.mxu0 0.0
  %2978 = vmatpush1.msra.mxu0 0.0
  %2979 = vmatprep.subr.mxu0 0.0
  %2980 = vmatpush1.msra.mxu0 0.0
  %2981 = vmatprep.subr.mxu0 0.0
  %2982 = vmatpush1.msra.mxu0 0.0
  %2983 = vmatprep.subr.mxu0 0.0
  %2984 = vmatpush1.msra.mxu0 0.0
  %2985 = vmatprep.subr.mxu0 0.0
  %2986 = vmatpush1.msra.mxu0 0.0
  %2987 = vmatprep.subr.mxu0 0.0
  %2988 = vmatpush1.msra.mxu0 0.0
  %2989 = vmatprep.subr.mxu0 0.0
  %2990 = vmatpush1.msra.mxu0 0.0
  %2991 = vmatprep.subr.mxu0 0.0
  %2992 = vmatpush1.msra.mxu0 0.0
  %2993 = vmatprep.subr.mxu0 0.0
  %2994 = vmatpush1.msra.mxu0 0.0
  %2995 = vmatprep.subr.mxu0 0.0
  %2996 = vmatpush1.msra.mxu0 0.0
  %2997 = vmatprep.subr.mxu0 0.0
  %2998 = vmatpush1.msra.mxu0 0.0
  %2999 = vmatprep.subr.mxu0 0.0
  %3000 = vmatpush1.msra.mxu0 0.0
  %3001 = vmatprep.subr.mxu0 0.0
  %3002 = vmatpush1.msra.mxu0 0.0
  %3003 = vmatprep.subr.mxu0 0.0
  %3004 = vmatpush1.msra.mxu0 0.0
  %3005 = vmatprep.subr.mxu0 0.0
  %3006 = vmatpush1.msra.mxu0 0.0
  %3007 = vmatprep.subr.mxu0 0.0
  %3008 = vmatpush1.msra.mxu0 0.0
  %3009 = vmatprep.subr.mxu0 0.0
  %3010 = vmatpush1.msra.mxu0 0.0
  %3011 = vmatprep.subr.mxu0 0.0
  %3012 = vmatpush1.msra.mxu0 0.0
  %3013 = vmatprep.subr.mxu0 0.0
  %3014 = vmatpush1.msra.mxu0 0.0
  %3015 = vmatprep.subr.mxu0 0.0
  %3016 = vmatpush1.msra.mxu0 0.0
  %3017 = vmatprep.subr.mxu0 0.0
  %3018 = vmatpush1.msra.mxu0 0.0
  %3019 = vmatprep.subr.mxu0 0.0
  %3020 = vmatpush1.msra.mxu0 0.0
  %3021 = vmatprep.mubr.f32.mxu0 0.0
  %3022 = vmatmul.mubr.f32.gmra.mrb[0].mxu0 %v2884
  %v3023 = vpop.f32.mrb[0].mxu0
  %v3024 = vadd.f32 0.0, %v3023
  %v3025 = vpop.f32.mrb[0].mxu0
  %v3026 = vadd.f32 0.0, %v3025
  %3027 = vdwg.mxu0
  %v3028 = vadd.f32 %v2861, %v2953
  %v3029 = vadd.f32 %v2862, %v2955
  %v3030 = vadd.f32 %v2863, %v3024
  %v3031 = vadd.f32 %v2864, %v3026
  %3032 = vrot.lane.b32.xlu0 %v2038, 113
  %v3033 = vpop.permute.xlu0 %3032
  %3034 = vrot.lane.b32.xlu0 %v2039, 113
  %v3035 = vpop.permute.xlu0 %3034
  %3036 = vrot.lane.b32.xlu0 %v2040, 113
  %v3037 = vpop.permute.xlu0 %3036
  %3038 = vrot.lane.b32.xlu0 %v2041, 113
  %v3039 = vpop.permute.xlu0 %3038
  %v3040 = vsel %vm1356, %v3037, %v3039
  %v3041 = vsel %vm1356, %v3035, %v3037
  %v3042 = vsel %vm1356, %v3033, %v3035
  %v3043 = vsel %vm1356, %v3039, %v3033
  %v3044 = vmul.f32 %v3042, %v1389
  %v3045 = vmul.f32 %v3041, %v1390
  %v3046 = vmul.f32 %v3040, %v1391
  %v3047 = vmul.f32 %v3043, %v1392
  %s3048 = scalar_lea.vmem %s2, 48
  %v3049 = vld [vmem:[%s3048] sm:$0xff]
  %v3051 = vsel %vm2089, %v3049, 0
  %3053 = vmatprep.subr.mxu0 %v3045
  %3054 = vmatpush1.msra.mxu0 %v3044
  %3055 = vmatprep.subr.mxu0 0.0
  %3056 = vmatpush1.msra.mxu0 0.0
  %3057 = vmatprep.subr.mxu0 0.0
  %3058 = vmatpush1.msra.mxu0 0.0
  %3059 = vmatprep.subr.mxu0 0.0
  %3060 = vmatpush1.msra.mxu0 0.0
  %3061 = vmatprep.subr.mxu0 0.0
  %3062 = vmatpush1.msra.mxu0 0.0
  %3063 = vmatprep.subr.mxu0 0.0
  %3064 = vmatpush1.msra.mxu0 0.0
  %3065 = vmatprep.subr.mxu0 0.0
  %3066 = vmatpush1.msra.mxu0 0.0
  %3067 = vmatprep.subr.mxu0 0.0
  %3068 = vmatpush1.msra.mxu0 0.0
  %3069 = vmatprep.subr.mxu0 0.0
  %3070 = vmatpush1.msra.mxu0 0.0
  %3071 = vmatprep.subr.mxu0 0.0
  %3072 = vmatpush1.msra.mxu0 0.0
  %3073 = vmatprep.subr.mxu0 0.0
  %3074 = vmatpush1.msra.mxu0 0.0
  %3075 = vmatprep.subr.mxu0 0.0
  %3076 = vmatpush1.msra.mxu0 0.0
  %3077 = vmatprep.subr.mxu0 0.0
  %3078 = vmatpush1.msra.mxu0 0.0
  %3079 = vmatprep.subr.mxu0 0.0
  %3080 = vmatpush1.msra.mxu0 0.0
  %3081 = vmatprep.subr.mxu0 0.0
  %3082 = vmatpush1.msra.mxu0 0.0
  %3083 = vmatprep.subr.mxu0 0.0
  %3084 = vmatpush1.msra.mxu0 0.0
  %3085 = vmatprep.subr.mxu0 0.0
  %3086 = vmatpush1.msra.mxu0 0.0
  %3087 = vmatprep.subr.mxu0 0.0
  %3088 = vmatpush1.msra.mxu0 0.0
  %3089 = vmatprep.subr.mxu0 0.0
  %3090 = vmatpush1.msra.mxu0 0.0
  %3091 = vmatprep.subr.mxu0 0.0
  %3092 = vmatpush1.msra.mxu0 0.0
  %3093 = vmatprep.subr.mxu0 0.0
  %3094 = vmatpush1.msra.mxu0 0.0
  %3095 = vmatprep.subr.mxu0 0.0
  %3096 = vmatpush1.msra.mxu0 0.0
  %3097 = vmatprep.subr.mxu0 0.0
  %3098 = vmatpush1.msra.mxu0 0.0
  %3099 = vmatprep.subr.mxu0 0.0
  %3100 = vmatpush1.msra.mxu0 0.0
  %3101 = vmatprep.subr.mxu0 0.0
  %3102 = vmatpush1.msra.mxu0 0.0
  %3103 = vmatprep.subr.mxu0 0.0
  %3104 = vmatpush1.msra.mxu0 0.0
  %3105 = vmatprep.subr.mxu0 0.0
  %3106 = vmatpush1.msra.mxu0 0.0
  %3107 = vmatprep.subr.mxu0 0.0
  %3108 = vmatpush1.msra.mxu0 0.0
  %3109 = vmatprep.subr.mxu0 0.0
  %3110 = vmatpush1.msra.mxu0 0.0
  %3111 = vmatprep.subr.mxu0 0.0
  %3112 = vmatpush1.msra.mxu0 0.0
  %3113 = vmatprep.subr.mxu0 0.0
  %3114 = vmatpush1.msra.mxu0 0.0
  %3115 = vmatprep.subr.mxu0 0.0
  %3116 = vmatpush1.msra.mxu0 0.0
  %3117 = vmatprep.mubr.f32.mxu0 0.0
  %3118 = vmatmul.mubr.f32.gmra.mrb[0].mxu0 %v3051
  %v3119 = vpop.f32.mrb[0].mxu0
  %v3120 = vadd.f32 0.0, %v3119
  %v3121 = vpop.f32.mrb[0].mxu0
  %v3122 = vadd.f32 0.0, %v3121
  %3123 = vdwg.mxu0
  %3124 = vmatprep.subr.mxu0 %v3047
  %3125 = vmatpush1.msra.mxu0 %v3046
  %3126 = vmatprep.subr.mxu0 0.0
  %3127 = vmatpush1.msra.mxu0 0.0
  %3128 = vmatprep.subr.mxu0 0.0
  %3129 = vmatpush1.msra.mxu0 0.0
  %3130 = vmatprep.subr.mxu0 0.0
  %3131 = vmatpush1.msra.mxu0 0.0
  %3132 = vmatprep.subr.mxu0 0.0
  %3133 = vmatpush1.msra.mxu0 0.0
  %3134 = vmatprep.subr.mxu0 0.0
  %3135 = vmatpush1.msra.mxu0 0.0
  %3136 = vmatprep.subr.mxu0 0.0
  %3137 = vmatpush1.msra.mxu0 0.0
  %3138 = vmatprep.subr.mxu0 0.0
  %3139 = vmatpush1.msra.mxu0 0.0
  %3140 = vmatprep.subr.mxu0 0.0
  %3141 = vmatpush1.msra.mxu0 0.0
  %3142 = vmatprep.subr.mxu0 0.0
  %3143 = vmatpush1.msra.mxu0 0.0
  %3144 = vmatprep.subr.mxu0 0.0
  %3145 = vmatpush1.msra.mxu0 0.0
  %3146 = vmatprep.subr.mxu0 0.0
  %3147 = vmatpush1.msra.mxu0 0.0
  %3148 = vmatprep.subr.mxu0 0.0
  %3149 = vmatpush1.msra.mxu0 0.0
  %3150 = vmatprep.subr.mxu0 0.0
  %3151 = vmatpush1.msra.mxu0 0.0
  %3152 = vmatprep.subr.mxu0 0.0
  %3153 = vmatpush1.msra.mxu0 0.0
  %3154 = vmatprep.subr.mxu0 0.0
  %3155 = vmatpush1.msra.mxu0 0.0
  %3156 = vmatprep.subr.mxu0 0.0
  %3157 = vmatpush1.msra.mxu0 0.0
  %3158 = vmatprep.subr.mxu0 0.0
  %3159 = vmatpush1.msra.mxu0 0.0
  %3160 = vmatprep.subr.mxu0 0.0
  %3161 = vmatpush1.msra.mxu0 0.0
  %3162 = vmatprep.subr.mxu0 0.0
  %3163 = vmatpush1.msra.mxu0 0.0
  %3164 = vmatprep.subr.mxu0 0.0
  %3165 = vmatpush1.msra.mxu0 0.0
  %3166 = vmatprep.subr.mxu0 0.0
  %3167 = vmatpush1.msra.mxu0 0.0
  %3168 = vmatprep.subr.mxu0 0.0
  %3169 = vmatpush1.msra.mxu0 0.0
  %3170 = vmatprep.subr.mxu0 0.0
  %3171 = vmatpush1.msra.mxu0 0.0
  %3172 = vmatprep.subr.mxu0 0.0
  %3173 = vmatpush1.msra.mxu0 0.0
  %3174 = vmatprep.subr.mxu0 0.0
  %3175 = vmatpush1.msra.mxu0 0.0
  %3176 = vmatprep.subr.mxu0 0.0
  %3177 = vmatpush1.msra.mxu0 0.0
  %3178 = vmatprep.subr.mxu0 0.0
  %3179 = vmatpush1.msra.mxu0 0.0
  %3180 = vmatprep.subr.mxu0 0.0
  %3181 = vmatpush1.msra.mxu0 0.0
  %3182 = vmatprep.subr.mxu0 0.0
  %3183 = vmatpush1.msra.mxu0 0.0
  %3184 = vmatprep.subr.mxu0 0.0
  %3185 = vmatpush1.msra.mxu0 0.0
  %3186 = vmatprep.subr.mxu0 0.0
  %3187 = vmatpush1.msra.mxu0 0.0
  %3188 = vmatprep.mubr.f32.mxu0 0.0
  %3189 = vmatmul.mubr.f32.gmra.mrb[0].mxu0 %v3051
  %v3190 = vpop.f32.mrb[0].mxu0
  %v3191 = vadd.f32 0.0, %v3190
  %v3192 = vpop.f32.mrb[0].mxu0
  %v3193 = vadd.f32 0.0, %v3192
  %3194 = vdwg.mxu0
  %v3195 = vadd.f32 %v3028, %v3120
  %v3196 = vadd.f32 %v3029, %v3122
  %v3197 = vadd.f32 %v3030, %v3191
  %v3198 = vadd.f32 %v3031, %v3193
  %3199 = vrot.lane.b32.xlu0 %v2038, 112
  %v3200 = vpop.permute.xlu0 %3199
  %3201 = vrot.lane.b32.xlu0 %v2039, 112
  %v3202 = vpop.permute.xlu0 %3201
  %3203 = vrot.lane.b32.xlu0 %v2040, 112
  %v3204 = vpop.permute.xlu0 %3203
  %3205 = vrot.lane.b32.xlu0 %v2041, 112
  %v3206 = vpop.permute.xlu0 %3205
  %v3207 = vsel %vm1588, %v3204, %v3206
  %v3208 = vsel %vm1588, %v3202, %v3204
  %v3209 = vsel %vm1588, %v3200, %v3202
  %v3210 = vsel %vm1588, %v3206, %v3200
  %v3211 = vmul.f32 %v3209, %v1605
  %v3212 = vmul.f32 %v3208, %v1606
  %v3213 = vmul.f32 %v3207, %v1607
  %v3214 = vmul.f32 %v3210, %v1608
  %s3215 = scalar_lea.vmem %s2, 56
  %v3216 = vld [vmem:[%s3215] sm:$0xff]
  %v3218 = vsel %vm2089, %v3216, 0
  %3220 = vmatprep.subr.mxu0 %v3212
  %3221 = vmatpush1.msra.mxu0 %v3211
  %3222 = vmatprep.subr.mxu0 0.0
  %3223 = vmatpush1.msra.mxu0 0.0
  %3224 = vmatprep.subr.mxu0 0.0
  %3225 = vmatpush1.msra.mxu0 0.0
  %3226 = vmatprep.subr.mxu0 0.0
  %3227 = vmatpush1.msra.mxu0 0.0
  %3228 = vmatprep.subr.mxu0 0.0
  %3229 = vmatpush1.msra.mxu0 0.0
  %3230 = vmatprep.subr.mxu0 0.0
  %3231 = vmatpush1.msra.mxu0 0.0
  %3232 = vmatprep.subr.mxu0 0.0
  %3233 = vmatpush1.msra.mxu0 0.0
  %3234 = vmatprep.subr.mxu0 0.0
  %3235 = vmatpush1.msra.mxu0 0.0
  %3236 = vmatprep.subr.mxu0 0.0
  %3237 = vmatpush1.msra.mxu0 0.0
  %3238 = vmatprep.subr.mxu0 0.0
  %3239 = vmatpush1.msra.mxu0 0.0
  %3240 = vmatprep.subr.mxu0 0.0
  %3241 = vmatpush1.msra.mxu0 0.0
  %3242 = vmatprep.subr.mxu0 0.0
  %3243 = vmatpush1.msra.mxu0 0.0
  %3244 = vmatprep.subr.mxu0 0.0
  %3245 = vmatpush1.msra.mxu0 0.0
  %3246 = vmatprep.subr.mxu0 0.0
  %3247 = vmatpush1.msra.mxu0 0.0
  %3248 = vmatprep.subr.mxu0 0.0
  %3249 = vmatpush1.msra.mxu0 0.0
  %3250 = vmatprep.subr.mxu0 0.0
  %3251 = vmatpush1.msra.mxu0 0.0
  %3252 = vmatprep.subr.mxu0 0.0
  %3253 = vmatpush1.msra.mxu0 0.0
  %3254 = vmatprep.subr.mxu0 0.0
  %3255 = vmatpush1.msra.mxu0 0.0
  %3256 = vmatprep.subr.mxu0 0.0
  %3257 = vmatpush1.msra.mxu0 0.0
  %3258 = vmatprep.subr.mxu0 0.0
  %3259 = vmatpush1.msra.mxu0 0.0
  %3260 = vmatprep.subr.mxu0 0.0
  %3261 = vmatpush1.msra.mxu0 0.0
  %3262 = vmatprep.subr.mxu0 0.0
  %3263 = vmatpush1.msra.mxu0 0.0
  %3264 = vmatprep.subr.mxu0 0.0
  %3265 = vmatpush1.msra.mxu0 0.0
  %3266 = vmatprep.subr.mxu0 0.0
  %3267 = vmatpush1.msra.mxu0 0.0
  %3268 = vmatprep.subr.mxu0 0.0
  %3269 = vmatpush1.msra.mxu0 0.0
  %3270 = vmatprep.subr.mxu0 0.0
  %3271 = vmatpush1.msra.mxu0 0.0
  %3272 = vmatprep.subr.mxu0 0.0
  %3273 = vmatpush1.msra.mxu0 0.0
  %3274 = vmatprep.subr.mxu0 0.0
  %3275 = vmatpush1.msra.mxu0 0.0
  %3276 = vmatprep.subr.mxu0 0.0
  %3277 = vmatpush1.msra.mxu0 0.0
  %3278 = vmatprep.subr.mxu0 0.0
  %3279 = vmatpush1.msra.mxu0 0.0
  %3280 = vmatprep.subr.mxu0 0.0
  %3281 = vmatpush1.msra.mxu0 0.0
  %3282 = vmatprep.subr.mxu0 0.0
  %3283 = vmatpush1.msra.mxu0 0.0
  %3284 = vmatprep.mubr.f32.mxu0 0.0
  %3285 = vmatmul.mubr.f32.gmra.mrb[0].mxu0 %v3218
  %v3286 = vpop.f32.mrb[0].mxu0
  %v3287 = vadd.f32 0.0, %v3286
  %v3288 = vpop.f32.mrb[0].mxu0
  %v3289 = vadd.f32 0.0, %v3288
  %3290 = vdwg.mxu0
  %3291 = vmatprep.subr.mxu0 %v3214
  %3292 = vmatpush1.msra.mxu0 %v3213
  %3293 = vmatprep.subr.mxu0 0.0
  %3294 = vmatpush1.msra.mxu0 0.0
  %3295 = vmatprep.subr.mxu0 0.0
  %3296 = vmatpush1.msra.mxu0 0.0
  %3297 = vmatprep.subr.mxu0 0.0
  %3298 = vmatpush1.msra.mxu0 0.0
  %3299 = vmatprep.subr.mxu0 0.0
  %3300 = vmatpush1.msra.mxu0 0.0
  %3301 = vmatprep.subr.mxu0 0.0
  %3302 = vmatpush1.msra.mxu0 0.0
  %3303 = vmatprep.subr.mxu0 0.0
  %3304 = vmatpush1.msra.mxu0 0.0
  %3305 = vmatprep.subr.mxu0 0.0
  %3306 = vmatpush1.msra.mxu0 0.0
  %3307 = vmatprep.subr.mxu0 0.0
  %3308 = vmatpush1.msra.mxu0 0.0
  %3309 = vmatprep.subr.mxu0 0.0
  %3310 = vmatpush1.msra.mxu0 0.0
  %3311 = vmatprep.subr.mxu0 0.0
  %3312 = vmatpush1.msra.mxu0 0.0
  %3313 = vmatprep.subr.mxu0 0.0
  %3314 = vmatpush1.msra.mxu0 0.0
  %3315 = vmatprep.subr.mxu0 0.0
  %3316 = vmatpush1.msra.mxu0 0.0
  %3317 = vmatprep.subr.mxu0 0.0
  %3318 = vmatpush1.msra.mxu0 0.0
  %3319 = vmatprep.subr.mxu0 0.0
  %3320 = vmatpush1.msra.mxu0 0.0
  %3321 = vmatprep.subr.mxu0 0.0
  %3322 = vmatpush1.msra.mxu0 0.0
  %3323 = vmatprep.subr.mxu0 0.0
  %3324 = vmatpush1.msra.mxu0 0.0
  %3325 = vmatprep.subr.mxu0 0.0
  %3326 = vmatpush1.msra.mxu0 0.0
  %3327 = vmatprep.subr.mxu0 0.0
  %3328 = vmatpush1.msra.mxu0 0.0
  %3329 = vmatprep.subr.mxu0 0.0
  %3330 = vmatpush1.msra.mxu0 0.0
  %3331 = vmatprep.subr.mxu0 0.0
  %3332 = vmatpush1.msra.mxu0 0.0
  %3333 = vmatprep.subr.mxu0 0.0
  %3334 = vmatpush1.msra.mxu0 0.0
  %3335 = vmatprep.subr.mxu0 0.0
  %3336 = vmatpush1.msra.mxu0 0.0
  %3337 = vmatprep.subr.mxu0 0.0
  %3338 = vmatpush1.msra.mxu0 0.0
  %3339 = vmatprep.subr.mxu0 0.0
  %3340 = vmatpush1.msra.mxu0 0.0
  %3341 = vmatprep.subr.mxu0 0.0
  %3342 = vmatpush1.msra.mxu0 0.0
  %3343 = vmatprep.subr.mxu0 0.0
  %3344 = vmatpush1.msra.mxu0 0.0
  %3345 = vmatprep.subr.mxu0 0.0
  %3346 = vmatpush1.msra.mxu0 0.0
  %3347 = vmatprep.subr.mxu0 0.0
  %3348 = vmatpush1.msra.mxu0 0.0
  %3349 = vmatprep.subr.mxu0 0.0
  %3350 = vmatpush1.msra.mxu0 0.0
  %3351 = vmatprep.subr.mxu0 0.0
  %3352 = vmatpush1.msra.mxu0 0.0
  %3353 = vmatprep.subr.mxu0 0.0
  %3354 = vmatpush1.msra.mxu0 0.0
  %3355 = vmatprep.mubr.f32.mxu0 0.0
  %3356 = vmatmul.mubr.f32.gmra.mrb[0].mxu0 %v3218
  %v3357 = vpop.f32.mrb[0].mxu0
  %v3358 = vadd.f32 0.0, %v3357
  %v3359 = vpop.f32.mrb[0].mxu0
  %v3360 = vadd.f32 0.0, %v3359
  %3361 = vdwg.mxu0
  %v3362 = vadd.f32 %v3195, %v3287
  %v3363 = vadd.f32 %v3196, %v3289
  %v3364 = vadd.f32 %v3197, %v3358
  %v3365 = vadd.f32 %v3198, %v3360
  %3366 = vrot.lane.b32.xlu0 %v2038, 111
  %v3367 = vpop.permute.xlu0 %3366
  %3368 = vrot.lane.b32.xlu0 %v2039, 111
  %v3369 = vpop.permute.xlu0 %3368
  %3370 = vrot.lane.b32.xlu0 %v2040, 111
  %v3371 = vpop.permute.xlu0 %3370
  %3372 = vrot.lane.b32.xlu0 %v2041, 111
  %v3373 = vpop.permute.xlu0 %3372
  %v3374 = vsel %vm1804, %v3371, %v3373
  %v3375 = vsel %vm1804, %v3369, %v3371
  %v3376 = vsel %vm1804, %v3367, %v3369
  %v3377 = vsel %vm1804, %v3373, %v3367
  %v3378 = vmul.f32 %v3376, %v1821
  %v3379 = vmul.f32 %v3375, %v1822
  %v3380 = vmul.f32 %v3374, %v1823
  %v3381 = vmul.f32 %v3377, %v1824
  %s3382 = scalar_lea.vmem %s2, 64
  %v3383 = vld [vmem:[%s3382] sm:$0xff]
  %v3385 = vsel %vm2089, %v3383, 0
  %3387 = vmatprep.subr.mxu0 %v3379
  %3388 = vmatpush1.msra.mxu0 %v3378
  %3389 = vmatprep.subr.mxu0 0.0
  %3390 = vmatpush1.msra.mxu0 0.0
  %3391 = vmatprep.subr.mxu0 0.0
  %3392 = vmatpush1.msra.mxu0 0.0
  %3393 = vmatprep.subr.mxu0 0.0
  %3394 = vmatpush1.msra.mxu0 0.0
  %3395 = vmatprep.subr.mxu0 0.0
  %3396 = vmatpush1.msra.mxu0 0.0
  %3397 = vmatprep.subr.mxu0 0.0
  %3398 = vmatpush1.msra.mxu0 0.0
  %3399 = vmatprep.subr.mxu0 0.0
  %3400 = vmatpush1.msra.mxu0 0.0
  %3401 = vmatprep.subr.mxu0 0.0
  %3402 = vmatpush1.msra.mxu0 0.0
  %3403 = vmatprep.subr.mxu0 0.0
  %3404 = vmatpush1.msra.mxu0 0.0
  %3405 = vmatprep.subr.mxu0 0.0
  %3406 = vmatpush1.msra.mxu0 0.0
  %3407 = vmatprep.subr.mxu0 0.0
  %3408 = vmatpush1.msra.mxu0 0.0
  %3409 = vmatprep.subr.mxu0 0.0
  %3410 = vmatpush1.msra.mxu0 0.0
  %3411 = vmatprep.subr.mxu0 0.0
  %3412 = vmatpush1.msra.mxu0 0.0
  %3413 = vmatprep.subr.mxu0 0.0
  %3414 = vmatpush1.msra.mxu0 0.0
  %3415 = vmatprep.subr.mxu0 0.0
  %3416 = vmatpush1.msra.mxu0 0.0
  %3417 = vmatprep.subr.mxu0 0.0
  %3418 = vmatpush1.msra.mxu0 0.0
  %3419 = vmatprep.subr.mxu0 0.0
  %3420 = vmatpush1.msra.mxu0 0.0
  %3421 = vmatprep.subr.mxu0 0.0
  %3422 = vmatpush1.msra.mxu0 0.0
  %3423 = vmatprep.subr.mxu0 0.0
  %3424 = vmatpush1.msra.mxu0 0.0
  %3425 = vmatprep.subr.mxu0 0.0
  %3426 = vmatpush1.msra.mxu0 0.0
  %3427 = vmatprep.subr.mxu0 0.0
  %3428 = vmatpush1.msra.mxu0 0.0
  %3429 = vmatprep.subr.mxu0 0.0
  %3430 = vmatpush1.msra.mxu0 0.0
  %3431 = vmatprep.subr.mxu0 0.0
  %3432 = vmatpush1.msra.mxu0 0.0
  %3433 = vmatprep.subr.mxu0 0.0
  %3434 = vmatpush1.msra.mxu0 0.0
  %3435 = vmatprep.subr.mxu0 0.0
  %3436 = vmatpush1.msra.mxu0 0.0
  %3437 = vmatprep.subr.mxu0 0.0
  %3438 = vmatpush1.msra.mxu0 0.0
  %3439 = vmatprep.subr.mxu0 0.0
  %3440 = vmatpush1.msra.mxu0 0.0
  %3441 = vmatprep.subr.mxu0 0.0
  %3442 = vmatpush1.msra.mxu0 0.0
  %3443 = vmatprep.subr.mxu0 0.0
  %3444 = vmatpush1.msra.mxu0 0.0
  %3445 = vmatprep.subr.mxu0 0.0
  %3446 = vmatpush1.msra.mxu0 0.0
  %3447 = vmatprep.subr.mxu0 0.0
  %3448 = vmatpush1.msra.mxu0 0.0
  %3449 = vmatprep.subr.mxu0 0.0
  %3450 = vmatpush1.msra.mxu0 0.0
  %3451 = vmatprep.mubr.f32.mxu0 0.0
  %3452 = vmatmul.mubr.f32.gmra.mrb[0].mxu0 %v3385
  %v3453 = vpop.f32.mrb[0].mxu0
  %v3454 = vadd.f32 0.0, %v3453
  %v3455 = vpop.f32.mrb[0].mxu0
  %v3456 = vadd.f32 0.0, %v3455
  %3457 = vdwg.mxu0
  %3458 = vmatprep.subr.mxu0 %v3381
  %3459 = vmatpush1.msra.mxu0 %v3380
  %3460 = vmatprep.subr.mxu0 0.0
  %3461 = vmatpush1.msra.mxu0 0.0
  %3462 = vmatprep.subr.mxu0 0.0
  %3463 = vmatpush1.msra.mxu0 0.0
  %3464 = vmatprep.subr.mxu0 0.0
  %3465 = vmatpush1.msra.mxu0 0.0
  %3466 = vmatprep.subr.mxu0 0.0
  %3467 = vmatpush1.msra.mxu0 0.0
  %3468 = vmatprep.subr.mxu0 0.0
  %3469 = vmatpush1.msra.mxu0 0.0
  %3470 = vmatprep.subr.mxu0 0.0
  %3471 = vmatpush1.msra.mxu0 0.0
  %3472 = vmatprep.subr.mxu0 0.0
  %3473 = vmatpush1.msra.mxu0 0.0
  %3474 = vmatprep.subr.mxu0 0.0
  %3475 = vmatpush1.msra.mxu0 0.0
  %3476 = vmatprep.subr.mxu0 0.0
  %3477 = vmatpush1.msra.mxu0 0.0
  %3478 = vmatprep.subr.mxu0 0.0
  %3479 = vmatpush1.msra.mxu0 0.0
  %3480 = vmatprep.subr.mxu0 0.0
  %3481 = vmatpush1.msra.mxu0 0.0
  %3482 = vmatprep.subr.mxu0 0.0
  %3483 = vmatpush1.msra.mxu0 0.0
  %3484 = vmatprep.subr.mxu0 0.0
  %3485 = vmatpush1.msra.mxu0 0.0
  %3486 = vmatprep.subr.mxu0 0.0
  %3487 = vmatpush1.msra.mxu0 0.0
  %3488 = vmatprep.subr.mxu0 0.0
  %3489 = vmatpush1.msra.mxu0 0.0
  %3490 = vmatprep.subr.mxu0 0.0
  %3491 = vmatpush1.msra.mxu0 0.0
  %3492 = vmatprep.subr.mxu0 0.0
  %3493 = vmatpush1.msra.mxu0 0.0
  %3494 = vmatprep.subr.mxu0 0.0
  %3495 = vmatpush1.msra.mxu0 0.0
  %3496 = vmatprep.subr.mxu0 0.0
  %3497 = vmatpush1.msra.mxu0 0.0
  %3498 = vmatprep.subr.mxu0 0.0
  %3499 = vmatpush1.msra.mxu0 0.0
  %3500 = vmatprep.subr.mxu0 0.0
  %3501 = vmatpush1.msra.mxu0 0.0
  %3502 = vmatprep.subr.mxu0 0.0
  %3503 = vmatpush1.msra.mxu0 0.0
  %3504 = vmatprep.subr.mxu0 0.0
  %3505 = vmatpush1.msra.mxu0 0.0
  %3506 = vmatprep.subr.mxu0 0.0
  %3507 = vmatpush1.msra.mxu0 0.0
  %3508 = vmatprep.subr.mxu0 0.0
  %3509 = vmatpush1.msra.mxu0 0.0
  %3510 = vmatprep.subr.mxu0 0.0
  %3511 = vmatpush1.msra.mxu0 0.0
  %3512 = vmatprep.subr.mxu0 0.0
  %3513 = vmatpush1.msra.mxu0 0.0
  %3514 = vmatprep.subr.mxu0 0.0
  %3515 = vmatpush1.msra.mxu0 0.0
  %3516 = vmatprep.subr.mxu0 0.0
  %3517 = vmatpush1.msra.mxu0 0.0
  %3518 = vmatprep.subr.mxu0 0.0
  %3519 = vmatpush1.msra.mxu0 0.0
  %3520 = vmatprep.subr.mxu0 0.0
  %3521 = vmatpush1.msra.mxu0 0.0
  %3522 = vmatprep.mubr.f32.mxu0 0.0
  %3523 = vmatmul.mubr.f32.gmra.mrb[0].mxu0 %v3385
  %v3524 = vpop.f32.mrb[0].mxu0
  %v3525 = vadd.f32 0.0, %v3524
  %v3526 = vpop.f32.mrb[0].mxu0
  %v3527 = vadd.f32 0.0, %v3526
  %3528 = vdwg.mxu0
  %v3529 = vadd.f32 %v3362, %v3454
  %v3530 = vadd.f32 %v3363, %v3456
  %v3531 = vadd.f32 %v3364, %v3525
  %v3532 = vadd.f32 %v3365, %v3527
  %3533 = vset.pattern.permute.xlu0 1
  %3534 = vperm.xlu0 %3533, %v19
  %v3535 = vpop.permute.xlu0 %3534
  %v3537 = vadd.f32 %v3529, %v3535
  %v3538 = vadd.f32 %v3530, %v3535
  %v3539 = vadd.f32 %v3531, %v3535
  %v3540 = vadd.f32 %v3532, %v3535
  %vm3541 = vcmp.ge.f32.partialorder %v3537, 1.0
  %vm3542 = vcmp.ge.f32.partialorder %v3538, 1.0
  %vm3543 = vcmp.ge.f32.partialorder %v3539, 1.0
  %vm3544 = vcmp.ge.f32.partialorder %v3540, 1.0
  %v3545 = vsel %vm3541, 1, 0
  %v3546 = vsel %vm3542, 1, 0
  %v3547 = vsel %vm3543, 1, 0
  %v3548 = vsel %vm3544, 1, 0
  %v3549 = vcvt.s32.f32 %v3545
  %v3550 = vcvt.s32.f32 %v3546
  %v3551 = vcvt.s32.f32 %v3547
  %v3552 = vcvt.s32.f32 %v3548
  %v3553 = vadd.f32 %v3549, %v2050
  %v3554 = vadd.f32 %v3550, %v2051
  %v3555 = vadd.f32 %v3551, %v2052
  %v3556 = vadd.f32 %v3552, %v2053
  %3557 = vst [vmem:[%s4] sm:$0xff] %v3553
  %3558 = vst [vmem:[%s4 + $0x8] sm:$0xff] %v3554
  %3559 = vst [vmem:[%s4 + $0x10] sm:$0xff] %v3555
  %3560 = vst [vmem:[%s4 + $0x18] sm:$0xff] %v3556
  // Predicated region
  $region18: #{quantized_basic_block.1} parent=0 // pred_check
    _
  $region19: #{quantized_basic_block.1} parent=0 // pred_check_branch
    %3562 = sbr.rel (0) target = $region21
  $region20: #{quantized_basic_block.1} parent=0 // pred_region
    _
  $region21: #{quantized_basic_block.1} parent=0 // pred_fallthru
    _
  // Predicated region
  $region22: #{quantized_basic_block.1} parent=0 // pred_check
    _
  $region23: #{quantized_basic_block.1} parent=0 // pred_check_branch
    %3564 = sbr.rel (0) target = $region25
  $region24: #{quantized_basic_block.1} parent=0 // pred_region
    _
  $region25: #{quantized_basic_block.1} parent=0 // pred_fallthru
    _

</llo_original>
